<compile_context>
chip_gen: v7x
topology: tpu7x:2x2x1
jax: 0.10.0
libtpu: 0.0.40
codegen_flags: <defaults>
</compile_context>

<pallas_src>
import math

import jax
import jax.numpy as jnp
from jax import lax
from jax.experimental import pallas as pl
from jax.experimental.pallas import tpu as pltpu
import numpy as np

# ------------------------- module hyper-parameters -------------------------
IN_CHANNELS = 3            # pos_dim
NR_LEVELS = 24
NR_FEAT_PER_LEVEL = 2
ENC_DIM = NR_LEVELS * NR_FEAT_PER_LEVEL          # 48
FEAT_DIM = ENC_DIM + IN_CHANNELS                  # 51  (encoding.output_dims())
GEOM_FEAT_SIZE_OUT = 15
OUT_DIM = 1 + GEOM_FEAT_SIZE_OUT                  # 16
HIDDEN = 64
GEOM_DIM = 1 + OUT_DIM                            # 17
OUT_ROWS = GEOM_DIM + 1                           # 18  (geom rows + softplus(density))
SDF_SHIFT = 0.01
CONCAT_POINTS_SCALING = 0.001
NR_ITERS_FOR_C2F = 10000

PTS_ROWS = 8                                      # [x, y, z, 1, 0, 0, 0, 0]

# row offsets inside the packed weight slab (all blocks are 64 lanes wide)
R_ENC = 0 * HIDDEN       # (64,64): cols 0..2 = proj^T, col 3 = phase (+pi/2 ones-row)
R_L1 = 1 * HIDDEN        # (128,64): fused [w1^T ; w3_feat^T], biases in column 63
R_WA = 3 * HIDDEN        # (64,64): (w2 @ w3_sf)^T       (sdf_and_feat -> density hidden)
R_W4 = 4 * HIDDEN        # (64,64): w4^T shifted down one row (output rows 1..16)
R_W2R0 = 5 * HIDDEN      # (64,64): row 0 = w2[:, 0]      (sdf selector)
R_BIAS = 6 * HIDDEN      # (64,64): column 0, rows 0..16 = output bias
W_ROWS = 7 * HIDDEN      # 448

_INV_SQRT2 = 1.0 / math.sqrt(2.0)


def _gelu_exact(x):
    # torch.nn.GELU default is the exact erf formulation.
    return 0.5 * x * (1.0 + lax.erf(x * _INV_SQRT2))


def _softplus_kernel(x):
    # matches torch.nn.Softplus(beta=1, threshold=20); log(1+exp) form used
    # in-kernel for lowering safety (abs diff vs log1p is <1e-7).
    return jnp.where(x > 20.0, x, jnp.log(1.0 + jnp.exp(jnp.minimum(x, 20.0))))


def _softplus_ref(x):
    return jnp.where(x > 20.0, x, jnp.log1p(jnp.exp(jnp.minimum(x, 20.0))))


def _round_up(x, m):
    return ((x + m - 1) // m) * m


# ------------------------------ Pallas kernel ------------------------------
def geometry_b_kernel(pts_ref, w_ref, out_ref):
    pts = pts_ref[...]                                           # (8, TN) f32

    # encoder stand-in, feature-major: feat[k, n] = sin(proj_k . x_n + phase_k)
    # window is folded into the layer-1 weights, 0.001 point scaling into the
    # identity rows of the projection, and row 63 is a constant 1 (phase pi/2)
    # that carries the layer-1 biases through the fused matmul.
    wenc = w_ref[R_ENC:R_ENC + HIDDEN, 0:PTS_ROWS]               # (64, 8)
    feat = jnp.sin(jnp.dot(wenc, pts, preferred_element_type=jnp.float32))  # (64, TN)

    # fused layer-1 of both MLPs: one (128,64)x(64,TN) MXU pass
    w_l1 = w_ref[R_L1:R_L1 + 2 * HIDDEN, :]                      # (128, 64)
    fused = jnp.dot(w_l1, feat, preferred_element_type=jnp.float32)          # (128, TN)

    # mlp_sdf hidden
    h1 = _gelu_exact(fused[0:HIDDEN, :])                         # (64, TN)

    # mlp_density hidden: feat part from the fused pass; the sdf_and_feat
    # contribution is pre-folded host-side into WA = (w2 @ w3_sf)^T.
    wa = w_ref[R_WA:R_WA + HIDDEN, :]
    h2 = _gelu_exact(fused[HIDDEN:2 * HIDDEN, :]
                     + jnp.dot(wa, h1, preferred_element_type=jnp.float32))  # (64, TN)

    # merged output: row 0 = sdf (selector on h1), rows 1..16 = density_and_feat
    w4 = w_ref[R_W4:R_W4 + HIDDEN, :]
    w2r = w_ref[R_W2R0:R_W2R0 + HIDDEN, :]
    out64 = (jnp.dot(w4, h2, preferred_element_type=jnp.float32)
             + jnp.dot(w2r, h1, preferred_element_type=jnp.float32))         # (64, TN)

    bias = w_ref[R_BIAS:R_BIAS + GEOM_DIM, 0:1]                  # (17, 1)
    geom = out64[0:GEOM_DIM, :] + bias                           # (17, TN)

    out_ref[0:GEOM_DIM, :] = geom                                # lane-dense stores
    out_ref[GEOM_DIM:OUT_ROWS, :] = _softplus_kernel(geom[1:2, :])


# ------------------------------- wrapper -----------------------------------
def map_range_val(val, in_start, in_end, out_start, out_end):
    v = min(max(val, in_start), in_end)
    t = (v - in_start) / (in_end - in_start)
    return out_start + t * (out_end - out_start)


def coarse2fine_window(t, nr_levels):
    # TODO(synk): exact permuto_enc.Coarse2Fine schedule not reproduced; standard
    # per-level linear ramp used instead.
    lv = np.arange(nr_levels, dtype=np.float32)
    return np.clip(t * nr_levels - lv, 0.0, 1.0).astype(np.float32)


def init_params(key):
    ks = jax.random.split(key, 6)

    def kaiming(k, fan_in, shape, gain):
        return (gain / math.sqrt(fan_in)) * jax.random.normal(k, shape, jnp.float32)

    params = {}
    # encoding projection (deterministic synthetic permuto stand-in).
    # Frequencies capped (geomspace 1..16) and directions normalized so sin()
    # stays well-conditioned in float32.
    freqs = np.geomspace(1.0, 16.0, num=NR_LEVELS).astype(np.float32)
    freqs48 = np.repeat(freqs, NR_FEAT_PER_LEVEL)                          # (48,)
    dirs = jax.random.normal(ks[0], (IN_CHANNELS, ENC_DIM), jnp.float32)
    dirs = dirs / jnp.linalg.norm(dirs, axis=0, keepdims=True)
    params["proj"] = dirs * jnp.asarray(freqs48)[None, :]                  # (3, 48)
    phases = np.tile(np.array([0.0, math.pi / 2.0], np.float32), NR_LEVELS)
    params["phase"] = jnp.asarray(phases)[None, :]                         # (1, 48)

    # mlp_sdf
    w1 = kaiming(ks[1], FEAT_DIM, (FEAT_DIM, HIDDEN), math.sqrt(2.0))      # leaky_relu_init slope 0
    params["w1_enc"], params["w1_pts"] = w1[:ENC_DIM], w1[ENC_DIM:]
    params["b1"] = jnp.zeros((1, HIDDEN), jnp.float32)
    params["w2"] = kaiming(ks[2], HIDDEN, (HIDDEN, OUT_DIM), 1.0)          # slope 1.0 on last layer
    b2 = jnp.zeros((OUT_DIM,), jnp.float32).at[0].add(SDF_SHIFT)           # sdf_shift
    params["b2"] = b2[None, :]

    # mlp_density
    din = FEAT_DIM + OUT_DIM
    w3 = kaiming(ks[3], din, (din, HIDDEN), math.sqrt(2.0))
    params["w3_enc"] = w3[:ENC_DIM]
    params["w3_pts"] = w3[ENC_DIM:FEAT_DIM]
    params["w3_sf"] = w3[FEAT_DIM:]
    params["b3"] = jnp.zeros((1, HIDDEN), jnp.float32)
    params["w4"] = kaiming(ks[4], HIDDEN, (HIDDEN, OUT_DIM), 1.0)
    params["b4"] = jnp.zeros((1, OUT_DIM), jnp.float32)
    return params


def _pack_operands(points, params, win48, n_pad):
    """Host-side packing: (8, n_pad) augmented points + one (448, 64) weight slab."""
    f32 = jnp.float32
    hi = jax.lax.Precision.HIGHEST
    n = points.shape[0]

    # ---- points slab: rows [x, y, z, 1, 0, 0, 0, 0] -------------------------
    pts_t = points.astype(f32).T                                           # (3, N)
    if n_pad != n:
        pts_t = jnp.pad(pts_t, ((0, 0), (0, n_pad - n)))
    pts_aug = jnp.concatenate(
        [pts_t, jnp.ones((1, n_pad), f32),
         jnp.zeros((PTS_ROWS - IN_CHANNELS - 1, n_pad), f32)], axis=0)     # (8, n_pad)

    # ---- encoder block (64, 64) ---------------------------------------------
    wenc = jnp.zeros((HIDDEN, HIDDEN), f32)
    wenc = wenc.at[0:ENC_DIM, 0:IN_CHANNELS].set(params["proj"].T)
    wenc = wenc.at[ENC_DIM:FEAT_DIM, 0:IN_CHANNELS].set(
        CONCAT_POINTS_SCALING * jnp.eye(IN_CHANNELS, dtype=f32))           # sin(1e-3 x) ~= 1e-3 x
    wenc = wenc.at[0:ENC_DIM, IN_CHANNELS].set(params["phase"][0])
    wenc = wenc.at[HIDDEN - 1, IN_CHANNELS].set(math.pi / 2.0)             # feat row 63 == 1

    # ---- fused layer-1 (128, 64): [w1^T ; w3_feat^T], biases in column 63 ----
    w1_full = jnp.concatenate(
        [params["w1_enc"] * win48[:, None], params["w1_pts"]], axis=0)     # (51, 64)
    w1t = jnp.zeros((HIDDEN, HIDDEN), f32).at[:, 0:FEAT_DIM].set(w1_full.T)
    w1t = w1t.at[:, HIDDEN - 1].set(params["b1"][0])

    b3_eff = params["b3"] + jnp.dot(params["b2"], params["w3_sf"], precision=hi)   # (1, 64)
    w3f_full = jnp.concatenate(
        [params["w3_enc"] * win48[:, None], params["w3_pts"]], axis=0)     # (51, 64)
    w3ft = jnp.zeros((HIDDEN, HIDDEN), f32).at[:, 0:FEAT_DIM].set(w3f_full.T)
    w3ft = w3ft.at[:, HIDDEN - 1].set(b3_eff[0])
    w_l1 = jnp.concatenate([w1t, w3ft], axis=0)                            # (128, 64)

    # ---- folded second-stage matrices ---------------------------------------
    wa = jnp.dot(params["w2"], params["w3_sf"], precision=hi).T            # (64, 64)
    w4sel = jnp.zeros((HIDDEN, HIDDEN), f32).at[1:1 + OUT_DIM, :].set(params["w4"].T)
    w2r0 = jnp.zeros((HIDDEN, HIDDEN), f32).at[0, :].set(params["w2"][:, 0])

    bias_out = jnp.zeros((HIDDEN,), f32)
    bias_out = bias_out.at[0].set(params["b2"][0, 0])
    bias_out = bias_out.at[1:1 + OUT_DIM].set(params["b4"][0])
    bias_blk = jnp.zeros((HIDDEN, HIDDEN), f32).at[:, 0].set(bias_out)

    w_slab = jnp.concatenate([wenc, w_l1, wa, w4sel, w2r0, bias_blk], axis=0)  # (448, 64)
    return pts_aug, w_slab


def geometry_b_forward(points, iter_nr, params, *, tile_n=2048):
    N, C = points.shape
    assert C == IN_CHANNELS, "points should be N x in_channels"

    # tile over the point axis (the lane axis inside the kernel): multiple of 128
    tile_n = int(min(int(tile_n), 8192))
    tile_n = max(128, (min(tile_n, _round_up(N, 128)) // 128) * 128)
    # give the v7x megacore at least two parallel grid steps
    if _round_up(N, tile_n) // tile_n < 2 and N > 128:
        tile_n = _round_up((N + 1) // 2, 128)
    n_pad = _round_up(N, tile_n)
    grid = (n_pad // tile_n,)

    # coarse2fine window for this iteration
    t = map_range_val(float(iter_nr), 0.0, float(NR_ITERS_FOR_C2F), 0.3, 1.0)
    window = coarse2fine_window(t, NR_LEVELS)
    win48 = jnp.asarray(np.repeat(window, NR_FEAT_PER_LEVEL))              # (48,)

    pts_aug, w_slab = _pack_operands(points, params, win48, n_pad)

    # ---- advisory cost estimate ---------------------------------------------
    flops = int(2 * n_pad * (HIDDEN * PTS_ROWS + 2 * HIDDEN * HIDDEN + 3 * HIDDEN * HIDDEN))
    transcendentals = int(n_pad * (HIDDEN + 2 * HIDDEN + 2))   # sin + 2x erf + softplus
    bytes_accessed = int(n_pad * (PTS_ROWS + OUT_ROWS) * 4 + W_ROWS * HIDDEN * 4)
    cost = pl.CostEstimate(flops=flops, transcendentals=transcendentals,
                           bytes_accessed=bytes_accessed)

    # ---- VMEM budget from actual (sublane, lane)-padded buffer sizes ---------
    def _buf_bytes(rows, cols):
        return _round_up(rows, 8) * _round_up(cols, 128) * 4

    io_bytes = 2 * (_buf_bytes(PTS_ROWS, tile_n) + _buf_bytes(W_ROWS, HIDDEN)
                    + _buf_bytes(OUT_ROWS, tile_n))                        # double-buffered I/O
    interm_bytes = (4 * _buf_bytes(HIDDEN, tile_n) + _buf_bytes(2 * HIDDEN, tile_n)
                    + _buf_bytes(OUT_ROWS, tile_n))                        # in-kernel temporaries
    need = io_bytes + 2 * interm_bytes + (4 << 20)
    try:
        cap = int(pltpu.get_tpu_info().vmem_capacity_bytes)
    except Exception:
        cap = 64 << 20                          # v7x physical VMEM (smallest generation)
    vmem_limit = int(max(16 << 20, min(need, (cap * 3) // 4)))

    fn = pl.pallas_call(
        geometry_b_kernel,
        out_shape=jax.ShapeDtypeStruct((OUT_ROWS, n_pad), jnp.float32),
        grid_spec=pltpu.PrefetchScalarGridSpec(
            num_scalar_prefetch=0,
            grid=grid,
            in_specs=[
                pl.BlockSpec((PTS_ROWS, tile_n), lambda i: (0, i)),        # feature-major points
                pl.BlockSpec((W_ROWS, HIDDEN), lambda i: (0, 0)),          # packed weights/biases
            ],
            out_specs=pl.BlockSpec((OUT_ROWS, tile_n), lambda i: (0, i)),  # lane-dense output
        ),
        compiler_params=pltpu.CompilerParams(
            dimension_semantics=("parallel",),
            vmem_limit_bytes=vmem_limit),
        cost_estimate=cost,
    )
    out_t = fn(pts_aug, w_slab)                                            # (18, n_pad)

    out = jnp.transpose(out_t)[:N]                                         # one XLA transpose
    geom_feat = out[:, 0:GEOM_DIM]
    sdf = out[:, 0:1]
    density = out[:, GEOM_DIM:OUT_ROWS]
    return sdf, density, geom_feat


# --------------------------- pure-JAX reference -----------------------------
def geometry_b_reference(points, iter_nr, params):
    t = map_range_val(float(iter_nr), 0.0, float(NR_ITERS_FOR_C2F), 0.3, 1.0)
    window = coarse2fine_window(t, NR_LEVELS)
    win48 = jnp.asarray(np.repeat(window, NR_FEAT_PER_LEVEL))[None, :]

    enc = jnp.sin(points @ params["proj"] + params["phase"]) * win48
    pts_s = points * CONCAT_POINTS_SCALING
    feat = jnp.concatenate([enc, pts_s], axis=1)

    w1 = jnp.concatenate([params["w1_enc"], params["w1_pts"]], axis=0)
    h1 = _gelu_exact(feat @ w1 + params["b1"])
    sdf_and_feat = h1 @ params["w2"] + params["b2"]

    din = jnp.concatenate([feat, sdf_and_feat], axis=1)
    w3 = jnp.concatenate([params["w3_enc"], params["w3_pts"], params["w3_sf"]], axis=0)
    h2 = _gelu_exact(din @ w3 + params["b3"])
    daf = h2 @ params["w4"] + params["b4"]

    sdf = sdf_and_feat[:, 0:1]
    density = _softplus_ref(daf[:, 0:1])
    geom_feat = jnp.concatenate([sdf, daf], axis=1)
    return sdf, density, geom_feat


if __name__ == "__main__":
    key = jax.random.PRNGKey(0)
    pkey, xkey = jax.random.split(key)
    params = init_params(pkey)

    N = 1000                                   # exercises padding + a 2-step grid
    points = jax.random.uniform(xkey, (N, IN_CHANNELS), jnp.float32,
                                minval=-1.0, maxval=1.0)
    iter_nr = 2500

    sdf, density, geom_feat = geometry_b_forward(points, iter_nr, params, tile_n=2048)
    jax.block_until_ready((sdf, density, geom_feat))

    sdf_r, dens_r, geom_r = geometry_b_reference(points, iter_nr, params)
    assert sdf.shape == (N, 1) and density.shape == (N, 1)
    assert geom_feat.shape == (N, GEOM_DIM)
    ok = (np.allclose(np.asarray(sdf), np.asarray(sdf_r), atol=3e-4, rtol=3e-4)
          and np.allclose(np.asarray(density), np.asarray(dens_r), atol=3e-4, rtol=3e-4)
          and np.allclose(np.asarray(geom_feat), np.asarray(geom_r), atol=3e-4, rtol=3e-4))
    assert ok, "Pallas kernel does not match reference"
    print("KERNEL_OK")
</pallas_src>

<mosaic_0001>
module attributes {stable_mosaic.version = 11 : i64} {
  func.func @geometry_b_kernel(%arg0: i32, %arg1: memref<8x512xf32, #tpu.memory_space<vmem>>, %arg2: memref<448x64xf32, #tpu.memory_space<vmem>>, %arg3: memref<18x512xf32, #tpu.memory_space<vmem>>) attributes {dimension_semantics = [#tpu.dimension_semantics<parallel>], iteration_bounds = array<i64: 2>, scalar_prefetch = 0 : i64, scratch_operands = 0 : i64, tpu.core_type = #tpu.core_type<tc>, window_params = [{transform_indices = @transform_0, window_bounds = array<i64: 8, 512>}, {pipeline_mode = #tpu.pipeline_mode<synchronous>, transform_indices = @transform_1, window_bounds = array<i64: 448, 64>}, {transform_indices = @transform_2, window_bounds = array<i64: 18, 512>}]} {
    %c0 = arith.constant 0 : index
    %c0_0 = arith.constant 0 : index
    %0 = vector.load %arg1[%c0, %c0_0] : memref<8x512xf32, #tpu.memory_space<vmem>>, vector<8x512xf32>
    %c0_1 = arith.constant 0 : index
    %c0_2 = arith.constant 0 : index
    %1 = vector.load %arg2[%c0_1, %c0_2] : memref<448x64xf32, #tpu.memory_space<vmem>>, vector<64x8xf32>
    %cst = arith.constant dense<0.000000e+00> : vector<64x512xf32>
    %2 = tpu.matmul %1, %0, %cst {dimension_numbers = #tpu.dot_dimension_numbers<[1], [0], [0], [1], [0, 0, 1, 1], [], []>} : vector<64x8xf32>, vector<8x512xf32>, vector<64x512xf32> -> vector<64x512xf32>
    %3 = math.sin %2 : vector<64x512xf32>
    %c64 = arith.constant 64 : index
    %c0_3 = arith.constant 0 : index
    %4 = vector.load %arg2[%c64, %c0_3] : memref<448x64xf32, #tpu.memory_space<vmem>>, vector<128x64xf32>
    %cst_4 = arith.constant dense<0.000000e+00> : vector<128x512xf32>
    %5 = tpu.matmul %4, %3, %cst_4 {dimension_numbers = #tpu.dot_dimension_numbers<[1], [0], [0], [1], [0, 0, 1, 1], [], []>} : vector<128x64xf32>, vector<64x512xf32>, vector<128x512xf32> -> vector<128x512xf32>
    %6 = vector.extract_strided_slice %5 {offsets = [0, 0], sizes = [64, 512], strides = [1, 1]} : vector<128x512xf32> to vector<64x512xf32>
    %cst_5 = arith.constant 5.000000e-01 : f32
    %7 = vector.broadcast %cst_5 : f32 to vector<64x512xf32>
    %8 = arith.mulf %7, %6 : vector<64x512xf32>
    %cst_6 = arith.constant 0.707106769 : f32
    %9 = vector.broadcast %cst_6 : f32 to vector<64x512xf32>
    %10 = arith.mulf %6, %9 : vector<64x512xf32>
    %11 = math.erf %10 : vector<64x512xf32>
    %cst_7 = arith.constant 1.000000e+00 : f32
    %12 = vector.broadcast %cst_7 : f32 to vector<64x512xf32>
    %13 = arith.addf %12, %11 : vector<64x512xf32>
    %14 = arith.mulf %8, %13 : vector<64x512xf32>
    %c192 = arith.constant 192 : index
    %c0_8 = arith.constant 0 : index
    %15 = vector.load %arg2[%c192, %c0_8] : memref<448x64xf32, #tpu.memory_space<vmem>>, vector<64x64xf32>
    %16 = vector.extract_strided_slice %5 {offsets = [64, 0], sizes = [64, 512], strides = [1, 1]} : vector<128x512xf32> to vector<64x512xf32>
    %cst_9 = arith.constant dense<0.000000e+00> : vector<64x512xf32>
    %17 = tpu.matmul %15, %14, %cst_9 {dimension_numbers = #tpu.dot_dimension_numbers<[1], [0], [0], [1], [0, 0, 1, 1], [], []>} : vector<64x64xf32>, vector<64x512xf32>, vector<64x512xf32> -> vector<64x512xf32>
    %18 = arith.addf %16, %17 : vector<64x512xf32>
    %cst_10 = arith.constant 5.000000e-01 : f32
    %19 = vector.broadcast %cst_10 : f32 to vector<64x512xf32>
    %20 = arith.mulf %19, %18 : vector<64x512xf32>
    %cst_11 = arith.constant 0.707106769 : f32
    %21 = vector.broadcast %cst_11 : f32 to vector<64x512xf32>
    %22 = arith.mulf %18, %21 : vector<64x512xf32>
    %23 = math.erf %22 : vector<64x512xf32>
    %cst_12 = arith.constant 1.000000e+00 : f32
    %24 = vector.broadcast %cst_12 : f32 to vector<64x512xf32>
    %25 = arith.addf %24, %23 : vector<64x512xf32>
    %26 = arith.mulf %20, %25 : vector<64x512xf32>
    %c256 = arith.constant 256 : index
    %c0_13 = arith.constant 0 : index
    %27 = vector.load %arg2[%c256, %c0_13] : memref<448x64xf32, #tpu.memory_space<vmem>>, vector<64x64xf32>
    %c320 = arith.constant 320 : index
    %c0_14 = arith.constant 0 : index
    %28 = vector.load %arg2[%c320, %c0_14] : memref<448x64xf32, #tpu.memory_space<vmem>>, vector<64x64xf32>
    %cst_15 = arith.constant dense<0.000000e+00> : vector<64x512xf32>
    %29 = tpu.matmul %27, %26, %cst_15 {dimension_numbers = #tpu.dot_dimension_numbers<[1], [0], [0], [1], [0, 0, 1, 1], [], []>} : vector<64x64xf32>, vector<64x512xf32>, vector<64x512xf32> -> vector<64x512xf32>
    %cst_16 = arith.constant dense<0.000000e+00> : vector<64x512xf32>
    %30 = tpu.matmul %28, %14, %cst_16 {dimension_numbers = #tpu.dot_dimension_numbers<[1], [0], [0], [1], [0, 0, 1, 1], [], []>} : vector<64x64xf32>, vector<64x512xf32>, vector<64x512xf32> -> vector<64x512xf32>
    %31 = arith.addf %29, %30 : vector<64x512xf32>
    %c384 = arith.constant 384 : index
    %c0_17 = arith.constant 0 : index
    %32 = vector.load %arg2[%c384, %c0_17] : memref<448x64xf32, #tpu.memory_space<vmem>>, vector<17x1xf32>
    %33 = vector.extract_strided_slice %31 {offsets = [0, 0], sizes = [17, 512], strides = [1, 1]} : vector<64x512xf32> to vector<17x512xf32>
    %34 = vector.broadcast %32 : vector<17x1xf32> to vector<17x512xf32>
    %35 = arith.addf %33, %34 : vector<17x512xf32>
    %c0_18 = arith.constant 0 : index
    %c0_19 = arith.constant 0 : index
    %36 = vector.load %arg3[%c0_18, %c0_19] : memref<18x512xf32, #tpu.memory_space<vmem>>, vector<17x512xf32>
    tpu.vector_store %arg3[%c0_18, %c0_19], %35 {strides = array<i32>} : memref<18x512xf32, #tpu.memory_space<vmem>>, vector<17x512xf32>,
    %37 = vector.extract_strided_slice %35 {offsets = [1, 0], sizes = [1, 512], strides = [1, 1]} : vector<17x512xf32> to vector<1x512xf32>
    %cst_20 = arith.constant 2.000000e+01 : f32
    %38 = vector.broadcast %cst_20 : f32 to vector<1x512xf32>
    %39 = arith.cmpf ogt, %37, %38 : vector<1x512xf32>
    %cst_21 = arith.constant 2.000000e+01 : f32
    %40 = vector.broadcast %cst_21 : f32 to vector<1x512xf32>
    %41 = arith.minimumf %37, %40 : vector<1x512xf32>
    %42 = math.exp %41 : vector<1x512xf32>
    %cst_22 = arith.constant 1.000000e+00 : f32
    %43 = vector.broadcast %cst_22 : f32 to vector<1x512xf32>
    %44 = arith.addf %43, %42 : vector<1x512xf32>
    %45 = math.log %44 : vector<1x512xf32>
    %46 = arith.select %39, %37, %45 : vector<1x512xi1>, vector<1x512xf32>
    %c17 = arith.constant 17 : index
    %c0_23 = arith.constant 0 : index
    %47 = vector.load %arg3[%c17, %c0_23] : memref<18x512xf32, #tpu.memory_space<vmem>>, vector<1x512xf32>
    tpu.vector_store %arg3[%c17, %c0_23], %46 {strides = array<i32>} : memref<18x512xf32, #tpu.memory_space<vmem>>, vector<1x512xf32>,
    return
  }
  func.func @transform_0(%arg0: i32) -> (i32, i32) {
    %c0_i32 = arith.constant 0 : i32
    %c0_i32_0 = arith.constant 0 : i32
    return %c0_i32, %arg0 : i32, i32
  }
  func.func @transform_1(%arg0: i32) -> (i32, i32) {
    %c0_i32 = arith.constant 0 : i32
    %c0_i32_0 = arith.constant 0 : i32
    %c0_i32_1 = arith.constant 0 : i32
    return %c0_i32, %c0_i32_0 : i32, i32
  }
  func.func @transform_2(%arg0: i32) -> (i32, i32) {
    %c0_i32 = arith.constant 0 : i32
    %c0_i32_0 = arith.constant 0 : i32
    return %c0_i32, %arg0 : i32, i32
  }
}

</mosaic_0001>

<llo_original>
// kernel: tpu_custom_call.1
$region0: #{tpu_custom_call.1}
  #allocation0 [shape = 'u32[]', space=smem, size = 0x4, offset = 0x4, fixed_abs, tag = 'smem constant byte address 0x4 - core index']
  #allocation1 [shape = 'u32[144,128]{1,0:T(1,128)}', space=vmem, size = 0x12000, scoped, tag = 'internal scratch']
  %s0 = inlined_call_operand.vmem [shape: f32[8,1024], index: 0, kind: input, shape index: {}]
  %s1 = inlined_call_operand.vmem [shape: f32[448,64], index: 1, kind: input, shape index: {}]
  %s2 = inlined_call_operand.hbm [shape: f32[18,1024], index: 2, kind: output, shape index: {}]
  %s3 = sld [smem:[#allocation0]]
  $region41: #{tpu_custom_call.1} parent=0
    _
  %s5 = ssub.s32 1, %s3
  %s6 = scalar_select 0, %s5, %s3
  $region1: #{tpu_custom_call.1} parent=0
    #allocation2 [shape = 'u8[98304]{0}', space=vmem, size = 0x18000, scoped, tag = 'output window, operand 0']
    #allocation3 [shape = 's32[2]{0}', space=sflag, size = 0x8, scoped, tag = 'scoped memory for tpu_custom_call.1']
    %7 = vsyncpa [#allocation3], 0
    %s8 = scalar_lea.sflag [#allocation3], 1
    %9 = vsyncpa %s8, 0
    loop: start=0, step=1, limit=4
    $region2: #{tpu_custom_call.1} parent=1 // loop_pre_header
      _
    $region3: #{tpu_custom_call.1} parent=1 // loop_header
      %s11 = sphi 0, %s15
      %p12 = scmp.ge.s32.totalorder %s11, 4
      %s21 = sphi 0, %s23
      %s24 = sphi 0, %s21
      %s25 = sphi 0, %s24
      %s41 = sphi 0, %s25
      %s45 = sphi 0, %s45
      %s47 = sphi 0, %s45
      %s48 = sphi 0, %s47
      %s62 = sphi 0, %s48
      %s68 = sphi 0, %s70
      %s71 = sphi 0, %s68
      %s72 = sphi 0, %s71
      %s88 = sphi 0, %s72
    $region4: #{tpu_custom_call.1} parent=1 // loop_header_branch
      %14 = sbr.rel (%p12) target = $region8
    $region5: #{tpu_custom_call.1} parent=1 // loop_body
      %s16 = ssub.s32 %s11, 1
      %s17 = ssub.s32 %s11, 2
      %s18 = sadd.s32 %s11, 1
      %s19 = ssub.s32 %s11, %s18
      %p20 = scmp.eq.s32.totalorder %s19, 0
      %s22 = sadd.s32 %s21, 1
      %s23 = scalar_select %p20, %s21, %s22
      %p26 = pneg %p20
      %p27 = scmp.eq.s32.totalorder %s11, 1
      %p28 = por %p26, %p27
      %p29 = scmp.ne.s32.totalorder %s21, %s24
      %p30 = scmp.eq.s32.totalorder %s11, 0
      %p31 = por %p29, %p30
      %p32 = scmp.ne.s32.totalorder %s21, %s24
      %p33 = scmp.eq.s32.totalorder %s16, 1
      %p34 = por %p32, %p33
      %p35 = scmp.ne.s32.totalorder %s24, %s25
      %p36 = scmp.eq.s32.totalorder %s16, 0
      %p37 = por %p35, %p36
      %p38 = scmp.ne.s32.totalorder %s24, %s25
      %p39 = scmp.eq.s32.totalorder %s17, 1
      %p40 = por %p38, %p39
      %p42 = scmp.ne.s32.totalorder %s25, %s41
      %p43 = scmp.eq.s32.totalorder %s17, 0
      %p44 = por %p42, %p43
      %s46 = sadd.s32 %s45, 1
      %p49 = scmp.eq.s32.totalorder %s11, 1
      %p50 = scmp.ne.s32.totalorder %s45, %s47
      %p51 = scmp.eq.s32.totalorder %s11, 0
      %p52 = por %p50, %p51
      %p53 = scmp.ne.s32.totalorder %s45, %s47
      %p54 = scmp.eq.s32.totalorder %s16, 1
      %p55 = por %p53, %p54
      %p56 = scmp.ne.s32.totalorder %s47, %s48
      %p57 = scmp.eq.s32.totalorder %s16, 0
      %p58 = por %p56, %p57
      %p59 = scmp.ne.s32.totalorder %s47, %s48
      %p60 = scmp.eq.s32.totalorder %s17, 1
      %p61 = por %p59, %p60
      %p63 = scmp.ne.s32.totalorder %s48, %s62
      %p64 = scmp.eq.s32.totalorder %s17, 0
      %p65 = por %p63, %p64
      %s66 = ssub.s32 %s11, %s18
      %p67 = scmp.eq.s32.totalorder %s66, 0
      %s69 = sadd.s32 %s68, 1
      %s70 = scalar_select %p67, %s68, %s69
      %p73 = pneg %p67
      %p74 = scmp.eq.s32.totalorder %s11, 1
      %p75 = por %p73, %p74
      %p76 = scmp.ne.s32.totalorder %s68, %s71
      %p77 = scmp.eq.s32.totalorder %s11, 0
      %p78 = por %p76, %p77
      %p79 = scmp.ne.s32.totalorder %s68, %s71
      %p80 = scmp.eq.s32.totalorder %s16, 1
      %p81 = por %p79, %p80
      %p82 = scmp.ne.s32.totalorder %s71, %s72
      %p83 = scmp.eq.s32.totalorder %s16, 0
      %p84 = por %p82, %p83
      %p85 = scmp.ne.s32.totalorder %s71, %s72
      %p86 = scmp.eq.s32.totalorder %s17, 1
      %p87 = por %p85, %p86
      %p89 = scmp.ne.s32.totalorder %s72, %s88
      %p90 = scmp.eq.s32.totalorder %s17, 0
      %p91 = por %p89, %p90
      %p92 = scmp.le.s32.totalorder 1, %s11
      %p93 = scmp.lt.s32.totalorder %s11, 3
      %p94 = pnand %p92, %p93
      %p95 = pneg %p94
      // Predicated region
      $region9: #{tpu_custom_call.1} parent=5 // pred_check
        _
      $region10: #{tpu_custom_call.1} parent=5 // pred_check_branch
        %97 = sbr.rel (%p94) target = $region12
      $region11: #{tpu_custom_call.1} parent=5 // pred_region
        %s98 = ssub.s32 %s11, 1
        // Predicated region
        $region13: #{tpu_custom_call.1} parent=11 // pred_check
          %p99 = pneg %p58
        $region14: #{tpu_custom_call.1} parent=11 // pred_check_branch
          %101 = sbr.rel (%p99) target = $region16
        $region15: #{tpu_custom_call.1} parent=11 // pred_region
          _
        $region16: #{tpu_custom_call.1} parent=11 // pred_fallthru
          _
      $region12: #{tpu_custom_call.1} parent=5 // pred_fallthru
        _
      %p102 = scmp.lt.s32.totalorder %s11, 2
      // Predicated region
      $region17: #{tpu_custom_call.1} parent=5 // pred_check
        %p103 = pneg %p102
      $region18: #{tpu_custom_call.1} parent=5 // pred_check_branch
        %105 = sbr.rel (%p103) target = $region20
      $region19: #{tpu_custom_call.1} parent=5 // pred_region
        // Predicated region
        $region21: #{tpu_custom_call.1} parent=19 // pred_check
          %p106 = pneg %p31
        $region22: #{tpu_custom_call.1} parent=19 // pred_check_branch
          %108 = sbr.rel (%p106) target = $region24
        $region23: #{tpu_custom_call.1} parent=19 // pred_region
          %s109 = smul.u32 4, %s11
          %p110 = scmp.lt.s32.totalorder %s109, 7
          %s111 = scalar_select %p110, %s109, 7
          %s112 = smul.addr %s111, 8
          %s113 = scalar_lea.vmem %s0, %s112
          %s114 = smul.u32 4, %s11
        $region24: #{tpu_custom_call.1} parent=19 // pred_fallthru
          _
      $region20: #{tpu_custom_call.1} parent=5 // pred_fallthru
        _
      %p115 = scmp.le.s32.totalorder 1, %s11
      %p116 = scmp.lt.s32.totalorder %s11, 3
      %p117 = pnand %p115, %p116
      %p118 = pneg %p117
      // Predicated region
      $region25: #{tpu_custom_call.1} parent=5 // pred_check
        _
      $region26: #{tpu_custom_call.1} parent=5 // pred_check_branch
        %120 = sbr.rel (%p117) target = $region28
      $region27: #{tpu_custom_call.1} parent=5 // pred_region
        %s121 = ssub.s32 %s11, 1
        %s122 = smul.u32 4, %s16
        %p123 = scmp.lt.s32.totalorder %s122, 7
        %s124 = scalar_select %p123, %s122, 7
        %s125 = smul.addr %s124, 8
        %s126 = scalar_lea.vmem %s0, %s125
        %p127 = pneg %p37
        %p128 = pneg %p34
        %p129 = pneg %p58
        %p130 = pneg %p55
        %p131 = pneg %p84
        %p132 = pneg %p81
        %s133 = sand.u32 %s71, 1
        %s134 = scalar_lea.sflag [#allocation3], %s133
        %s135 = sand.u32 %s71, 1
        %s136 = smul.addr %s135, 96
        %s137 = scalar_lea.vmem [#allocation2], %s136
        %s138 = smul.u32 4, %s16
        %p139 = scmp.lt.s32.totalorder %s138, 7
        %s140 = scalar_select %p139, %s138, 7
        %s141 = smul.addr %s140, 8
        %s142 = scalar_lea.vmem %s0, %s141
        %s143 = smul.u32 4, %s16
        %s144 = smul.u32 4, %s16
        %v145 = vld [vmem:[%s142] sm:$0xff]
        %v146 = vld [vmem:[%s142 + $0x8] sm:$0xff]
        %v147 = vld [vmem:[%s142 + $0x10] sm:$0xff]
        %v148 = vld [vmem:[%s142 + $0x18] sm:$0xff]
        %v149 = vld [vmem:[%s1] sm:$0xff]
        %v150 = vld [vmem:[%s1 + $0x8] sm:$0xff]
        %v151 = vld [vmem:[%s1 + $0x10] sm:$0xff]
        %v152 = vld [vmem:[%s1 + $0x18] sm:$0xff]
        %v153 = vld [vmem:[%s1 + $0x20] sm:$0xff]
        %v154 = vld [vmem:[%s1 + $0x28] sm:$0xff]
        %v155 = vld [vmem:[%s1 + $0x30] sm:$0xff]
        %v156 = vld [vmem:[%s1 + $0x38] sm:$0xff]
        %vm157 = vcmask 64512
        %v159 = vsel %vm157, %v149, 0
        %v162 = vsel %vm157, %v150, 0
        %v165 = vsel %vm157, %v151, 0
        %v168 = vsel %vm157, %v152, 0
        %v171 = vsel %vm157, %v153, 0
        %v174 = vsel %vm157, %v154, 0
        %v177 = vsel %vm157, %v155, 0
        %v180 = vsel %vm157, %v156, 0
        %182 = vmatprep.subr.mxu0 %v146
        %183 = vmatpush1.msra.mxu0 %v145
        %184 = vmatprep.subr.mxu0 0.0
        %185 = vmatpush1.msra.mxu0 0.0
        %186 = vmatprep.subr.mxu0 0.0
        %187 = vmatpush1.msra.mxu0 0.0
        %188 = vmatprep.subr.mxu0 0.0
        %189 = vmatpush1.msra.mxu0 0.0
        %190 = vmatprep.subr.mxu0 0.0
        %191 = vmatpush1.msra.mxu0 0.0
        %192 = vmatprep.subr.mxu0 0.0
        %193 = vmatpush1.msra.mxu0 0.0
        %194 = vmatprep.subr.mxu0 0.0
        %195 = vmatpush1.msra.mxu0 0.0
        %196 = vmatprep.subr.mxu0 0.0
        %197 = vmatpush1.msra.mxu0 0.0
        %198 = vmatprep.subr.mxu0 0.0
        %199 = vmatpush1.msra.mxu0 0.0
        %200 = vmatprep.subr.mxu0 0.0
        %201 = vmatpush1.msra.mxu0 0.0
        %202 = vmatprep.subr.mxu0 0.0
        %203 = vmatpush1.msra.mxu0 0.0
        %204 = vmatprep.subr.mxu0 0.0
        %205 = vmatpush1.msra.mxu0 0.0
        %206 = vmatprep.subr.mxu0 0.0
        %207 = vmatpush1.msra.mxu0 0.0
        %208 = vmatprep.subr.mxu0 0.0
        %209 = vmatpush1.msra.mxu0 0.0
        %210 = vmatprep.subr.mxu0 0.0
        %211 = vmatpush1.msra.mxu0 0.0
        %212 = vmatprep.subr.mxu0 0.0
        %213 = vmatpush1.msra.mxu0 0.0
        %214 = vmatprep.subr.mxu0 0.0
        %215 = vmatpush1.msra.mxu0 0.0
        %216 = vmatprep.subr.mxu0 0.0
        %217 = vmatpush1.msra.mxu0 0.0
        %218 = vmatprep.subr.mxu0 0.0
        %219 = vmatpush1.msra.mxu0 0.0
        %220 = vmatprep.subr.mxu0 0.0
        %221 = vmatpush1.msra.mxu0 0.0
        %222 = vmatprep.subr.mxu0 0.0
        %223 = vmatpush1.msra.mxu0 0.0
        %224 = vmatprep.subr.mxu0 0.0
        %225 = vmatpush1.msra.mxu0 0.0
        %226 = vmatprep.subr.mxu0 0.0
        %227 = vmatpush1.msra.mxu0 0.0
        %228 = vmatprep.subr.mxu0 0.0
        %229 = vmatpush1.msra.mxu0 0.0
        %230 = vmatprep.subr.mxu0 0.0
        %231 = vmatpush1.msra.mxu0 0.0
        %232 = vmatprep.subr.mxu0 0.0
        %233 = vmatpush1.msra.mxu0 0.0
        %234 = vmatprep.subr.mxu0 0.0
        %235 = vmatpush1.msra.mxu0 0.0
        %236 = vmatprep.subr.mxu0 0.0
        %237 = vmatpush1.msra.mxu0 0.0
        %238 = vmatprep.subr.mxu0 0.0
        %239 = vmatpush1.msra.mxu0 0.0
        %240 = vmatprep.subr.mxu0 0.0
        %241 = vmatpush1.msra.mxu0 0.0
        %242 = vmatprep.subr.mxu0 0.0
        %243 = vmatpush1.msra.mxu0 0.0
        %244 = vmatprep.subr.mxu0 0.0
        %245 = vmatpush1.msra.mxu0 0.0
        %246 = vmatprep.mubr.f32.mxu0 0.0
        %247 = vmatmul.mubr.f32.gmra.mrb[0].mxu0 %v159
        %v248 = vpop.f32.mrb[0].mxu0
        %v249 = vadd.f32 0.0, %v248
        %v250 = vpop.f32.mrb[0].mxu0
        %v251 = vadd.f32 0.0, %v250
        %252 = vmatprep.mubr.f32.mxu0 0.0
        %253 = vmatmul.mubr.f32.gmra.mrb[0].mxu0 %v162
        %v254 = vpop.f32.mrb[0].mxu0
        %v255 = vadd.f32 0.0, %v254
        %v256 = vpop.f32.mrb[0].mxu0
        %v257 = vadd.f32 0.0, %v256
        %258 = vmatprep.mubr.f32.mxu0 0.0
        %259 = vmatmul.mubr.f32.gmra.mrb[0].mxu0 %v165
        %v260 = vpop.f32.mrb[0].mxu0
        %v261 = vadd.f32 0.0, %v260
        %v262 = vpop.f32.mrb[0].mxu0
        %v263 = vadd.f32 0.0, %v262
        %264 = vmatprep.mubr.f32.mxu0 0.0
        %265 = vmatmul.mubr.f32.gmra.mrb[0].mxu0 %v168
        %v266 = vpop.f32.mrb[0].mxu0
        %v267 = vadd.f32 0.0, %v266
        %v268 = vpop.f32.mrb[0].mxu0
        %v269 = vadd.f32 0.0, %v268
        %270 = vmatprep.mubr.f32.mxu0 0.0
        %271 = vmatmul.mubr.f32.gmra.mrb[0].mxu0 %v171
        %v272 = vpop.f32.mrb[0].mxu0
        %v273 = vadd.f32 0.0, %v272
        %v274 = vpop.f32.mrb[0].mxu0
        %v275 = vadd.f32 0.0, %v274
        %276 = vmatprep.mubr.f32.mxu0 0.0
        %277 = vmatmul.mubr.f32.gmra.mrb[0].mxu0 %v174
        %v278 = vpop.f32.mrb[0].mxu0
        %v279 = vadd.f32 0.0, %v278
        %v280 = vpop.f32.mrb[0].mxu0
        %v281 = vadd.f32 0.0, %v280
        %282 = vmatprep.mubr.f32.mxu0 0.0
        %283 = vmatmul.mubr.f32.gmra.mrb[0].mxu0 %v177
        %v284 = vpop.f32.mrb[0].mxu0
        %v285 = vadd.f32 0.0, %v284
        %v286 = vpop.f32.mrb[0].mxu0
        %v287 = vadd.f32 0.0, %v286
        %288 = vmatprep.mubr.f32.mxu0 0.0
        %289 = vmatmul.mubr.f32.gmra.mrb[0].mxu0 %v180
        %v290 = vpop.f32.mrb[0].mxu0
        %v291 = vadd.f32 0.0, %v290
        %v292 = vpop.f32.mrb[0].mxu0
        %v293 = vadd.f32 0.0, %v292
        %294 = vdwg.mxu0
        %295 = vmatprep.subr.mxu0 %v148
        %296 = vmatpush1.msra.mxu0 %v147
        %297 = vmatprep.subr.mxu0 0.0
        %298 = vmatpush1.msra.mxu0 0.0
        %299 = vmatprep.subr.mxu0 0.0
        %300 = vmatpush1.msra.mxu0 0.0
        %301 = vmatprep.subr.mxu0 0.0
        %302 = vmatpush1.msra.mxu0 0.0
        %303 = vmatprep.subr.mxu0 0.0
        %304 = vmatpush1.msra.mxu0 0.0
        %305 = vmatprep.subr.mxu0 0.0
        %306 = vmatpush1.msra.mxu0 0.0
        %307 = vmatprep.subr.mxu0 0.0
        %308 = vmatpush1.msra.mxu0 0.0
        %309 = vmatprep.subr.mxu0 0.0
        %310 = vmatpush1.msra.mxu0 0.0
        %311 = vmatprep.subr.mxu0 0.0
        %312 = vmatpush1.msra.mxu0 0.0
        %313 = vmatprep.subr.mxu0 0.0
        %314 = vmatpush1.msra.mxu0 0.0
        %315 = vmatprep.subr.mxu0 0.0
        %316 = vmatpush1.msra.mxu0 0.0
        %317 = vmatprep.subr.mxu0 0.0
        %318 = vmatpush1.msra.mxu0 0.0
        %319 = vmatprep.subr.mxu0 0.0
        %320 = vmatpush1.msra.mxu0 0.0
        %321 = vmatprep.subr.mxu0 0.0
        %322 = vmatpush1.msra.mxu0 0.0
        %323 = vmatprep.subr.mxu0 0.0
        %324 = vmatpush1.msra.mxu0 0.0
        %325 = vmatprep.subr.mxu0 0.0
        %326 = vmatpush1.msra.mxu0 0.0
        %327 = vmatprep.subr.mxu0 0.0
        %328 = vmatpush1.msra.mxu0 0.0
        %329 = vmatprep.subr.mxu0 0.0
        %330 = vmatpush1.msra.mxu0 0.0
        %331 = vmatprep.subr.mxu0 0.0
        %332 = vmatpush1.msra.mxu0 0.0
        %333 = vmatprep.subr.mxu0 0.0
        %334 = vmatpush1.msra.mxu0 0.0
        %335 = vmatprep.subr.mxu0 0.0
        %336 = vmatpush1.msra.mxu0 0.0
        %337 = vmatprep.subr.mxu0 0.0
        %338 = vmatpush1.msra.mxu0 0.0
        %339 = vmatprep.subr.mxu0 0.0
        %340 = vmatpush1.msra.mxu0 0.0
        %341 = vmatprep.subr.mxu0 0.0
        %342 = vmatpush1.msra.mxu0 0.0
        %343 = vmatprep.subr.mxu0 0.0
        %344 = vmatpush1.msra.mxu0 0.0
        %345 = vmatprep.subr.mxu0 0.0
        %346 = vmatpush1.msra.mxu0 0.0
        %347 = vmatprep.subr.mxu0 0.0
        %348 = vmatpush1.msra.mxu0 0.0
        %349 = vmatprep.subr.mxu0 0.0
        %350 = vmatpush1.msra.mxu0 0.0
        %351 = vmatprep.subr.mxu0 0.0
        %352 = vmatpush1.msra.mxu0 0.0
        %353 = vmatprep.subr.mxu0 0.0
        %354 = vmatpush1.msra.mxu0 0.0
        %355 = vmatprep.subr.mxu0 0.0
        %356 = vmatpush1.msra.mxu0 0.0
        %357 = vmatprep.subr.mxu0 0.0
        %358 = vmatpush1.msra.mxu0 0.0
        %359 = vmatprep.mubr.f32.mxu0 0.0
        %360 = vmatmul.mubr.f32.gmra.mrb[0].mxu0 %v159
        %v361 = vpop.f32.mrb[0].mxu0
        %v362 = vadd.f32 0.0, %v361
        %v363 = vpop.f32.mrb[0].mxu0
        %v364 = vadd.f32 0.0, %v363
        %365 = vmatprep.mubr.f32.mxu0 0.0
        %366 = vmatmul.mubr.f32.gmra.mrb[0].mxu0 %v162
        %v367 = vpop.f32.mrb[0].mxu0
        %v368 = vadd.f32 0.0, %v367
        %v369 = vpop.f32.mrb[0].mxu0
        %v370 = vadd.f32 0.0, %v369
        %371 = vmatprep.mubr.f32.mxu0 0.0
        %372 = vmatmul.mubr.f32.gmra.mrb[0].mxu0 %v165
        %v373 = vpop.f32.mrb[0].mxu0
        %v374 = vadd.f32 0.0, %v373
        %v375 = vpop.f32.mrb[0].mxu0
        %v376 = vadd.f32 0.0, %v375
        %377 = vmatprep.mubr.f32.mxu0 0.0
        %378 = vmatmul.mubr.f32.gmra.mrb[0].mxu0 %v168
        %v379 = vpop.f32.mrb[0].mxu0
        %v380 = vadd.f32 0.0, %v379
        %v381 = vpop.f32.mrb[0].mxu0
        %v382 = vadd.f32 0.0, %v381
        %383 = vmatprep.mubr.f32.mxu0 0.0
        %384 = vmatmul.mubr.f32.gmra.mrb[0].mxu0 %v171
        %v385 = vpop.f32.mrb[0].mxu0
        %v386 = vadd.f32 0.0, %v385
        %v387 = vpop.f32.mrb[0].mxu0
        %v388 = vadd.f32 0.0, %v387
        %389 = vmatprep.mubr.f32.mxu0 0.0
        %390 = vmatmul.mubr.f32.gmra.mrb[0].mxu0 %v174
        %v391 = vpop.f32.mrb[0].mxu0
        %v392 = vadd.f32 0.0, %v391
        %v393 = vpop.f32.mrb[0].mxu0
        %v394 = vadd.f32 0.0, %v393
        %395 = vmatprep.mubr.f32.mxu0 0.0
        %396 = vmatmul.mubr.f32.gmra.mrb[0].mxu0 %v177
        %v397 = vpop.f32.mrb[0].mxu0
        %v398 = vadd.f32 0.0, %v397
        %v399 = vpop.f32.mrb[0].mxu0
        %v400 = vadd.f32 0.0, %v399
        %401 = vmatprep.mubr.f32.mxu0 0.0
        %402 = vmatmul.mubr.f32.gmra.mrb[0].mxu0 %v180
        %v403 = vpop.f32.mrb[0].mxu0
        %v404 = vadd.f32 0.0, %v403
        %v405 = vpop.f32.mrb[0].mxu0
        %v406 = vadd.f32 0.0, %v405
        %407 = vdwg.mxu0
        %v408 = vand.u32 2147483647, %v249
        %vm409 = vcmp.le.f32.partialorder %v408, 0.7853982
        %vm410 = vcmp.lt.s32.totalorder %v249, 0
        %v411 = vand.u32 %v249, 2139095040
        %v412 = vshrl.u32 %v411, 23
        %v413 = vsub.s32 %v412, 127
        %v414 = vand.u32 2147483647, %v249
        %v415 = vand.u32 %v414, 8388607
        %v416 = vor.u32 %v415, 8388608
        %v417 = vsub.s32 0, %v416
        %v418 = vadd.s32 %v413, 1
        %vm419 = vcmp.gt.s32.totalorder %v418, 0
        %v420 = vsel %vm419, %v418, 0
        %v421 = vshrl.u32 %v420, 5
        %v422 = vand.u32 %v420, 31
        %v423 = vsub.s32 32, %v422
        %v424 = vshrl.u32 683565275, %v423
        %v425 = vshll.u32 683565275, %v422
        %v426 = vshrl.u32 2475754826, %v423
        %v427 = vor.u32 %v425, %v426
        %v428 = vshll.u32 2475754826, %v422
        %v429 = vshrl.u32 2131351028, %v423
        %v430 = vor.u32 %v428, %v429
        %v431 = vshll.u32 2131351028, %v422
        %v432 = vshrl.u32 2102212464, %v423
        %v433 = vor.u32 %v431, %v432
        %v434 = vshll.u32 2102212464, %v422
        %v435 = vshrl.u32 920167782, %v423
        %v436 = vor.u32 %v434, %v435
        %v437 = vshll.u32 920167782, %v422
        %v438 = vshrl.u32 1326507024, %v423
        %v439 = vor.u32 %v437, %v438
        %vm440 = vcmp.lt.s32.totalorder %v421, 1
        %vm441 = vcmp.lt.s32.totalorder %v421, 2
        %vm442 = vcmp.lt.s32.totalorder %v421, 3
        %vm443 = vcmp.lt.s32.totalorder %v421, 4
        %v444 = vsel %vm440, %v424, %v427
        %v445 = vsel %vm443, %v433, 2102212464
        %v446 = vsel %vm442, %v430, %v445
        %v447 = vsel %vm441, %v444, %v446
        %v448 = vsel %vm440, %v427, %v430
        %v449 = vsel %vm443, %v436, 920167782
        %v450 = vsel %vm442, %v433, %v449
        %v451 = vsel %vm441, %v448, %v450
        %v452 = vsel %vm440, %v430, %v433
        %v453 = vsel %vm443, %v439, 1326507024
        %v454 = vsel %vm442, %v436, %v453
        %v455 = vsel %vm441, %v452, %v454
        %v456 = vshll.u32 %v416, 8
        %v457 = vmul.u32.u64.compose %v456, %v455
        %v458 = vextract.low.u32 %v457
        %v459 = vextract.high.u32 %v457
        %v460 = vmul.u32.u64.compose %v456, %v451
        %v461 = vextract.low.u32 %v460
        %v462 = vextract.high.u32 %v460
        %v463 = vmul.u32 %v456, %v447
        %v464 = vadd.s32 %v459, %v461
        %vm465 = vc.u32 %v459, %v461
        %v466 = vadd.s32 %v462, 1
        %v467 = vsel %vm465, %v466, %v462
        %v468 = vadd.s32 %v463, %v467
        %v469 = vadd.s32 %v468, 536870912
        %v470 = vshrl.u32 %v469, 30
        %v471 = vshll.u32 %v470, 30
        %v472 = vsub.s32 %v468, %v471
        %vm473 = vcmp.lt.s32.totalorder %v472, 0
        %v474 = vsub.s32 0, %v472
        %v475 = vsel %vm473, %v474, %v472
        %v476 = vclz %v475
        %v477 = vsub.s32 %v476, 2
        %vm478 = vcmp.gt.s32.totalorder 0, %v477
        %v479 = vsel %vm478, 0, %v477
        %v480 = vsub.s32 32, %v479
        %v481 = vshll.u32 %v472, %v479
        %v482 = vshrl.u32 %v464, %v480
        %v483 = vor.u32 %v481, %v482
        %v484 = vsub.s32 4294967266, %v479
        %v485 = vadd.s32 %v484, 127
        %v486 = vshll.u32 %v485, 23
        %v487 = vor.u32 4788187, %v486
        %v488 = vand.u32 2147483647, %v487
        %v490 = vcvt.s32.f32 %v483
        %v491 = vmul.f32 %v490, %v488
        %v492 = vxor.u32 %v491, 2147483648
        %v493 = vsel %vm410, %v492, %v491
        %v494 = vsub.s32 4, %v470
        %v495 = vsel %vm410, %v494, %v470
        %v496 = vsel %vm409, %v249, %v493
        %v497 = vsel %vm409, 0, %v495
        %v498 = vcosq.f32.pop %v496
        %v499 = vsinq.f32.pop %v496
        %vm500 = vweird.f32 %v249
        %v501 = vadd.s32 %v497, 3
        %v502 = vand.u32 %v501, 3
        %vm503 = vcmp.lt.s32.totalorder %v502, 2
        %vm504 = vcmp.eq.s32.totalorder %v502, 0
        %v505 = vxor.u32 %v499, 2147483648
        %v506 = vsel %vm504, %v498, %v505
        %vm507 = vcmp.eq.s32.totalorder %v502, 2
        %v508 = vxor.u32 %v498, 2147483648
        %v509 = vsel %vm507, %v508, %v499
        %v510 = vsel %vm503, %v506, %v509
        %v511 = vsel %vm500, nan, %v510
        %v512 = vand.u32 2147483647, %v251
        %vm513 = vcmp.le.f32.partialorder %v512, 0.7853982
        %vm514 = vcmp.lt.s32.totalorder %v251, 0
        %v515 = vand.u32 %v251, 2139095040
        %v516 = vshrl.u32 %v515, 23
        %v517 = vsub.s32 %v516, 127
        %v518 = vand.u32 2147483647, %v251
        %v519 = vand.u32 %v518, 8388607
        %v520 = vor.u32 %v519, 8388608
        %v521 = vsub.s32 0, %v520
        %v522 = vadd.s32 %v517, 1
        %vm523 = vcmp.gt.s32.totalorder %v522, 0
        %v524 = vsel %vm523, %v522, 0
        %v525 = vshrl.u32 %v524, 5
        %v526 = vand.u32 %v524, 31
        %v527 = vsub.s32 32, %v526
        %v528 = vshrl.u32 683565275, %v527
        %v529 = vshll.u32 683565275, %v526
        %v530 = vshrl.u32 2475754826, %v527
        %v531 = vor.u32 %v529, %v530
        %v532 = vshll.u32 2475754826, %v526
        %v533 = vshrl.u32 2131351028, %v527
        %v534 = vor.u32 %v532, %v533
        %v535 = vshll.u32 2131351028, %v526
        %v536 = vshrl.u32 2102212464, %v527
        %v537 = vor.u32 %v535, %v536
        %v538 = vshll.u32 2102212464, %v526
        %v539 = vshrl.u32 920167782, %v527
        %v540 = vor.u32 %v538, %v539
        %v541 = vshll.u32 920167782, %v526
        %v542 = vshrl.u32 1326507024, %v527
        %v543 = vor.u32 %v541, %v542
        %vm544 = vcmp.lt.s32.totalorder %v525, 1
        %vm545 = vcmp.lt.s32.totalorder %v525, 2
        %vm546 = vcmp.lt.s32.totalorder %v525, 3
        %vm547 = vcmp.lt.s32.totalorder %v525, 4
        %v548 = vsel %vm544, %v528, %v531
        %v549 = vsel %vm547, %v537, 2102212464
        %v550 = vsel %vm546, %v534, %v549
        %v551 = vsel %vm545, %v548, %v550
        %v552 = vsel %vm544, %v531, %v534
        %v553 = vsel %vm547, %v540, 920167782
        %v554 = vsel %vm546, %v537, %v553
        %v555 = vsel %vm545, %v552, %v554
        %v556 = vsel %vm544, %v534, %v537
        %v557 = vsel %vm547, %v543, 1326507024
        %v558 = vsel %vm546, %v540, %v557
        %v559 = vsel %vm545, %v556, %v558
        %v560 = vshll.u32 %v520, 8
        %v561 = vmul.u32.u64.compose %v560, %v559
        %v562 = vextract.low.u32 %v561
        %v563 = vextract.high.u32 %v561
        %v564 = vmul.u32.u64.compose %v560, %v555
        %v565 = vextract.low.u32 %v564
        %v566 = vextract.high.u32 %v564
        %v567 = vmul.u32 %v560, %v551
        %v568 = vadd.s32 %v563, %v565
        %vm569 = vc.u32 %v563, %v565
        %v570 = vadd.s32 %v566, 1
        %v571 = vsel %vm569, %v570, %v566
        %v572 = vadd.s32 %v567, %v571
        %v573 = vadd.s32 %v572, 536870912
        %v574 = vshrl.u32 %v573, 30
        %v575 = vshll.u32 %v574, 30
        %v576 = vsub.s32 %v572, %v575
        %vm577 = vcmp.lt.s32.totalorder %v576, 0
        %v578 = vsub.s32 0, %v576
        %v579 = vsel %vm577, %v578, %v576
        %v580 = vclz %v579
        %v581 = vsub.s32 %v580, 2
        %vm582 = vcmp.gt.s32.totalorder 0, %v581
        %v583 = vsel %vm582, 0, %v581
        %v584 = vsub.s32 32, %v583
        %v585 = vshll.u32 %v576, %v583
        %v586 = vshrl.u32 %v568, %v584
        %v587 = vor.u32 %v585, %v586
        %v588 = vsub.s32 4294967266, %v583
        %v589 = vadd.s32 %v588, 127
        %v590 = vshll.u32 %v589, 23
        %v591 = vor.u32 4788187, %v590
        %v592 = vand.u32 2147483647, %v591
        %v594 = vcvt.s32.f32 %v587
        %v595 = vmul.f32 %v594, %v592
        %v596 = vxor.u32 %v595, 2147483648
        %v597 = vsel %vm514, %v596, %v595
        %v598 = vsub.s32 4, %v574
        %v599 = vsel %vm514, %v598, %v574
        %v600 = vsel %vm513, %v251, %v597
        %v601 = vsel %vm513, 0, %v599
        %v602 = vcosq.f32.pop %v600
        %v603 = vsinq.f32.pop %v600
        %vm604 = vweird.f32 %v251
        %v605 = vadd.s32 %v601, 3
        %v606 = vand.u32 %v605, 3
        %vm607 = vcmp.lt.s32.totalorder %v606, 2
        %vm608 = vcmp.eq.s32.totalorder %v606, 0
        %v609 = vxor.u32 %v603, 2147483648
        %v610 = vsel %vm608, %v602, %v609
        %vm611 = vcmp.eq.s32.totalorder %v606, 2
        %v612 = vxor.u32 %v602, 2147483648
        %v613 = vsel %vm611, %v612, %v603
        %v614 = vsel %vm607, %v610, %v613
        %v615 = vsel %vm604, nan, %v614
        %v616 = vand.u32 2147483647, %v362
        %vm617 = vcmp.le.f32.partialorder %v616, 0.7853982
        %vm618 = vcmp.lt.s32.totalorder %v362, 0
        %v619 = vand.u32 %v362, 2139095040
        %v620 = vshrl.u32 %v619, 23
        %v621 = vsub.s32 %v620, 127
        %v622 = vand.u32 2147483647, %v362
        %v623 = vand.u32 %v622, 8388607
        %v624 = vor.u32 %v623, 8388608
        %v625 = vsub.s32 0, %v624
        %v626 = vadd.s32 %v621, 1
        %vm627 = vcmp.gt.s32.totalorder %v626, 0
        %v628 = vsel %vm627, %v626, 0
        %v629 = vshrl.u32 %v628, 5
        %v630 = vand.u32 %v628, 31
        %v631 = vsub.s32 32, %v630
        %v632 = vshrl.u32 683565275, %v631
        %v633 = vshll.u32 683565275, %v630
        %v634 = vshrl.u32 2475754826, %v631
        %v635 = vor.u32 %v633, %v634
        %v636 = vshll.u32 2475754826, %v630
        %v637 = vshrl.u32 2131351028, %v631
        %v638 = vor.u32 %v636, %v637
        %v639 = vshll.u32 2131351028, %v630
        %v640 = vshrl.u32 2102212464, %v631
        %v641 = vor.u32 %v639, %v640
        %v642 = vshll.u32 2102212464, %v630
        %v643 = vshrl.u32 920167782, %v631
        %v644 = vor.u32 %v642, %v643
        %v645 = vshll.u32 920167782, %v630
        %v646 = vshrl.u32 1326507024, %v631
        %v647 = vor.u32 %v645, %v646
        %vm648 = vcmp.lt.s32.totalorder %v629, 1
        %vm649 = vcmp.lt.s32.totalorder %v629, 2
        %vm650 = vcmp.lt.s32.totalorder %v629, 3
        %vm651 = vcmp.lt.s32.totalorder %v629, 4
        %v652 = vsel %vm648, %v632, %v635
        %v653 = vsel %vm651, %v641, 2102212464
        %v654 = vsel %vm650, %v638, %v653
        %v655 = vsel %vm649, %v652, %v654
        %v656 = vsel %vm648, %v635, %v638
        %v657 = vsel %vm651, %v644, 920167782
        %v658 = vsel %vm650, %v641, %v657
        %v659 = vsel %vm649, %v656, %v658
        %v660 = vsel %vm648, %v638, %v641
        %v661 = vsel %vm651, %v647, 1326507024
        %v662 = vsel %vm650, %v644, %v661
        %v663 = vsel %vm649, %v660, %v662
        %v664 = vshll.u32 %v624, 8
        %v665 = vmul.u32.u64.compose %v664, %v663
        %v666 = vextract.low.u32 %v665
        %v667 = vextract.high.u32 %v665
        %v668 = vmul.u32.u64.compose %v664, %v659
        %v669 = vextract.low.u32 %v668
        %v670 = vextract.high.u32 %v668
        %v671 = vmul.u32 %v664, %v655
        %v672 = vadd.s32 %v667, %v669
        %vm673 = vc.u32 %v667, %v669
        %v674 = vadd.s32 %v670, 1
        %v675 = vsel %vm673, %v674, %v670
        %v676 = vadd.s32 %v671, %v675
        %v677 = vadd.s32 %v676, 536870912
        %v678 = vshrl.u32 %v677, 30
        %v679 = vshll.u32 %v678, 30
        %v680 = vsub.s32 %v676, %v679
        %vm681 = vcmp.lt.s32.totalorder %v680, 0
        %v682 = vsub.s32 0, %v680
        %v683 = vsel %vm681, %v682, %v680
        %v684 = vclz %v683
        %v685 = vsub.s32 %v684, 2
        %vm686 = vcmp.gt.s32.totalorder 0, %v685
        %v687 = vsel %vm686, 0, %v685
        %v688 = vsub.s32 32, %v687
        %v689 = vshll.u32 %v680, %v687
        %v690 = vshrl.u32 %v672, %v688
        %v691 = vor.u32 %v689, %v690
        %v692 = vsub.s32 4294967266, %v687
        %v693 = vadd.s32 %v692, 127
        %v694 = vshll.u32 %v693, 23
        %v695 = vor.u32 4788187, %v694
        %v696 = vand.u32 2147483647, %v695
        %v698 = vcvt.s32.f32 %v691
        %v699 = vmul.f32 %v698, %v696
        %v700 = vxor.u32 %v699, 2147483648
        %v701 = vsel %vm618, %v700, %v699
        %v702 = vsub.s32 4, %v678
        %v703 = vsel %vm618, %v702, %v678
        %v704 = vsel %vm617, %v362, %v701
        %v705 = vsel %vm617, 0, %v703
        %v706 = vcosq.f32.pop %v704
        %v707 = vsinq.f32.pop %v704
        %vm708 = vweird.f32 %v362
        %v709 = vadd.s32 %v705, 3
        %v710 = vand.u32 %v709, 3
        %vm711 = vcmp.lt.s32.totalorder %v710, 2
        %vm712 = vcmp.eq.s32.totalorder %v710, 0
        %v713 = vxor.u32 %v707, 2147483648
        %v714 = vsel %vm712, %v706, %v713
        %vm715 = vcmp.eq.s32.totalorder %v710, 2
        %v716 = vxor.u32 %v706, 2147483648
        %v717 = vsel %vm715, %v716, %v707
        %v718 = vsel %vm711, %v714, %v717
        %v719 = vsel %vm708, nan, %v718
        %v720 = vand.u32 2147483647, %v364
        %vm721 = vcmp.le.f32.partialorder %v720, 0.7853982
        %vm722 = vcmp.lt.s32.totalorder %v364, 0
        %v723 = vand.u32 %v364, 2139095040
        %v724 = vshrl.u32 %v723, 23
        %v725 = vsub.s32 %v724, 127
        %v726 = vand.u32 2147483647, %v364
        %v727 = vand.u32 %v726, 8388607
        %v728 = vor.u32 %v727, 8388608
        %v729 = vsub.s32 0, %v728
        %v730 = vadd.s32 %v725, 1
        %vm731 = vcmp.gt.s32.totalorder %v730, 0
        %v732 = vsel %vm731, %v730, 0
        %v733 = vshrl.u32 %v732, 5
        %v734 = vand.u32 %v732, 31
        %v735 = vsub.s32 32, %v734
        %v736 = vshrl.u32 683565275, %v735
        %v737 = vshll.u32 683565275, %v734
        %v738 = vshrl.u32 2475754826, %v735
        %v739 = vor.u32 %v737, %v738
        %v740 = vshll.u32 2475754826, %v734
        %v741 = vshrl.u32 2131351028, %v735
        %v742 = vor.u32 %v740, %v741
        %v743 = vshll.u32 2131351028, %v734
        %v744 = vshrl.u32 2102212464, %v735
        %v745 = vor.u32 %v743, %v744
        %v746 = vshll.u32 2102212464, %v734
        %v747 = vshrl.u32 920167782, %v735
        %v748 = vor.u32 %v746, %v747
        %v749 = vshll.u32 920167782, %v734
        %v750 = vshrl.u32 1326507024, %v735
        %v751 = vor.u32 %v749, %v750
        %vm752 = vcmp.lt.s32.totalorder %v733, 1
        %vm753 = vcmp.lt.s32.totalorder %v733, 2
        %vm754 = vcmp.lt.s32.totalorder %v733, 3
        %vm755 = vcmp.lt.s32.totalorder %v733, 4
        %v756 = vsel %vm752, %v736, %v739
        %v757 = vsel %vm755, %v745, 2102212464
        %v758 = vsel %vm754, %v742, %v757
        %v759 = vsel %vm753, %v756, %v758
        %v760 = vsel %vm752, %v739, %v742
        %v761 = vsel %vm755, %v748, 920167782
        %v762 = vsel %vm754, %v745, %v761
        %v763 = vsel %vm753, %v760, %v762
        %v764 = vsel %vm752, %v742, %v745
        %v765 = vsel %vm755, %v751, 1326507024
        %v766 = vsel %vm754, %v748, %v765
        %v767 = vsel %vm753, %v764, %v766
        %v768 = vshll.u32 %v728, 8
        %v769 = vmul.u32.u64.compose %v768, %v767
        %v770 = vextract.low.u32 %v769
        %v771 = vextract.high.u32 %v769
        %v772 = vmul.u32.u64.compose %v768, %v763
        %v773 = vextract.low.u32 %v772
        %v774 = vextract.high.u32 %v772
        %v775 = vmul.u32 %v768, %v759
        %v776 = vadd.s32 %v771, %v773
        %vm777 = vc.u32 %v771, %v773
        %v778 = vadd.s32 %v774, 1
        %v779 = vsel %vm777, %v778, %v774
        %v780 = vadd.s32 %v775, %v779
        %v781 = vadd.s32 %v780, 536870912
        %v782 = vshrl.u32 %v781, 30
        %v783 = vshll.u32 %v782, 30
        %v784 = vsub.s32 %v780, %v783
        %vm785 = vcmp.lt.s32.totalorder %v784, 0
        %v786 = vsub.s32 0, %v784
        %v787 = vsel %vm785, %v786, %v784
        %v788 = vclz %v787
        %v789 = vsub.s32 %v788, 2
        %vm790 = vcmp.gt.s32.totalorder 0, %v789
        %v791 = vsel %vm790, 0, %v789
        %v792 = vsub.s32 32, %v791
        %v793 = vshll.u32 %v784, %v791
        %v794 = vshrl.u32 %v776, %v792
        %v795 = vor.u32 %v793, %v794
        %v796 = vsub.s32 4294967266, %v791
        %v797 = vadd.s32 %v796, 127
        %v798 = vshll.u32 %v797, 23
        %v799 = vor.u32 4788187, %v798
        %v800 = vand.u32 2147483647, %v799
        %v802 = vcvt.s32.f32 %v795
        %v803 = vmul.f32 %v802, %v800
        %v804 = vxor.u32 %v803, 2147483648
        %v805 = vsel %vm722, %v804, %v803
        %v806 = vsub.s32 4, %v782
        %v807 = vsel %vm722, %v806, %v782
        %v808 = vsel %vm721, %v364, %v805
        %v809 = vsel %vm721, 0, %v807
        %v810 = vcosq.f32.pop %v808
        %v811 = vsinq.f32.pop %v808
        %vm812 = vweird.f32 %v364
        %v813 = vadd.s32 %v809, 3
        %v814 = vand.u32 %v813, 3
        %vm815 = vcmp.lt.s32.totalorder %v814, 2
        %vm816 = vcmp.eq.s32.totalorder %v814, 0
        %v817 = vxor.u32 %v811, 2147483648
        %v818 = vsel %vm816, %v810, %v817
        %vm819 = vcmp.eq.s32.totalorder %v814, 2
        %v820 = vxor.u32 %v810, 2147483648
        %v821 = vsel %vm819, %v820, %v811
        %v822 = vsel %vm815, %v818, %v821
        %v823 = vsel %vm812, nan, %v822
        %v824 = vand.u32 2147483647, %v255
        %vm825 = vcmp.le.f32.partialorder %v824, 0.7853982
        %vm826 = vcmp.lt.s32.totalorder %v255, 0
        %v827 = vand.u32 %v255, 2139095040
        %v828 = vshrl.u32 %v827, 23
        %v829 = vsub.s32 %v828, 127
        %v830 = vand.u32 2147483647, %v255
        %v831 = vand.u32 %v830, 8388607
        %v832 = vor.u32 %v831, 8388608
        %v833 = vsub.s32 0, %v832
        %v834 = vadd.s32 %v829, 1
        %vm835 = vcmp.gt.s32.totalorder %v834, 0
        %v836 = vsel %vm835, %v834, 0
        %v837 = vshrl.u32 %v836, 5
        %v838 = vand.u32 %v836, 31
        %v839 = vsub.s32 32, %v838
        %v840 = vshrl.u32 683565275, %v839
        %v841 = vshll.u32 683565275, %v838
        %v842 = vshrl.u32 2475754826, %v839
        %v843 = vor.u32 %v841, %v842
        %v844 = vshll.u32 2475754826, %v838
        %v845 = vshrl.u32 2131351028, %v839
        %v846 = vor.u32 %v844, %v845
        %v847 = vshll.u32 2131351028, %v838
        %v848 = vshrl.u32 2102212464, %v839
        %v849 = vor.u32 %v847, %v848
        %v850 = vshll.u32 2102212464, %v838
        %v851 = vshrl.u32 920167782, %v839
        %v852 = vor.u32 %v850, %v851
        %v853 = vshll.u32 920167782, %v838
        %v854 = vshrl.u32 1326507024, %v839
        %v855 = vor.u32 %v853, %v854
        %vm856 = vcmp.lt.s32.totalorder %v837, 1
        %vm857 = vcmp.lt.s32.totalorder %v837, 2
        %vm858 = vcmp.lt.s32.totalorder %v837, 3
        %vm859 = vcmp.lt.s32.totalorder %v837, 4
        %v860 = vsel %vm856, %v840, %v843
        %v861 = vsel %vm859, %v849, 2102212464
        %v862 = vsel %vm858, %v846, %v861
        %v863 = vsel %vm857, %v860, %v862
        %v864 = vsel %vm856, %v843, %v846
        %v865 = vsel %vm859, %v852, 920167782
        %v866 = vsel %vm858, %v849, %v865
        %v867 = vsel %vm857, %v864, %v866
        %v868 = vsel %vm856, %v846, %v849
        %v869 = vsel %vm859, %v855, 1326507024
        %v870 = vsel %vm858, %v852, %v869
        %v871 = vsel %vm857, %v868, %v870
        %v872 = vshll.u32 %v832, 8
        %v873 = vmul.u32.u64.compose %v872, %v871
        %v874 = vextract.low.u32 %v873
        %v875 = vextract.high.u32 %v873
        %v876 = vmul.u32.u64.compose %v872, %v867
        %v877 = vextract.low.u32 %v876
        %v878 = vextract.high.u32 %v876
        %v879 = vmul.u32 %v872, %v863
        %v880 = vadd.s32 %v875, %v877
        %vm881 = vc.u32 %v875, %v877
        %v882 = vadd.s32 %v878, 1
        %v883 = vsel %vm881, %v882, %v878
        %v884 = vadd.s32 %v879, %v883
        %v885 = vadd.s32 %v884, 536870912
        %v886 = vshrl.u32 %v885, 30
        %v887 = vshll.u32 %v886, 30
        %v888 = vsub.s32 %v884, %v887
        %vm889 = vcmp.lt.s32.totalorder %v888, 0
        %v890 = vsub.s32 0, %v888
        %v891 = vsel %vm889, %v890, %v888
        %v892 = vclz %v891
        %v893 = vsub.s32 %v892, 2
        %vm894 = vcmp.gt.s32.totalorder 0, %v893
        %v895 = vsel %vm894, 0, %v893
        %v896 = vsub.s32 32, %v895
        %v897 = vshll.u32 %v888, %v895
        %v898 = vshrl.u32 %v880, %v896
        %v899 = vor.u32 %v897, %v898
        %v900 = vsub.s32 4294967266, %v895
        %v901 = vadd.s32 %v900, 127
        %v902 = vshll.u32 %v901, 23
        %v903 = vor.u32 4788187, %v902
        %v904 = vand.u32 2147483647, %v903
        %v906 = vcvt.s32.f32 %v899
        %v907 = vmul.f32 %v906, %v904
        %v908 = vxor.u32 %v907, 2147483648
        %v909 = vsel %vm826, %v908, %v907
        %v910 = vsub.s32 4, %v886
        %v911 = vsel %vm826, %v910, %v886
        %v912 = vsel %vm825, %v255, %v909
        %v913 = vsel %vm825, 0, %v911
        %v914 = vcosq.f32.pop %v912
        %v915 = vsinq.f32.pop %v912
        %vm916 = vweird.f32 %v255
        %v917 = vadd.s32 %v913, 3
        %v918 = vand.u32 %v917, 3
        %vm919 = vcmp.lt.s32.totalorder %v918, 2
        %vm920 = vcmp.eq.s32.totalorder %v918, 0
        %v921 = vxor.u32 %v915, 2147483648
        %v922 = vsel %vm920, %v914, %v921
        %vm923 = vcmp.eq.s32.totalorder %v918, 2
        %v924 = vxor.u32 %v914, 2147483648
        %v925 = vsel %vm923, %v924, %v915
        %v926 = vsel %vm919, %v922, %v925
        %v927 = vsel %vm916, nan, %v926
        %v928 = vand.u32 2147483647, %v257
        %vm929 = vcmp.le.f32.partialorder %v928, 0.7853982
        %vm930 = vcmp.lt.s32.totalorder %v257, 0
        %v931 = vand.u32 %v257, 2139095040
        %v932 = vshrl.u32 %v931, 23
        %v933 = vsub.s32 %v932, 127
        %v934 = vand.u32 2147483647, %v257
        %v935 = vand.u32 %v934, 8388607
        %v936 = vor.u32 %v935, 8388608
        %v937 = vsub.s32 0, %v936
        %v938 = vadd.s32 %v933, 1
        %vm939 = vcmp.gt.s32.totalorder %v938, 0
        %v940 = vsel %vm939, %v938, 0
        %v941 = vshrl.u32 %v940, 5
        %v942 = vand.u32 %v940, 31
        %v943 = vsub.s32 32, %v942
        %v944 = vshrl.u32 683565275, %v943
        %v945 = vshll.u32 683565275, %v942
        %v946 = vshrl.u32 2475754826, %v943
        %v947 = vor.u32 %v945, %v946
        %v948 = vshll.u32 2475754826, %v942
        %v949 = vshrl.u32 2131351028, %v943
        %v950 = vor.u32 %v948, %v949
        %v951 = vshll.u32 2131351028, %v942
        %v952 = vshrl.u32 2102212464, %v943
        %v953 = vor.u32 %v951, %v952
        %v954 = vshll.u32 2102212464, %v942
        %v955 = vshrl.u32 920167782, %v943
        %v956 = vor.u32 %v954, %v955
        %v957 = vshll.u32 920167782, %v942
        %v958 = vshrl.u32 1326507024, %v943
        %v959 = vor.u32 %v957, %v958
        %vm960 = vcmp.lt.s32.totalorder %v941, 1
        %vm961 = vcmp.lt.s32.totalorder %v941, 2
        %vm962 = vcmp.lt.s32.totalorder %v941, 3
        %vm963 = vcmp.lt.s32.totalorder %v941, 4
        %v964 = vsel %vm960, %v944, %v947
        %v965 = vsel %vm963, %v953, 2102212464
        %v966 = vsel %vm962, %v950, %v965
        %v967 = vsel %vm961, %v964, %v966
        %v968 = vsel %vm960, %v947, %v950
        %v969 = vsel %vm963, %v956, 920167782
        %v970 = vsel %vm962, %v953, %v969
        %v971 = vsel %vm961, %v968, %v970
        %v972 = vsel %vm960, %v950, %v953
        %v973 = vsel %vm963, %v959, 1326507024
        %v974 = vsel %vm962, %v956, %v973
        %v975 = vsel %vm961, %v972, %v974
        %v976 = vshll.u32 %v936, 8
        %v977 = vmul.u32.u64.compose %v976, %v975
        %v978 = vextract.low.u32 %v977
        %v979 = vextract.high.u32 %v977
        %v980 = vmul.u32.u64.compose %v976, %v971
        %v981 = vextract.low.u32 %v980
        %v982 = vextract.high.u32 %v980
        %v983 = vmul.u32 %v976, %v967
        %v984 = vadd.s32 %v979, %v981
        %vm985 = vc.u32 %v979, %v981
        %v986 = vadd.s32 %v982, 1
        %v987 = vsel %vm985, %v986, %v982
        %v988 = vadd.s32 %v983, %v987
        %v989 = vadd.s32 %v988, 536870912
        %v990 = vshrl.u32 %v989, 30
        %v991 = vshll.u32 %v990, 30
        %v992 = vsub.s32 %v988, %v991
        %vm993 = vcmp.lt.s32.totalorder %v992, 0
        %v994 = vsub.s32 0, %v992
        %v995 = vsel %vm993, %v994, %v992
        %v996 = vclz %v995
        %v997 = vsub.s32 %v996, 2
        %vm998 = vcmp.gt.s32.totalorder 0, %v997
        %v999 = vsel %vm998, 0, %v997
        %v1000 = vsub.s32 32, %v999
        %v1001 = vshll.u32 %v992, %v999
        %v1002 = vshrl.u32 %v984, %v1000
        %v1003 = vor.u32 %v1001, %v1002
        %v1004 = vsub.s32 4294967266, %v999
        %v1005 = vadd.s32 %v1004, 127
        %v1006 = vshll.u32 %v1005, 23
        %v1007 = vor.u32 4788187, %v1006
        %v1008 = vand.u32 2147483647, %v1007
        %v1010 = vcvt.s32.f32 %v1003
        %v1011 = vmul.f32 %v1010, %v1008
        %v1012 = vxor.u32 %v1011, 2147483648
        %v1013 = vsel %vm930, %v1012, %v1011
        %v1014 = vsub.s32 4, %v990
        %v1015 = vsel %vm930, %v1014, %v990
        %v1016 = vsel %vm929, %v257, %v1013
        %v1017 = vsel %vm929, 0, %v1015
        %v1018 = vcosq.f32.pop %v1016
        %v1019 = vsinq.f32.pop %v1016
        %vm1020 = vweird.f32 %v257
        %v1021 = vadd.s32 %v1017, 3
        %v1022 = vand.u32 %v1021, 3
        %vm1023 = vcmp.lt.s32.totalorder %v1022, 2
        %vm1024 = vcmp.eq.s32.totalorder %v1022, 0
        %v1025 = vxor.u32 %v1019, 2147483648
        %v1026 = vsel %vm1024, %v1018, %v1025
        %vm1027 = vcmp.eq.s32.totalorder %v1022, 2
        %v1028 = vxor.u32 %v1018, 2147483648
        %v1029 = vsel %vm1027, %v1028, %v1019
        %v1030 = vsel %vm1023, %v1026, %v1029
        %v1031 = vsel %vm1020, nan, %v1030
        %v1032 = vand.u32 2147483647, %v368
        %vm1033 = vcmp.le.f32.partialorder %v1032, 0.7853982
        %vm1034 = vcmp.lt.s32.totalorder %v368, 0
        %v1035 = vand.u32 %v368, 2139095040
        %v1036 = vshrl.u32 %v1035, 23
        %v1037 = vsub.s32 %v1036, 127
        %v1038 = vand.u32 2147483647, %v368
        %v1039 = vand.u32 %v1038, 8388607
        %v1040 = vor.u32 %v1039, 8388608
        %v1041 = vsub.s32 0, %v1040
        %v1042 = vadd.s32 %v1037, 1
        %vm1043 = vcmp.gt.s32.totalorder %v1042, 0
        %v1044 = vsel %vm1043, %v1042, 0
        %v1045 = vshrl.u32 %v1044, 5
        %v1046 = vand.u32 %v1044, 31
        %v1047 = vsub.s32 32, %v1046
        %v1048 = vshrl.u32 683565275, %v1047
        %v1049 = vshll.u32 683565275, %v1046
        %v1050 = vshrl.u32 2475754826, %v1047
        %v1051 = vor.u32 %v1049, %v1050
        %v1052 = vshll.u32 2475754826, %v1046
        %v1053 = vshrl.u32 2131351028, %v1047
        %v1054 = vor.u32 %v1052, %v1053
        %v1055 = vshll.u32 2131351028, %v1046
        %v1056 = vshrl.u32 2102212464, %v1047
        %v1057 = vor.u32 %v1055, %v1056
        %v1058 = vshll.u32 2102212464, %v1046
        %v1059 = vshrl.u32 920167782, %v1047
        %v1060 = vor.u32 %v1058, %v1059
        %v1061 = vshll.u32 920167782, %v1046
        %v1062 = vshrl.u32 1326507024, %v1047
        %v1063 = vor.u32 %v1061, %v1062
        %vm1064 = vcmp.lt.s32.totalorder %v1045, 1
        %vm1065 = vcmp.lt.s32.totalorder %v1045, 2
        %vm1066 = vcmp.lt.s32.totalorder %v1045, 3
        %vm1067 = vcmp.lt.s32.totalorder %v1045, 4
        %v1068 = vsel %vm1064, %v1048, %v1051
        %v1069 = vsel %vm1067, %v1057, 2102212464
        %v1070 = vsel %vm1066, %v1054, %v1069
        %v1071 = vsel %vm1065, %v1068, %v1070
        %v1072 = vsel %vm1064, %v1051, %v1054
        %v1073 = vsel %vm1067, %v1060, 920167782
        %v1074 = vsel %vm1066, %v1057, %v1073
        %v1075 = vsel %vm1065, %v1072, %v1074
        %v1076 = vsel %vm1064, %v1054, %v1057
        %v1077 = vsel %vm1067, %v1063, 1326507024
        %v1078 = vsel %vm1066, %v1060, %v1077
        %v1079 = vsel %vm1065, %v1076, %v1078
        %v1080 = vshll.u32 %v1040, 8
        %v1081 = vmul.u32.u64.compose %v1080, %v1079
        %v1082 = vextract.low.u32 %v1081
        %v1083 = vextract.high.u32 %v1081
        %v1084 = vmul.u32.u64.compose %v1080, %v1075
        %v1085 = vextract.low.u32 %v1084
        %v1086 = vextract.high.u32 %v1084
        %v1087 = vmul.u32 %v1080, %v1071
        %v1088 = vadd.s32 %v1083, %v1085
        %vm1089 = vc.u32 %v1083, %v1085
        %v1090 = vadd.s32 %v1086, 1
        %v1091 = vsel %vm1089, %v1090, %v1086
        %v1092 = vadd.s32 %v1087, %v1091
        %v1093 = vadd.s32 %v1092, 536870912
        %v1094 = vshrl.u32 %v1093, 30
        %v1095 = vshll.u32 %v1094, 30
        %v1096 = vsub.s32 %v1092, %v1095
        %vm1097 = vcmp.lt.s32.totalorder %v1096, 0
        %v1098 = vsub.s32 0, %v1096
        %v1099 = vsel %vm1097, %v1098, %v1096
        %v1100 = vclz %v1099
        %v1101 = vsub.s32 %v1100, 2
        %vm1102 = vcmp.gt.s32.totalorder 0, %v1101
        %v1103 = vsel %vm1102, 0, %v1101
        %v1104 = vsub.s32 32, %v1103
        %v1105 = vshll.u32 %v1096, %v1103
        %v1106 = vshrl.u32 %v1088, %v1104
        %v1107 = vor.u32 %v1105, %v1106
        %v1108 = vsub.s32 4294967266, %v1103
        %v1109 = vadd.s32 %v1108, 127
        %v1110 = vshll.u32 %v1109, 23
        %v1111 = vor.u32 4788187, %v1110
        %v1112 = vand.u32 2147483647, %v1111
        %v1114 = vcvt.s32.f32 %v1107
        %v1115 = vmul.f32 %v1114, %v1112
        %v1116 = vxor.u32 %v1115, 2147483648
        %v1117 = vsel %vm1034, %v1116, %v1115
        %v1118 = vsub.s32 4, %v1094
        %v1119 = vsel %vm1034, %v1118, %v1094
        %v1120 = vsel %vm1033, %v368, %v1117
        %v1121 = vsel %vm1033, 0, %v1119
        %v1122 = vcosq.f32.pop %v1120
        %v1123 = vsinq.f32.pop %v1120
        %vm1124 = vweird.f32 %v368
        %v1125 = vadd.s32 %v1121, 3
        %v1126 = vand.u32 %v1125, 3
        %vm1127 = vcmp.lt.s32.totalorder %v1126, 2
        %vm1128 = vcmp.eq.s32.totalorder %v1126, 0
        %v1129 = vxor.u32 %v1123, 2147483648
        %v1130 = vsel %vm1128, %v1122, %v1129
        %vm1131 = vcmp.eq.s32.totalorder %v1126, 2
        %v1132 = vxor.u32 %v1122, 2147483648
        %v1133 = vsel %vm1131, %v1132, %v1123
        %v1134 = vsel %vm1127, %v1130, %v1133
        %v1135 = vsel %vm1124, nan, %v1134
        %v1136 = vand.u32 2147483647, %v370
        %vm1137 = vcmp.le.f32.partialorder %v1136, 0.7853982
        %vm1138 = vcmp.lt.s32.totalorder %v370, 0
        %v1139 = vand.u32 %v370, 2139095040
        %v1140 = vshrl.u32 %v1139, 23
        %v1141 = vsub.s32 %v1140, 127
        %v1142 = vand.u32 2147483647, %v370
        %v1143 = vand.u32 %v1142, 8388607
        %v1144 = vor.u32 %v1143, 8388608
        %v1145 = vsub.s32 0, %v1144
        %v1146 = vadd.s32 %v1141, 1
        %vm1147 = vcmp.gt.s32.totalorder %v1146, 0
        %v1148 = vsel %vm1147, %v1146, 0
        %v1149 = vshrl.u32 %v1148, 5
        %v1150 = vand.u32 %v1148, 31
        %v1151 = vsub.s32 32, %v1150
        %v1152 = vshrl.u32 683565275, %v1151
        %v1153 = vshll.u32 683565275, %v1150
        %v1154 = vshrl.u32 2475754826, %v1151
        %v1155 = vor.u32 %v1153, %v1154
        %v1156 = vshll.u32 2475754826, %v1150
        %v1157 = vshrl.u32 2131351028, %v1151
        %v1158 = vor.u32 %v1156, %v1157
        %v1159 = vshll.u32 2131351028, %v1150
        %v1160 = vshrl.u32 2102212464, %v1151
        %v1161 = vor.u32 %v1159, %v1160
        %v1162 = vshll.u32 2102212464, %v1150
        %v1163 = vshrl.u32 920167782, %v1151
        %v1164 = vor.u32 %v1162, %v1163
        %v1165 = vshll.u32 920167782, %v1150
        %v1166 = vshrl.u32 1326507024, %v1151
        %v1167 = vor.u32 %v1165, %v1166
        %vm1168 = vcmp.lt.s32.totalorder %v1149, 1
        %vm1169 = vcmp.lt.s32.totalorder %v1149, 2
        %vm1170 = vcmp.lt.s32.totalorder %v1149, 3
        %vm1171 = vcmp.lt.s32.totalorder %v1149, 4
        %v1172 = vsel %vm1168, %v1152, %v1155
        %v1173 = vsel %vm1171, %v1161, 2102212464
        %v1174 = vsel %vm1170, %v1158, %v1173
        %v1175 = vsel %vm1169, %v1172, %v1174
        %v1176 = vsel %vm1168, %v1155, %v1158
        %v1177 = vsel %vm1171, %v1164, 920167782
        %v1178 = vsel %vm1170, %v1161, %v1177
        %v1179 = vsel %vm1169, %v1176, %v1178
        %v1180 = vsel %vm1168, %v1158, %v1161
        %v1181 = vsel %vm1171, %v1167, 1326507024
        %v1182 = vsel %vm1170, %v1164, %v1181
        %v1183 = vsel %vm1169, %v1180, %v1182
        %v1184 = vshll.u32 %v1144, 8
        %v1185 = vmul.u32.u64.compose %v1184, %v1183
        %v1186 = vextract.low.u32 %v1185
        %v1187 = vextract.high.u32 %v1185
        %v1188 = vmul.u32.u64.compose %v1184, %v1179
        %v1189 = vextract.low.u32 %v1188
        %v1190 = vextract.high.u32 %v1188
        %v1191 = vmul.u32 %v1184, %v1175
        %v1192 = vadd.s32 %v1187, %v1189
        %vm1193 = vc.u32 %v1187, %v1189
        %v1194 = vadd.s32 %v1190, 1
        %v1195 = vsel %vm1193, %v1194, %v1190
        %v1196 = vadd.s32 %v1191, %v1195
        %v1197 = vadd.s32 %v1196, 536870912
        %v1198 = vshrl.u32 %v1197, 30
        %v1199 = vshll.u32 %v1198, 30
        %v1200 = vsub.s32 %v1196, %v1199
        %vm1201 = vcmp.lt.s32.totalorder %v1200, 0
        %v1202 = vsub.s32 0, %v1200
        %v1203 = vsel %vm1201, %v1202, %v1200
        %v1204 = vclz %v1203
        %v1205 = vsub.s32 %v1204, 2
        %vm1206 = vcmp.gt.s32.totalorder 0, %v1205
        %v1207 = vsel %vm1206, 0, %v1205
        %v1208 = vsub.s32 32, %v1207
        %v1209 = vshll.u32 %v1200, %v1207
        %v1210 = vshrl.u32 %v1192, %v1208
        %v1211 = vor.u32 %v1209, %v1210
        %v1212 = vsub.s32 4294967266, %v1207
        %v1213 = vadd.s32 %v1212, 127
        %v1214 = vshll.u32 %v1213, 23
        %v1215 = vor.u32 4788187, %v1214
        %v1216 = vand.u32 2147483647, %v1215
        %v1218 = vcvt.s32.f32 %v1211
        %v1219 = vmul.f32 %v1218, %v1216
        %v1220 = vxor.u32 %v1219, 2147483648
        %v1221 = vsel %vm1138, %v1220, %v1219
        %v1222 = vsub.s32 4, %v1198
        %v1223 = vsel %vm1138, %v1222, %v1198
        %v1224 = vsel %vm1137, %v370, %v1221
        %v1225 = vsel %vm1137, 0, %v1223
        %v1226 = vcosq.f32.pop %v1224
        %v1227 = vsinq.f32.pop %v1224
        %vm1228 = vweird.f32 %v370
        %v1229 = vadd.s32 %v1225, 3
        %v1230 = vand.u32 %v1229, 3
        %vm1231 = vcmp.lt.s32.totalorder %v1230, 2
        %vm1232 = vcmp.eq.s32.totalorder %v1230, 0
        %v1233 = vxor.u32 %v1227, 2147483648
        %v1234 = vsel %vm1232, %v1226, %v1233
        %vm1235 = vcmp.eq.s32.totalorder %v1230, 2
        %v1236 = vxor.u32 %v1226, 2147483648
        %v1237 = vsel %vm1235, %v1236, %v1227
        %v1238 = vsel %vm1231, %v1234, %v1237
        %v1239 = vsel %vm1228, nan, %v1238
        %v1240 = vand.u32 2147483647, %v261
        %vm1241 = vcmp.le.f32.partialorder %v1240, 0.7853982
        %vm1242 = vcmp.lt.s32.totalorder %v261, 0
        %v1243 = vand.u32 %v261, 2139095040
        %v1244 = vshrl.u32 %v1243, 23
        %v1245 = vsub.s32 %v1244, 127
        %v1246 = vand.u32 2147483647, %v261
        %v1247 = vand.u32 %v1246, 8388607
        %v1248 = vor.u32 %v1247, 8388608
        %v1249 = vsub.s32 0, %v1248
        %v1250 = vadd.s32 %v1245, 1
        %vm1251 = vcmp.gt.s32.totalorder %v1250, 0
        %v1252 = vsel %vm1251, %v1250, 0
        %v1253 = vshrl.u32 %v1252, 5
        %v1254 = vand.u32 %v1252, 31
        %v1255 = vsub.s32 32, %v1254
        %v1256 = vshrl.u32 683565275, %v1255
        %v1257 = vshll.u32 683565275, %v1254
        %v1258 = vshrl.u32 2475754826, %v1255
        %v1259 = vor.u32 %v1257, %v1258
        %v1260 = vshll.u32 2475754826, %v1254
        %v1261 = vshrl.u32 2131351028, %v1255
        %v1262 = vor.u32 %v1260, %v1261
        %v1263 = vshll.u32 2131351028, %v1254
        %v1264 = vshrl.u32 2102212464, %v1255
        %v1265 = vor.u32 %v1263, %v1264
        %v1266 = vshll.u32 2102212464, %v1254
        %v1267 = vshrl.u32 920167782, %v1255
        %v1268 = vor.u32 %v1266, %v1267
        %v1269 = vshll.u32 920167782, %v1254
        %v1270 = vshrl.u32 1326507024, %v1255
        %v1271 = vor.u32 %v1269, %v1270
        %vm1272 = vcmp.lt.s32.totalorder %v1253, 1
        %vm1273 = vcmp.lt.s32.totalorder %v1253, 2
        %vm1274 = vcmp.lt.s32.totalorder %v1253, 3
        %vm1275 = vcmp.lt.s32.totalorder %v1253, 4
        %v1276 = vsel %vm1272, %v1256, %v1259
        %v1277 = vsel %vm1275, %v1265, 2102212464
        %v1278 = vsel %vm1274, %v1262, %v1277
        %v1279 = vsel %vm1273, %v1276, %v1278
        %v1280 = vsel %vm1272, %v1259, %v1262
        %v1281 = vsel %vm1275, %v1268, 920167782
        %v1282 = vsel %vm1274, %v1265, %v1281
        %v1283 = vsel %vm1273, %v1280, %v1282
        %v1284 = vsel %vm1272, %v1262, %v1265
        %v1285 = vsel %vm1275, %v1271, 1326507024
        %v1286 = vsel %vm1274, %v1268, %v1285
        %v1287 = vsel %vm1273, %v1284, %v1286
        %v1288 = vshll.u32 %v1248, 8
        %v1289 = vmul.u32.u64.compose %v1288, %v1287
        %v1290 = vextract.low.u32 %v1289
        %v1291 = vextract.high.u32 %v1289
        %v1292 = vmul.u32.u64.compose %v1288, %v1283
        %v1293 = vextract.low.u32 %v1292
        %v1294 = vextract.high.u32 %v1292
        %v1295 = vmul.u32 %v1288, %v1279
        %v1296 = vadd.s32 %v1291, %v1293
        %vm1297 = vc.u32 %v1291, %v1293
        %v1298 = vadd.s32 %v1294, 1
        %v1299 = vsel %vm1297, %v1298, %v1294
        %v1300 = vadd.s32 %v1295, %v1299
        %v1301 = vadd.s32 %v1300, 536870912
        %v1302 = vshrl.u32 %v1301, 30
        %v1303 = vshll.u32 %v1302, 30
        %v1304 = vsub.s32 %v1300, %v1303
        %vm1305 = vcmp.lt.s32.totalorder %v1304, 0
        %v1306 = vsub.s32 0, %v1304
        %v1307 = vsel %vm1305, %v1306, %v1304
        %v1308 = vclz %v1307
        %v1309 = vsub.s32 %v1308, 2
        %vm1310 = vcmp.gt.s32.totalorder 0, %v1309
        %v1311 = vsel %vm1310, 0, %v1309
        %v1312 = vsub.s32 32, %v1311
        %v1313 = vshll.u32 %v1304, %v1311
        %v1314 = vshrl.u32 %v1296, %v1312
        %v1315 = vor.u32 %v1313, %v1314
        %v1316 = vsub.s32 4294967266, %v1311
        %v1317 = vadd.s32 %v1316, 127
        %v1318 = vshll.u32 %v1317, 23
        %v1319 = vor.u32 4788187, %v1318
        %v1320 = vand.u32 2147483647, %v1319
        %v1322 = vcvt.s32.f32 %v1315
        %v1323 = vmul.f32 %v1322, %v1320
        %v1324 = vxor.u32 %v1323, 2147483648
        %v1325 = vsel %vm1242, %v1324, %v1323
        %v1326 = vsub.s32 4, %v1302
        %v1327 = vsel %vm1242, %v1326, %v1302
        %v1328 = vsel %vm1241, %v261, %v1325
        %v1329 = vsel %vm1241, 0, %v1327
        %v1330 = vcosq.f32.pop %v1328
        %v1331 = vsinq.f32.pop %v1328
        %vm1332 = vweird.f32 %v261
        %v1333 = vadd.s32 %v1329, 3
        %v1334 = vand.u32 %v1333, 3
        %vm1335 = vcmp.lt.s32.totalorder %v1334, 2
        %vm1336 = vcmp.eq.s32.totalorder %v1334, 0
        %v1337 = vxor.u32 %v1331, 2147483648
        %v1338 = vsel %vm1336, %v1330, %v1337
        %vm1339 = vcmp.eq.s32.totalorder %v1334, 2
        %v1340 = vxor.u32 %v1330, 2147483648
        %v1341 = vsel %vm1339, %v1340, %v1331
        %v1342 = vsel %vm1335, %v1338, %v1341
        %v1343 = vsel %vm1332, nan, %v1342
        %v1344 = vand.u32 2147483647, %v263
        %vm1345 = vcmp.le.f32.partialorder %v1344, 0.7853982
        %vm1346 = vcmp.lt.s32.totalorder %v263, 0
        %v1347 = vand.u32 %v263, 2139095040
        %v1348 = vshrl.u32 %v1347, 23
        %v1349 = vsub.s32 %v1348, 127
        %v1350 = vand.u32 2147483647, %v263
        %v1351 = vand.u32 %v1350, 8388607
        %v1352 = vor.u32 %v1351, 8388608
        %v1353 = vsub.s32 0, %v1352
        %v1354 = vadd.s32 %v1349, 1
        %vm1355 = vcmp.gt.s32.totalorder %v1354, 0
        %v1356 = vsel %vm1355, %v1354, 0
        %v1357 = vshrl.u32 %v1356, 5
        %v1358 = vand.u32 %v1356, 31
        %v1359 = vsub.s32 32, %v1358
        %v1360 = vshrl.u32 683565275, %v1359
        %v1361 = vshll.u32 683565275, %v1358
        %v1362 = vshrl.u32 2475754826, %v1359
        %v1363 = vor.u32 %v1361, %v1362
        %v1364 = vshll.u32 2475754826, %v1358
        %v1365 = vshrl.u32 2131351028, %v1359
        %v1366 = vor.u32 %v1364, %v1365
        %v1367 = vshll.u32 2131351028, %v1358
        %v1368 = vshrl.u32 2102212464, %v1359
        %v1369 = vor.u32 %v1367, %v1368
        %v1370 = vshll.u32 2102212464, %v1358
        %v1371 = vshrl.u32 920167782, %v1359
        %v1372 = vor.u32 %v1370, %v1371
        %v1373 = vshll.u32 920167782, %v1358
        %v1374 = vshrl.u32 1326507024, %v1359
        %v1375 = vor.u32 %v1373, %v1374
        %vm1376 = vcmp.lt.s32.totalorder %v1357, 1
        %vm1377 = vcmp.lt.s32.totalorder %v1357, 2
        %vm1378 = vcmp.lt.s32.totalorder %v1357, 3
        %vm1379 = vcmp.lt.s32.totalorder %v1357, 4
        %v1380 = vsel %vm1376, %v1360, %v1363
        %v1381 = vsel %vm1379, %v1369, 2102212464
        %v1382 = vsel %vm1378, %v1366, %v1381
        %v1383 = vsel %vm1377, %v1380, %v1382
        %v1384 = vsel %vm1376, %v1363, %v1366
        %v1385 = vsel %vm1379, %v1372, 920167782
        %v1386 = vsel %vm1378, %v1369, %v1385
        %v1387 = vsel %vm1377, %v1384, %v1386
        %v1388 = vsel %vm1376, %v1366, %v1369
        %v1389 = vsel %vm1379, %v1375, 1326507024
        %v1390 = vsel %vm1378, %v1372, %v1389
        %v1391 = vsel %vm1377, %v1388, %v1390
        %v1392 = vshll.u32 %v1352, 8
        %v1393 = vmul.u32.u64.compose %v1392, %v1391
        %v1394 = vextract.low.u32 %v1393
        %v1395 = vextract.high.u32 %v1393
        %v1396 = vmul.u32.u64.compose %v1392, %v1387
        %v1397 = vextract.low.u32 %v1396
        %v1398 = vextract.high.u32 %v1396
        %v1399 = vmul.u32 %v1392, %v1383
        %v1400 = vadd.s32 %v1395, %v1397
        %vm1401 = vc.u32 %v1395, %v1397
        %v1402 = vadd.s32 %v1398, 1
        %v1403 = vsel %vm1401, %v1402, %v1398
        %v1404 = vadd.s32 %v1399, %v1403
        %v1405 = vadd.s32 %v1404, 536870912
        %v1406 = vshrl.u32 %v1405, 30
        %v1407 = vshll.u32 %v1406, 30
        %v1408 = vsub.s32 %v1404, %v1407
        %vm1409 = vcmp.lt.s32.totalorder %v1408, 0
        %v1410 = vsub.s32 0, %v1408
        %v1411 = vsel %vm1409, %v1410, %v1408
        %v1412 = vclz %v1411
        %v1413 = vsub.s32 %v1412, 2
        %vm1414 = vcmp.gt.s32.totalorder 0, %v1413
        %v1415 = vsel %vm1414, 0, %v1413
        %v1416 = vsub.s32 32, %v1415
        %v1417 = vshll.u32 %v1408, %v1415
        %v1418 = vshrl.u32 %v1400, %v1416
        %v1419 = vor.u32 %v1417, %v1418
        %v1420 = vsub.s32 4294967266, %v1415
        %v1421 = vadd.s32 %v1420, 127
        %v1422 = vshll.u32 %v1421, 23
        %v1423 = vor.u32 4788187, %v1422
        %v1424 = vand.u32 2147483647, %v1423
        %v1426 = vcvt.s32.f32 %v1419
        %v1427 = vmul.f32 %v1426, %v1424
        %v1428 = vxor.u32 %v1427, 2147483648
        %v1429 = vsel %vm1346, %v1428, %v1427
        %v1430 = vsub.s32 4, %v1406
        %v1431 = vsel %vm1346, %v1430, %v1406
        %v1432 = vsel %vm1345, %v263, %v1429
        %v1433 = vsel %vm1345, 0, %v1431
        %v1434 = vcosq.f32.pop %v1432
        %v1435 = vsinq.f32.pop %v1432
        %vm1436 = vweird.f32 %v263
        %v1437 = vadd.s32 %v1433, 3
        %v1438 = vand.u32 %v1437, 3
        %vm1439 = vcmp.lt.s32.totalorder %v1438, 2
        %vm1440 = vcmp.eq.s32.totalorder %v1438, 0
        %v1441 = vxor.u32 %v1435, 2147483648
        %v1442 = vsel %vm1440, %v1434, %v1441
        %vm1443 = vcmp.eq.s32.totalorder %v1438, 2
        %v1444 = vxor.u32 %v1434, 2147483648
        %v1445 = vsel %vm1443, %v1444, %v1435
        %v1446 = vsel %vm1439, %v1442, %v1445
        %v1447 = vsel %vm1436, nan, %v1446
        %v1448 = vand.u32 2147483647, %v374
        %vm1449 = vcmp.le.f32.partialorder %v1448, 0.7853982
        %vm1450 = vcmp.lt.s32.totalorder %v374, 0
        %v1451 = vand.u32 %v374, 2139095040
        %v1452 = vshrl.u32 %v1451, 23
        %v1453 = vsub.s32 %v1452, 127
        %v1454 = vand.u32 2147483647, %v374
        %v1455 = vand.u32 %v1454, 8388607
        %v1456 = vor.u32 %v1455, 8388608
        %v1457 = vsub.s32 0, %v1456
        %v1458 = vadd.s32 %v1453, 1
        %vm1459 = vcmp.gt.s32.totalorder %v1458, 0
        %v1460 = vsel %vm1459, %v1458, 0
        %v1461 = vshrl.u32 %v1460, 5
        %v1462 = vand.u32 %v1460, 31
        %v1463 = vsub.s32 32, %v1462
        %v1464 = vshrl.u32 683565275, %v1463
        %v1465 = vshll.u32 683565275, %v1462
        %v1466 = vshrl.u32 2475754826, %v1463
        %v1467 = vor.u32 %v1465, %v1466
        %v1468 = vshll.u32 2475754826, %v1462
        %v1469 = vshrl.u32 2131351028, %v1463
        %v1470 = vor.u32 %v1468, %v1469
        %v1471 = vshll.u32 2131351028, %v1462
        %v1472 = vshrl.u32 2102212464, %v1463
        %v1473 = vor.u32 %v1471, %v1472
        %v1474 = vshll.u32 2102212464, %v1462
        %v1475 = vshrl.u32 920167782, %v1463
        %v1476 = vor.u32 %v1474, %v1475
        %v1477 = vshll.u32 920167782, %v1462
        %v1478 = vshrl.u32 1326507024, %v1463
        %v1479 = vor.u32 %v1477, %v1478
        %vm1480 = vcmp.lt.s32.totalorder %v1461, 1
        %vm1481 = vcmp.lt.s32.totalorder %v1461, 2
        %vm1482 = vcmp.lt.s32.totalorder %v1461, 3
        %vm1483 = vcmp.lt.s32.totalorder %v1461, 4
        %v1484 = vsel %vm1480, %v1464, %v1467
        %v1485 = vsel %vm1483, %v1473, 2102212464
        %v1486 = vsel %vm1482, %v1470, %v1485
        %v1487 = vsel %vm1481, %v1484, %v1486
        %v1488 = vsel %vm1480, %v1467, %v1470
        %v1489 = vsel %vm1483, %v1476, 920167782
        %v1490 = vsel %vm1482, %v1473, %v1489
        %v1491 = vsel %vm1481, %v1488, %v1490
        %v1492 = vsel %vm1480, %v1470, %v1473
        %v1493 = vsel %vm1483, %v1479, 1326507024
        %v1494 = vsel %vm1482, %v1476, %v1493
        %v1495 = vsel %vm1481, %v1492, %v1494
        %v1496 = vshll.u32 %v1456, 8
        %v1497 = vmul.u32.u64.compose %v1496, %v1495
        %v1498 = vextract.low.u32 %v1497
        %v1499 = vextract.high.u32 %v1497
        %v1500 = vmul.u32.u64.compose %v1496, %v1491
        %v1501 = vextract.low.u32 %v1500
        %v1502 = vextract.high.u32 %v1500
        %v1503 = vmul.u32 %v1496, %v1487
        %v1504 = vadd.s32 %v1499, %v1501
        %vm1505 = vc.u32 %v1499, %v1501
        %v1506 = vadd.s32 %v1502, 1
        %v1507 = vsel %vm1505, %v1506, %v1502
        %v1508 = vadd.s32 %v1503, %v1507
        %v1509 = vadd.s32 %v1508, 536870912
        %v1510 = vshrl.u32 %v1509, 30
        %v1511 = vshll.u32 %v1510, 30
        %v1512 = vsub.s32 %v1508, %v1511
        %vm1513 = vcmp.lt.s32.totalorder %v1512, 0
        %v1514 = vsub.s32 0, %v1512
        %v1515 = vsel %vm1513, %v1514, %v1512
        %v1516 = vclz %v1515
        %v1517 = vsub.s32 %v1516, 2
        %vm1518 = vcmp.gt.s32.totalorder 0, %v1517
        %v1519 = vsel %vm1518, 0, %v1517
        %v1520 = vsub.s32 32, %v1519
        %v1521 = vshll.u32 %v1512, %v1519
        %v1522 = vshrl.u32 %v1504, %v1520
        %v1523 = vor.u32 %v1521, %v1522
        %v1524 = vsub.s32 4294967266, %v1519
        %v1525 = vadd.s32 %v1524, 127
        %v1526 = vshll.u32 %v1525, 23
        %v1527 = vor.u32 4788187, %v1526
        %v1528 = vand.u32 2147483647, %v1527
        %v1530 = vcvt.s32.f32 %v1523
        %v1531 = vmul.f32 %v1530, %v1528
        %v1532 = vxor.u32 %v1531, 2147483648
        %v1533 = vsel %vm1450, %v1532, %v1531
        %v1534 = vsub.s32 4, %v1510
        %v1535 = vsel %vm1450, %v1534, %v1510
        %v1536 = vsel %vm1449, %v374, %v1533
        %v1537 = vsel %vm1449, 0, %v1535
        %v1538 = vcosq.f32.pop %v1536
        %v1539 = vsinq.f32.pop %v1536
        %vm1540 = vweird.f32 %v374
        %v1541 = vadd.s32 %v1537, 3
        %v1542 = vand.u32 %v1541, 3
        %vm1543 = vcmp.lt.s32.totalorder %v1542, 2
        %vm1544 = vcmp.eq.s32.totalorder %v1542, 0
        %v1545 = vxor.u32 %v1539, 2147483648
        %v1546 = vsel %vm1544, %v1538, %v1545
        %vm1547 = vcmp.eq.s32.totalorder %v1542, 2
        %v1548 = vxor.u32 %v1538, 2147483648
        %v1549 = vsel %vm1547, %v1548, %v1539
        %v1550 = vsel %vm1543, %v1546, %v1549
        %v1551 = vsel %vm1540, nan, %v1550
        %v1552 = vand.u32 2147483647, %v376
        %vm1553 = vcmp.le.f32.partialorder %v1552, 0.7853982
        %vm1554 = vcmp.lt.s32.totalorder %v376, 0
        %v1555 = vand.u32 %v376, 2139095040
        %v1556 = vshrl.u32 %v1555, 23
        %v1557 = vsub.s32 %v1556, 127
        %v1558 = vand.u32 2147483647, %v376
        %v1559 = vand.u32 %v1558, 8388607
        %v1560 = vor.u32 %v1559, 8388608
        %v1561 = vsub.s32 0, %v1560
        %v1562 = vadd.s32 %v1557, 1
        %vm1563 = vcmp.gt.s32.totalorder %v1562, 0
        %v1564 = vsel %vm1563, %v1562, 0
        %v1565 = vshrl.u32 %v1564, 5
        %v1566 = vand.u32 %v1564, 31
        %v1567 = vsub.s32 32, %v1566
        %v1568 = vshrl.u32 683565275, %v1567
        %v1569 = vshll.u32 683565275, %v1566
        %v1570 = vshrl.u32 2475754826, %v1567
        %v1571 = vor.u32 %v1569, %v1570
        %v1572 = vshll.u32 2475754826, %v1566
        %v1573 = vshrl.u32 2131351028, %v1567
        %v1574 = vor.u32 %v1572, %v1573
        %v1575 = vshll.u32 2131351028, %v1566
        %v1576 = vshrl.u32 2102212464, %v1567
        %v1577 = vor.u32 %v1575, %v1576
        %v1578 = vshll.u32 2102212464, %v1566
        %v1579 = vshrl.u32 920167782, %v1567
        %v1580 = vor.u32 %v1578, %v1579
        %v1581 = vshll.u32 920167782, %v1566
        %v1582 = vshrl.u32 1326507024, %v1567
        %v1583 = vor.u32 %v1581, %v1582
        %vm1584 = vcmp.lt.s32.totalorder %v1565, 1
        %vm1585 = vcmp.lt.s32.totalorder %v1565, 2
        %vm1586 = vcmp.lt.s32.totalorder %v1565, 3
        %vm1587 = vcmp.lt.s32.totalorder %v1565, 4
        %v1588 = vsel %vm1584, %v1568, %v1571
        %v1589 = vsel %vm1587, %v1577, 2102212464
        %v1590 = vsel %vm1586, %v1574, %v1589
        %v1591 = vsel %vm1585, %v1588, %v1590
        %v1592 = vsel %vm1584, %v1571, %v1574
        %v1593 = vsel %vm1587, %v1580, 920167782
        %v1594 = vsel %vm1586, %v1577, %v1593
        %v1595 = vsel %vm1585, %v1592, %v1594
        %v1596 = vsel %vm1584, %v1574, %v1577
        %v1597 = vsel %vm1587, %v1583, 1326507024
        %v1598 = vsel %vm1586, %v1580, %v1597
        %v1599 = vsel %vm1585, %v1596, %v1598
        %v1600 = vshll.u32 %v1560, 8
        %v1601 = vmul.u32.u64.compose %v1600, %v1599
        %v1602 = vextract.low.u32 %v1601
        %v1603 = vextract.high.u32 %v1601
        %v1604 = vmul.u32.u64.compose %v1600, %v1595
        %v1605 = vextract.low.u32 %v1604
        %v1606 = vextract.high.u32 %v1604
        %v1607 = vmul.u32 %v1600, %v1591
        %v1608 = vadd.s32 %v1603, %v1605
        %vm1609 = vc.u32 %v1603, %v1605
        %v1610 = vadd.s32 %v1606, 1
        %v1611 = vsel %vm1609, %v1610, %v1606
        %v1612 = vadd.s32 %v1607, %v1611
        %v1613 = vadd.s32 %v1612, 536870912
        %v1614 = vshrl.u32 %v1613, 30
        %v1615 = vshll.u32 %v1614, 30
        %v1616 = vsub.s32 %v1612, %v1615
        %vm1617 = vcmp.lt.s32.totalorder %v1616, 0
        %v1618 = vsub.s32 0, %v1616
        %v1619 = vsel %vm1617, %v1618, %v1616
        %v1620 = vclz %v1619
        %v1621 = vsub.s32 %v1620, 2
        %vm1622 = vcmp.gt.s32.totalorder 0, %v1621
        %v1623 = vsel %vm1622, 0, %v1621
        %v1624 = vsub.s32 32, %v1623
        %v1625 = vshll.u32 %v1616, %v1623
        %v1626 = vshrl.u32 %v1608, %v1624
        %v1627 = vor.u32 %v1625, %v1626
        %v1628 = vsub.s32 4294967266, %v1623
        %v1629 = vadd.s32 %v1628, 127
        %v1630 = vshll.u32 %v1629, 23
        %v1631 = vor.u32 4788187, %v1630
        %v1632 = vand.u32 2147483647, %v1631
        %v1634 = vcvt.s32.f32 %v1627
        %v1635 = vmul.f32 %v1634, %v1632
        %v1636 = vxor.u32 %v1635, 2147483648
        %v1637 = vsel %vm1554, %v1636, %v1635
        %v1638 = vsub.s32 4, %v1614
        %v1639 = vsel %vm1554, %v1638, %v1614
        %v1640 = vsel %vm1553, %v376, %v1637
        %v1641 = vsel %vm1553, 0, %v1639
        %v1642 = vcosq.f32.pop %v1640
        %v1643 = vsinq.f32.pop %v1640
        %vm1644 = vweird.f32 %v376
        %v1645 = vadd.s32 %v1641, 3
        %v1646 = vand.u32 %v1645, 3
        %vm1647 = vcmp.lt.s32.totalorder %v1646, 2
        %vm1648 = vcmp.eq.s32.totalorder %v1646, 0
        %v1649 = vxor.u32 %v1643, 2147483648
        %v1650 = vsel %vm1648, %v1642, %v1649
        %vm1651 = vcmp.eq.s32.totalorder %v1646, 2
        %v1652 = vxor.u32 %v1642, 2147483648
        %v1653 = vsel %vm1651, %v1652, %v1643
        %v1654 = vsel %vm1647, %v1650, %v1653
        %v1655 = vsel %vm1644, nan, %v1654
        %v1656 = vand.u32 2147483647, %v267
        %vm1657 = vcmp.le.f32.partialorder %v1656, 0.7853982
        %vm1658 = vcmp.lt.s32.totalorder %v267, 0
        %v1659 = vand.u32 %v267, 2139095040
        %v1660 = vshrl.u32 %v1659, 23
        %v1661 = vsub.s32 %v1660, 127
        %v1662 = vand.u32 2147483647, %v267
        %v1663 = vand.u32 %v1662, 8388607
        %v1664 = vor.u32 %v1663, 8388608
        %v1665 = vsub.s32 0, %v1664
        %v1666 = vadd.s32 %v1661, 1
        %vm1667 = vcmp.gt.s32.totalorder %v1666, 0
        %v1668 = vsel %vm1667, %v1666, 0
        %v1669 = vshrl.u32 %v1668, 5
        %v1670 = vand.u32 %v1668, 31
        %v1671 = vsub.s32 32, %v1670
        %v1672 = vshrl.u32 683565275, %v1671
        %v1673 = vshll.u32 683565275, %v1670
        %v1674 = vshrl.u32 2475754826, %v1671
        %v1675 = vor.u32 %v1673, %v1674
        %v1676 = vshll.u32 2475754826, %v1670
        %v1677 = vshrl.u32 2131351028, %v1671
        %v1678 = vor.u32 %v1676, %v1677
        %v1679 = vshll.u32 2131351028, %v1670
        %v1680 = vshrl.u32 2102212464, %v1671
        %v1681 = vor.u32 %v1679, %v1680
        %v1682 = vshll.u32 2102212464, %v1670
        %v1683 = vshrl.u32 920167782, %v1671
        %v1684 = vor.u32 %v1682, %v1683
        %v1685 = vshll.u32 920167782, %v1670
        %v1686 = vshrl.u32 1326507024, %v1671
        %v1687 = vor.u32 %v1685, %v1686
        %vm1688 = vcmp.lt.s32.totalorder %v1669, 1
        %vm1689 = vcmp.lt.s32.totalorder %v1669, 2
        %vm1690 = vcmp.lt.s32.totalorder %v1669, 3
        %vm1691 = vcmp.lt.s32.totalorder %v1669, 4
        %v1692 = vsel %vm1688, %v1672, %v1675
        %v1693 = vsel %vm1691, %v1681, 2102212464
        %v1694 = vsel %vm1690, %v1678, %v1693
        %v1695 = vsel %vm1689, %v1692, %v1694
        %v1696 = vsel %vm1688, %v1675, %v1678
        %v1697 = vsel %vm1691, %v1684, 920167782
        %v1698 = vsel %vm1690, %v1681, %v1697
        %v1699 = vsel %vm1689, %v1696, %v1698
        %v1700 = vsel %vm1688, %v1678, %v1681
        %v1701 = vsel %vm1691, %v1687, 1326507024
        %v1702 = vsel %vm1690, %v1684, %v1701
        %v1703 = vsel %vm1689, %v1700, %v1702
        %v1704 = vshll.u32 %v1664, 8
        %v1705 = vmul.u32.u64.compose %v1704, %v1703
        %v1706 = vextract.low.u32 %v1705
        %v1707 = vextract.high.u32 %v1705
        %v1708 = vmul.u32.u64.compose %v1704, %v1699
        %v1709 = vextract.low.u32 %v1708
        %v1710 = vextract.high.u32 %v1708
        %v1711 = vmul.u32 %v1704, %v1695
        %v1712 = vadd.s32 %v1707, %v1709
        %vm1713 = vc.u32 %v1707, %v1709
        %v1714 = vadd.s32 %v1710, 1
        %v1715 = vsel %vm1713, %v1714, %v1710
        %v1716 = vadd.s32 %v1711, %v1715
        %v1717 = vadd.s32 %v1716, 536870912
        %v1718 = vshrl.u32 %v1717, 30
        %v1719 = vshll.u32 %v1718, 30
        %v1720 = vsub.s32 %v1716, %v1719
        %vm1721 = vcmp.lt.s32.totalorder %v1720, 0
        %v1722 = vsub.s32 0, %v1720
        %v1723 = vsel %vm1721, %v1722, %v1720
        %v1724 = vclz %v1723
        %v1725 = vsub.s32 %v1724, 2
        %vm1726 = vcmp.gt.s32.totalorder 0, %v1725
        %v1727 = vsel %vm1726, 0, %v1725
        %v1728 = vsub.s32 32, %v1727
        %v1729 = vshll.u32 %v1720, %v1727
        %v1730 = vshrl.u32 %v1712, %v1728
        %v1731 = vor.u32 %v1729, %v1730
        %v1732 = vsub.s32 4294967266, %v1727
        %v1733 = vadd.s32 %v1732, 127
        %v1734 = vshll.u32 %v1733, 23
        %v1735 = vor.u32 4788187, %v1734
        %v1736 = vand.u32 2147483647, %v1735
        %v1738 = vcvt.s32.f32 %v1731
        %v1739 = vmul.f32 %v1738, %v1736
        %v1740 = vxor.u32 %v1739, 2147483648
        %v1741 = vsel %vm1658, %v1740, %v1739
        %v1742 = vsub.s32 4, %v1718
        %v1743 = vsel %vm1658, %v1742, %v1718
        %v1744 = vsel %vm1657, %v267, %v1741
        %v1745 = vsel %vm1657, 0, %v1743
        %v1746 = vcosq.f32.pop %v1744
        %v1747 = vsinq.f32.pop %v1744
        %vm1748 = vweird.f32 %v267
        %v1749 = vadd.s32 %v1745, 3
        %v1750 = vand.u32 %v1749, 3
        %vm1751 = vcmp.lt.s32.totalorder %v1750, 2
        %vm1752 = vcmp.eq.s32.totalorder %v1750, 0
        %v1753 = vxor.u32 %v1747, 2147483648
        %v1754 = vsel %vm1752, %v1746, %v1753
        %vm1755 = vcmp.eq.s32.totalorder %v1750, 2
        %v1756 = vxor.u32 %v1746, 2147483648
        %v1757 = vsel %vm1755, %v1756, %v1747
        %v1758 = vsel %vm1751, %v1754, %v1757
        %v1759 = vsel %vm1748, nan, %v1758
        %v1760 = vand.u32 2147483647, %v269
        %vm1761 = vcmp.le.f32.partialorder %v1760, 0.7853982
        %vm1762 = vcmp.lt.s32.totalorder %v269, 0
        %v1763 = vand.u32 %v269, 2139095040
        %v1764 = vshrl.u32 %v1763, 23
        %v1765 = vsub.s32 %v1764, 127
        %v1766 = vand.u32 2147483647, %v269
        %v1767 = vand.u32 %v1766, 8388607
        %v1768 = vor.u32 %v1767, 8388608
        %v1769 = vsub.s32 0, %v1768
        %v1770 = vadd.s32 %v1765, 1
        %vm1771 = vcmp.gt.s32.totalorder %v1770, 0
        %v1772 = vsel %vm1771, %v1770, 0
        %v1773 = vshrl.u32 %v1772, 5
        %v1774 = vand.u32 %v1772, 31
        %v1775 = vsub.s32 32, %v1774
        %v1776 = vshrl.u32 683565275, %v1775
        %v1777 = vshll.u32 683565275, %v1774
        %v1778 = vshrl.u32 2475754826, %v1775
        %v1779 = vor.u32 %v1777, %v1778
        %v1780 = vshll.u32 2475754826, %v1774
        %v1781 = vshrl.u32 2131351028, %v1775
        %v1782 = vor.u32 %v1780, %v1781
        %v1783 = vshll.u32 2131351028, %v1774
        %v1784 = vshrl.u32 2102212464, %v1775
        %v1785 = vor.u32 %v1783, %v1784
        %v1786 = vshll.u32 2102212464, %v1774
        %v1787 = vshrl.u32 920167782, %v1775
        %v1788 = vor.u32 %v1786, %v1787
        %v1789 = vshll.u32 920167782, %v1774
        %v1790 = vshrl.u32 1326507024, %v1775
        %v1791 = vor.u32 %v1789, %v1790
        %vm1792 = vcmp.lt.s32.totalorder %v1773, 1
        %vm1793 = vcmp.lt.s32.totalorder %v1773, 2
        %vm1794 = vcmp.lt.s32.totalorder %v1773, 3
        %vm1795 = vcmp.lt.s32.totalorder %v1773, 4
        %v1796 = vsel %vm1792, %v1776, %v1779
        %v1797 = vsel %vm1795, %v1785, 2102212464
        %v1798 = vsel %vm1794, %v1782, %v1797
        %v1799 = vsel %vm1793, %v1796, %v1798
        %v1800 = vsel %vm1792, %v1779, %v1782
        %v1801 = vsel %vm1795, %v1788, 920167782
        %v1802 = vsel %vm1794, %v1785, %v1801
        %v1803 = vsel %vm1793, %v1800, %v1802
        %v1804 = vsel %vm1792, %v1782, %v1785
        %v1805 = vsel %vm1795, %v1791, 1326507024
        %v1806 = vsel %vm1794, %v1788, %v1805
        %v1807 = vsel %vm1793, %v1804, %v1806
        %v1808 = vshll.u32 %v1768, 8
        %v1809 = vmul.u32.u64.compose %v1808, %v1807
        %v1810 = vextract.low.u32 %v1809
        %v1811 = vextract.high.u32 %v1809
        %v1812 = vmul.u32.u64.compose %v1808, %v1803
        %v1813 = vextract.low.u32 %v1812
        %v1814 = vextract.high.u32 %v1812
        %v1815 = vmul.u32 %v1808, %v1799
        %v1816 = vadd.s32 %v1811, %v1813
        %vm1817 = vc.u32 %v1811, %v1813
        %v1818 = vadd.s32 %v1814, 1
        %v1819 = vsel %vm1817, %v1818, %v1814
        %v1820 = vadd.s32 %v1815, %v1819
        %v1821 = vadd.s32 %v1820, 536870912
        %v1822 = vshrl.u32 %v1821, 30
        %v1823 = vshll.u32 %v1822, 30
        %v1824 = vsub.s32 %v1820, %v1823
        %vm1825 = vcmp.lt.s32.totalorder %v1824, 0
        %v1826 = vsub.s32 0, %v1824
        %v1827 = vsel %vm1825, %v1826, %v1824
        %v1828 = vclz %v1827
        %v1829 = vsub.s32 %v1828, 2
        %vm1830 = vcmp.gt.s32.totalorder 0, %v1829
        %v1831 = vsel %vm1830, 0, %v1829
        %v1832 = vsub.s32 32, %v1831
        %v1833 = vshll.u32 %v1824, %v1831
        %v1834 = vshrl.u32 %v1816, %v1832
        %v1835 = vor.u32 %v1833, %v1834
        %v1836 = vsub.s32 4294967266, %v1831
        %v1837 = vadd.s32 %v1836, 127
        %v1838 = vshll.u32 %v1837, 23
        %v1839 = vor.u32 4788187, %v1838
        %v1840 = vand.u32 2147483647, %v1839
        %v1842 = vcvt.s32.f32 %v1835
        %v1843 = vmul.f32 %v1842, %v1840
        %v1844 = vxor.u32 %v1843, 2147483648
        %v1845 = vsel %vm1762, %v1844, %v1843
        %v1846 = vsub.s32 4, %v1822
        %v1847 = vsel %vm1762, %v1846, %v1822
        %v1848 = vsel %vm1761, %v269, %v1845
        %v1849 = vsel %vm1761, 0, %v1847
        %v1850 = vcosq.f32.pop %v1848
        %v1851 = vsinq.f32.pop %v1848
        %vm1852 = vweird.f32 %v269
        %v1853 = vadd.s32 %v1849, 3
        %v1854 = vand.u32 %v1853, 3
        %vm1855 = vcmp.lt.s32.totalorder %v1854, 2
        %vm1856 = vcmp.eq.s32.totalorder %v1854, 0
        %v1857 = vxor.u32 %v1851, 2147483648
        %v1858 = vsel %vm1856, %v1850, %v1857
        %vm1859 = vcmp.eq.s32.totalorder %v1854, 2
        %v1860 = vxor.u32 %v1850, 2147483648
        %v1861 = vsel %vm1859, %v1860, %v1851
        %v1862 = vsel %vm1855, %v1858, %v1861
        %v1863 = vsel %vm1852, nan, %v1862
        %v1864 = vand.u32 2147483647, %v380
        %vm1865 = vcmp.le.f32.partialorder %v1864, 0.7853982
        %vm1866 = vcmp.lt.s32.totalorder %v380, 0
        %v1867 = vand.u32 %v380, 2139095040
        %v1868 = vshrl.u32 %v1867, 23
        %v1869 = vsub.s32 %v1868, 127
        %v1870 = vand.u32 2147483647, %v380
        %v1871 = vand.u32 %v1870, 8388607
        %v1872 = vor.u32 %v1871, 8388608
        %v1873 = vsub.s32 0, %v1872
        %v1874 = vadd.s32 %v1869, 1
        %vm1875 = vcmp.gt.s32.totalorder %v1874, 0
        %v1876 = vsel %vm1875, %v1874, 0
        %v1877 = vshrl.u32 %v1876, 5
        %v1878 = vand.u32 %v1876, 31
        %v1879 = vsub.s32 32, %v1878
        %v1880 = vshrl.u32 683565275, %v1879
        %v1881 = vshll.u32 683565275, %v1878
        %v1882 = vshrl.u32 2475754826, %v1879
        %v1883 = vor.u32 %v1881, %v1882
        %v1884 = vshll.u32 2475754826, %v1878
        %v1885 = vshrl.u32 2131351028, %v1879
        %v1886 = vor.u32 %v1884, %v1885
        %v1887 = vshll.u32 2131351028, %v1878
        %v1888 = vshrl.u32 2102212464, %v1879
        %v1889 = vor.u32 %v1887, %v1888
        %v1890 = vshll.u32 2102212464, %v1878
        %v1891 = vshrl.u32 920167782, %v1879
        %v1892 = vor.u32 %v1890, %v1891
        %v1893 = vshll.u32 920167782, %v1878
        %v1894 = vshrl.u32 1326507024, %v1879
        %v1895 = vor.u32 %v1893, %v1894
        %vm1896 = vcmp.lt.s32.totalorder %v1877, 1
        %vm1897 = vcmp.lt.s32.totalorder %v1877, 2
        %vm1898 = vcmp.lt.s32.totalorder %v1877, 3
        %vm1899 = vcmp.lt.s32.totalorder %v1877, 4
        %v1900 = vsel %vm1896, %v1880, %v1883
        %v1901 = vsel %vm1899, %v1889, 2102212464
        %v1902 = vsel %vm1898, %v1886, %v1901
        %v1903 = vsel %vm1897, %v1900, %v1902
        %v1904 = vsel %vm1896, %v1883, %v1886
        %v1905 = vsel %vm1899, %v1892, 920167782
        %v1906 = vsel %vm1898, %v1889, %v1905
        %v1907 = vsel %vm1897, %v1904, %v1906
        %v1908 = vsel %vm1896, %v1886, %v1889
        %v1909 = vsel %vm1899, %v1895, 1326507024
        %v1910 = vsel %vm1898, %v1892, %v1909
        %v1911 = vsel %vm1897, %v1908, %v1910
        %v1912 = vshll.u32 %v1872, 8
        %v1913 = vmul.u32.u64.compose %v1912, %v1911
        %v1914 = vextract.low.u32 %v1913
        %v1915 = vextract.high.u32 %v1913
        %v1916 = vmul.u32.u64.compose %v1912, %v1907
        %v1917 = vextract.low.u32 %v1916
        %v1918 = vextract.high.u32 %v1916
        %v1919 = vmul.u32 %v1912, %v1903
        %v1920 = vadd.s32 %v1915, %v1917
        %vm1921 = vc.u32 %v1915, %v1917
        %v1922 = vadd.s32 %v1918, 1
        %v1923 = vsel %vm1921, %v1922, %v1918
        %v1924 = vadd.s32 %v1919, %v1923
        %v1925 = vadd.s32 %v1924, 536870912
        %v1926 = vshrl.u32 %v1925, 30
        %v1927 = vshll.u32 %v1926, 30
        %v1928 = vsub.s32 %v1924, %v1927
        %vm1929 = vcmp.lt.s32.totalorder %v1928, 0
        %v1930 = vsub.s32 0, %v1928
        %v1931 = vsel %vm1929, %v1930, %v1928
        %v1932 = vclz %v1931
        %v1933 = vsub.s32 %v1932, 2
        %vm1934 = vcmp.gt.s32.totalorder 0, %v1933
        %v1935 = vsel %vm1934, 0, %v1933
        %v1936 = vsub.s32 32, %v1935
        %v1937 = vshll.u32 %v1928, %v1935
        %v1938 = vshrl.u32 %v1920, %v1936
        %v1939 = vor.u32 %v1937, %v1938
        %v1940 = vsub.s32 4294967266, %v1935
        %v1941 = vadd.s32 %v1940, 127
        %v1942 = vshll.u32 %v1941, 23
        %v1943 = vor.u32 4788187, %v1942
        %v1944 = vand.u32 2147483647, %v1943
        %v1946 = vcvt.s32.f32 %v1939
        %v1947 = vmul.f32 %v1946, %v1944
        %v1948 = vxor.u32 %v1947, 2147483648
        %v1949 = vsel %vm1866, %v1948, %v1947
        %v1950 = vsub.s32 4, %v1926
        %v1951 = vsel %vm1866, %v1950, %v1926
        %v1952 = vsel %vm1865, %v380, %v1949
        %v1953 = vsel %vm1865, 0, %v1951
        %v1954 = vcosq.f32.pop %v1952
        %v1955 = vsinq.f32.pop %v1952
        %vm1956 = vweird.f32 %v380
        %v1957 = vadd.s32 %v1953, 3
        %v1958 = vand.u32 %v1957, 3
        %vm1959 = vcmp.lt.s32.totalorder %v1958, 2
        %vm1960 = vcmp.eq.s32.totalorder %v1958, 0
        %v1961 = vxor.u32 %v1955, 2147483648
        %v1962 = vsel %vm1960, %v1954, %v1961
        %vm1963 = vcmp.eq.s32.totalorder %v1958, 2
        %v1964 = vxor.u32 %v1954, 2147483648
        %v1965 = vsel %vm1963, %v1964, %v1955
        %v1966 = vsel %vm1959, %v1962, %v1965
        %v1967 = vsel %vm1956, nan, %v1966
        %v1968 = vand.u32 2147483647, %v382
        %vm1969 = vcmp.le.f32.partialorder %v1968, 0.7853982
        %vm1970 = vcmp.lt.s32.totalorder %v382, 0
        %v1971 = vand.u32 %v382, 2139095040
        %v1972 = vshrl.u32 %v1971, 23
        %v1973 = vsub.s32 %v1972, 127
        %v1974 = vand.u32 2147483647, %v382
        %v1975 = vand.u32 %v1974, 8388607
        %v1976 = vor.u32 %v1975, 8388608
        %v1977 = vsub.s32 0, %v1976
        %v1978 = vadd.s32 %v1973, 1
        %vm1979 = vcmp.gt.s32.totalorder %v1978, 0
        %v1980 = vsel %vm1979, %v1978, 0
        %v1981 = vshrl.u32 %v1980, 5
        %v1982 = vand.u32 %v1980, 31
        %v1983 = vsub.s32 32, %v1982
        %v1984 = vshrl.u32 683565275, %v1983
        %v1985 = vshll.u32 683565275, %v1982
        %v1986 = vshrl.u32 2475754826, %v1983
        %v1987 = vor.u32 %v1985, %v1986
        %v1988 = vshll.u32 2475754826, %v1982
        %v1989 = vshrl.u32 2131351028, %v1983
        %v1990 = vor.u32 %v1988, %v1989
        %v1991 = vshll.u32 2131351028, %v1982
        %v1992 = vshrl.u32 2102212464, %v1983
        %v1993 = vor.u32 %v1991, %v1992
        %v1994 = vshll.u32 2102212464, %v1982
        %v1995 = vshrl.u32 920167782, %v1983
        %v1996 = vor.u32 %v1994, %v1995
        %v1997 = vshll.u32 920167782, %v1982
        %v1998 = vshrl.u32 1326507024, %v1983
        %v1999 = vor.u32 %v1997, %v1998
        %vm2000 = vcmp.lt.s32.totalorder %v1981, 1
        %vm2001 = vcmp.lt.s32.totalorder %v1981, 2
        %vm2002 = vcmp.lt.s32.totalorder %v1981, 3
        %vm2003 = vcmp.lt.s32.totalorder %v1981, 4
        %v2004 = vsel %vm2000, %v1984, %v1987
        %v2005 = vsel %vm2003, %v1993, 2102212464
        %v2006 = vsel %vm2002, %v1990, %v2005
        %v2007 = vsel %vm2001, %v2004, %v2006
        %v2008 = vsel %vm2000, %v1987, %v1990
        %v2009 = vsel %vm2003, %v1996, 920167782
        %v2010 = vsel %vm2002, %v1993, %v2009
        %v2011 = vsel %vm2001, %v2008, %v2010
        %v2012 = vsel %vm2000, %v1990, %v1993
        %v2013 = vsel %vm2003, %v1999, 1326507024
        %v2014 = vsel %vm2002, %v1996, %v2013
        %v2015 = vsel %vm2001, %v2012, %v2014
        %v2016 = vshll.u32 %v1976, 8
        %v2017 = vmul.u32.u64.compose %v2016, %v2015
        %v2018 = vextract.low.u32 %v2017
        %v2019 = vextract.high.u32 %v2017
        %v2020 = vmul.u32.u64.compose %v2016, %v2011
        %v2021 = vextract.low.u32 %v2020
        %v2022 = vextract.high.u32 %v2020
        %v2023 = vmul.u32 %v2016, %v2007
        %v2024 = vadd.s32 %v2019, %v2021
        %vm2025 = vc.u32 %v2019, %v2021
        %v2026 = vadd.s32 %v2022, 1
        %v2027 = vsel %vm2025, %v2026, %v2022
        %v2028 = vadd.s32 %v2023, %v2027
        %v2029 = vadd.s32 %v2028, 536870912
        %v2030 = vshrl.u32 %v2029, 30
        %v2031 = vshll.u32 %v2030, 30
        %v2032 = vsub.s32 %v2028, %v2031
        %vm2033 = vcmp.lt.s32.totalorder %v2032, 0
        %v2034 = vsub.s32 0, %v2032
        %v2035 = vsel %vm2033, %v2034, %v2032
        %v2036 = vclz %v2035
        %v2037 = vsub.s32 %v2036, 2
        %vm2038 = vcmp.gt.s32.totalorder 0, %v2037
        %v2039 = vsel %vm2038, 0, %v2037
        %v2040 = vsub.s32 32, %v2039
        %v2041 = vshll.u32 %v2032, %v2039
        %v2042 = vshrl.u32 %v2024, %v2040
        %v2043 = vor.u32 %v2041, %v2042
        %v2044 = vsub.s32 4294967266, %v2039
        %v2045 = vadd.s32 %v2044, 127
        %v2046 = vshll.u32 %v2045, 23
        %v2047 = vor.u32 4788187, %v2046
        %v2048 = vand.u32 2147483647, %v2047
        %v2050 = vcvt.s32.f32 %v2043
        %v2051 = vmul.f32 %v2050, %v2048
        %v2052 = vxor.u32 %v2051, 2147483648
        %v2053 = vsel %vm1970, %v2052, %v2051
        %v2054 = vsub.s32 4, %v2030
        %v2055 = vsel %vm1970, %v2054, %v2030
        %v2056 = vsel %vm1969, %v382, %v2053
        %v2057 = vsel %vm1969, 0, %v2055
        %v2058 = vcosq.f32.pop %v2056
        %v2059 = vsinq.f32.pop %v2056
        %vm2060 = vweird.f32 %v382
        %v2061 = vadd.s32 %v2057, 3
        %v2062 = vand.u32 %v2061, 3
        %vm2063 = vcmp.lt.s32.totalorder %v2062, 2
        %vm2064 = vcmp.eq.s32.totalorder %v2062, 0
        %v2065 = vxor.u32 %v2059, 2147483648
        %v2066 = vsel %vm2064, %v2058, %v2065
        %vm2067 = vcmp.eq.s32.totalorder %v2062, 2
        %v2068 = vxor.u32 %v2058, 2147483648
        %v2069 = vsel %vm2067, %v2068, %v2059
        %v2070 = vsel %vm2063, %v2066, %v2069
        %v2071 = vsel %vm2060, nan, %v2070
        %v2072 = vand.u32 2147483647, %v273
        %vm2073 = vcmp.le.f32.partialorder %v2072, 0.7853982
        %vm2074 = vcmp.lt.s32.totalorder %v273, 0
        %v2075 = vand.u32 %v273, 2139095040
        %v2076 = vshrl.u32 %v2075, 23
        %v2077 = vsub.s32 %v2076, 127
        %v2078 = vand.u32 2147483647, %v273
        %v2079 = vand.u32 %v2078, 8388607
        %v2080 = vor.u32 %v2079, 8388608
        %v2081 = vsub.s32 0, %v2080
        %v2082 = vadd.s32 %v2077, 1
        %vm2083 = vcmp.gt.s32.totalorder %v2082, 0
        %v2084 = vsel %vm2083, %v2082, 0
        %v2085 = vshrl.u32 %v2084, 5
        %v2086 = vand.u32 %v2084, 31
        %v2087 = vsub.s32 32, %v2086
        %v2088 = vshrl.u32 683565275, %v2087
        %v2089 = vshll.u32 683565275, %v2086
        %v2090 = vshrl.u32 2475754826, %v2087
        %v2091 = vor.u32 %v2089, %v2090
        %v2092 = vshll.u32 2475754826, %v2086
        %v2093 = vshrl.u32 2131351028, %v2087
        %v2094 = vor.u32 %v2092, %v2093
        %v2095 = vshll.u32 2131351028, %v2086
        %v2096 = vshrl.u32 2102212464, %v2087
        %v2097 = vor.u32 %v2095, %v2096
        %v2098 = vshll.u32 2102212464, %v2086
        %v2099 = vshrl.u32 920167782, %v2087
        %v2100 = vor.u32 %v2098, %v2099
        %v2101 = vshll.u32 920167782, %v2086
        %v2102 = vshrl.u32 1326507024, %v2087
        %v2103 = vor.u32 %v2101, %v2102
        %vm2104 = vcmp.lt.s32.totalorder %v2085, 1
        %vm2105 = vcmp.lt.s32.totalorder %v2085, 2
        %vm2106 = vcmp.lt.s32.totalorder %v2085, 3
        %vm2107 = vcmp.lt.s32.totalorder %v2085, 4
        %v2108 = vsel %vm2104, %v2088, %v2091
        %v2109 = vsel %vm2107, %v2097, 2102212464
        %v2110 = vsel %vm2106, %v2094, %v2109
        %v2111 = vsel %vm2105, %v2108, %v2110
        %v2112 = vsel %vm2104, %v2091, %v2094
        %v2113 = vsel %vm2107, %v2100, 920167782
        %v2114 = vsel %vm2106, %v2097, %v2113
        %v2115 = vsel %vm2105, %v2112, %v2114
        %v2116 = vsel %vm2104, %v2094, %v2097
        %v2117 = vsel %vm2107, %v2103, 1326507024
        %v2118 = vsel %vm2106, %v2100, %v2117
        %v2119 = vsel %vm2105, %v2116, %v2118
        %v2120 = vshll.u32 %v2080, 8
        %v2121 = vmul.u32.u64.compose %v2120, %v2119
        %v2122 = vextract.low.u32 %v2121
        %v2123 = vextract.high.u32 %v2121
        %v2124 = vmul.u32.u64.compose %v2120, %v2115
        %v2125 = vextract.low.u32 %v2124
        %v2126 = vextract.high.u32 %v2124
        %v2127 = vmul.u32 %v2120, %v2111
        %v2128 = vadd.s32 %v2123, %v2125
        %vm2129 = vc.u32 %v2123, %v2125
        %v2130 = vadd.s32 %v2126, 1
        %v2131 = vsel %vm2129, %v2130, %v2126
        %v2132 = vadd.s32 %v2127, %v2131
        %v2133 = vadd.s32 %v2132, 536870912
        %v2134 = vshrl.u32 %v2133, 30
        %v2135 = vshll.u32 %v2134, 30
        %v2136 = vsub.s32 %v2132, %v2135
        %vm2137 = vcmp.lt.s32.totalorder %v2136, 0
        %v2138 = vsub.s32 0, %v2136
        %v2139 = vsel %vm2137, %v2138, %v2136
        %v2140 = vclz %v2139
        %v2141 = vsub.s32 %v2140, 2
        %vm2142 = vcmp.gt.s32.totalorder 0, %v2141
        %v2143 = vsel %vm2142, 0, %v2141
        %v2144 = vsub.s32 32, %v2143
        %v2145 = vshll.u32 %v2136, %v2143
        %v2146 = vshrl.u32 %v2128, %v2144
        %v2147 = vor.u32 %v2145, %v2146
        %v2148 = vsub.s32 4294967266, %v2143
        %v2149 = vadd.s32 %v2148, 127
        %v2150 = vshll.u32 %v2149, 23
        %v2151 = vor.u32 4788187, %v2150
        %v2152 = vand.u32 2147483647, %v2151
        %v2154 = vcvt.s32.f32 %v2147
        %v2155 = vmul.f32 %v2154, %v2152
        %v2156 = vxor.u32 %v2155, 2147483648
        %v2157 = vsel %vm2074, %v2156, %v2155
        %v2158 = vsub.s32 4, %v2134
        %v2159 = vsel %vm2074, %v2158, %v2134
        %v2160 = vsel %vm2073, %v273, %v2157
        %v2161 = vsel %vm2073, 0, %v2159
        %v2162 = vcosq.f32.pop %v2160
        %v2163 = vsinq.f32.pop %v2160
        %vm2164 = vweird.f32 %v273
        %v2165 = vadd.s32 %v2161, 3
        %v2166 = vand.u32 %v2165, 3
        %vm2167 = vcmp.lt.s32.totalorder %v2166, 2
        %vm2168 = vcmp.eq.s32.totalorder %v2166, 0
        %v2169 = vxor.u32 %v2163, 2147483648
        %v2170 = vsel %vm2168, %v2162, %v2169
        %vm2171 = vcmp.eq.s32.totalorder %v2166, 2
        %v2172 = vxor.u32 %v2162, 2147483648
        %v2173 = vsel %vm2171, %v2172, %v2163
        %v2174 = vsel %vm2167, %v2170, %v2173
        %v2175 = vsel %vm2164, nan, %v2174
        %v2176 = vand.u32 2147483647, %v275
        %vm2177 = vcmp.le.f32.partialorder %v2176, 0.7853982
        %vm2178 = vcmp.lt.s32.totalorder %v275, 0
        %v2179 = vand.u32 %v275, 2139095040
        %v2180 = vshrl.u32 %v2179, 23
        %v2181 = vsub.s32 %v2180, 127
        %v2182 = vand.u32 2147483647, %v275
        %v2183 = vand.u32 %v2182, 8388607
        %v2184 = vor.u32 %v2183, 8388608
        %v2185 = vsub.s32 0, %v2184
        %v2186 = vadd.s32 %v2181, 1
        %vm2187 = vcmp.gt.s32.totalorder %v2186, 0
        %v2188 = vsel %vm2187, %v2186, 0
        %v2189 = vshrl.u32 %v2188, 5
        %v2190 = vand.u32 %v2188, 31
        %v2191 = vsub.s32 32, %v2190
        %v2192 = vshrl.u32 683565275, %v2191
        %v2193 = vshll.u32 683565275, %v2190
        %v2194 = vshrl.u32 2475754826, %v2191
        %v2195 = vor.u32 %v2193, %v2194
        %v2196 = vshll.u32 2475754826, %v2190
        %v2197 = vshrl.u32 2131351028, %v2191
        %v2198 = vor.u32 %v2196, %v2197
        %v2199 = vshll.u32 2131351028, %v2190
        %v2200 = vshrl.u32 2102212464, %v2191
        %v2201 = vor.u32 %v2199, %v2200
        %v2202 = vshll.u32 2102212464, %v2190
        %v2203 = vshrl.u32 920167782, %v2191
        %v2204 = vor.u32 %v2202, %v2203
        %v2205 = vshll.u32 920167782, %v2190
        %v2206 = vshrl.u32 1326507024, %v2191
        %v2207 = vor.u32 %v2205, %v2206
        %vm2208 = vcmp.lt.s32.totalorder %v2189, 1
        %vm2209 = vcmp.lt.s32.totalorder %v2189, 2
        %vm2210 = vcmp.lt.s32.totalorder %v2189, 3
        %vm2211 = vcmp.lt.s32.totalorder %v2189, 4
        %v2212 = vsel %vm2208, %v2192, %v2195
        %v2213 = vsel %vm2211, %v2201, 2102212464
        %v2214 = vsel %vm2210, %v2198, %v2213
        %v2215 = vsel %vm2209, %v2212, %v2214
        %v2216 = vsel %vm2208, %v2195, %v2198
        %v2217 = vsel %vm2211, %v2204, 920167782
        %v2218 = vsel %vm2210, %v2201, %v2217
        %v2219 = vsel %vm2209, %v2216, %v2218
        %v2220 = vsel %vm2208, %v2198, %v2201
        %v2221 = vsel %vm2211, %v2207, 1326507024
        %v2222 = vsel %vm2210, %v2204, %v2221
        %v2223 = vsel %vm2209, %v2220, %v2222
        %v2224 = vshll.u32 %v2184, 8
        %v2225 = vmul.u32.u64.compose %v2224, %v2223
        %v2226 = vextract.low.u32 %v2225
        %v2227 = vextract.high.u32 %v2225
        %v2228 = vmul.u32.u64.compose %v2224, %v2219
        %v2229 = vextract.low.u32 %v2228
        %v2230 = vextract.high.u32 %v2228
        %v2231 = vmul.u32 %v2224, %v2215
        %v2232 = vadd.s32 %v2227, %v2229
        %vm2233 = vc.u32 %v2227, %v2229
        %v2234 = vadd.s32 %v2230, 1
        %v2235 = vsel %vm2233, %v2234, %v2230
        %v2236 = vadd.s32 %v2231, %v2235
        %v2237 = vadd.s32 %v2236, 536870912
        %v2238 = vshrl.u32 %v2237, 30
        %v2239 = vshll.u32 %v2238, 30
        %v2240 = vsub.s32 %v2236, %v2239
        %vm2241 = vcmp.lt.s32.totalorder %v2240, 0
        %v2242 = vsub.s32 0, %v2240
        %v2243 = vsel %vm2241, %v2242, %v2240
        %v2244 = vclz %v2243
        %v2245 = vsub.s32 %v2244, 2
        %vm2246 = vcmp.gt.s32.totalorder 0, %v2245
        %v2247 = vsel %vm2246, 0, %v2245
        %v2248 = vsub.s32 32, %v2247
        %v2249 = vshll.u32 %v2240, %v2247
        %v2250 = vshrl.u32 %v2232, %v2248
        %v2251 = vor.u32 %v2249, %v2250
        %v2252 = vsub.s32 4294967266, %v2247
        %v2253 = vadd.s32 %v2252, 127
        %v2254 = vshll.u32 %v2253, 23
        %v2255 = vor.u32 4788187, %v2254
        %v2256 = vand.u32 2147483647, %v2255
        %v2258 = vcvt.s32.f32 %v2251
        %v2259 = vmul.f32 %v2258, %v2256
        %v2260 = vxor.u32 %v2259, 2147483648
        %v2261 = vsel %vm2178, %v2260, %v2259
        %v2262 = vsub.s32 4, %v2238
        %v2263 = vsel %vm2178, %v2262, %v2238
        %v2264 = vsel %vm2177, %v275, %v2261
        %v2265 = vsel %vm2177, 0, %v2263
        %v2266 = vcosq.f32.pop %v2264
        %v2267 = vsinq.f32.pop %v2264
        %vm2268 = vweird.f32 %v275
        %v2269 = vadd.s32 %v2265, 3
        %v2270 = vand.u32 %v2269, 3
        %vm2271 = vcmp.lt.s32.totalorder %v2270, 2
        %vm2272 = vcmp.eq.s32.totalorder %v2270, 0
        %v2273 = vxor.u32 %v2267, 2147483648
        %v2274 = vsel %vm2272, %v2266, %v2273
        %vm2275 = vcmp.eq.s32.totalorder %v2270, 2
        %v2276 = vxor.u32 %v2266, 2147483648
        %v2277 = vsel %vm2275, %v2276, %v2267
        %v2278 = vsel %vm2271, %v2274, %v2277
        %v2279 = vsel %vm2268, nan, %v2278
        %v2280 = vand.u32 2147483647, %v386
        %vm2281 = vcmp.le.f32.partialorder %v2280, 0.7853982
        %vm2282 = vcmp.lt.s32.totalorder %v386, 0
        %v2283 = vand.u32 %v386, 2139095040
        %v2284 = vshrl.u32 %v2283, 23
        %v2285 = vsub.s32 %v2284, 127
        %v2286 = vand.u32 2147483647, %v386
        %v2287 = vand.u32 %v2286, 8388607
        %v2288 = vor.u32 %v2287, 8388608
        %v2289 = vsub.s32 0, %v2288
        %v2290 = vadd.s32 %v2285, 1
        %vm2291 = vcmp.gt.s32.totalorder %v2290, 0
        %v2292 = vsel %vm2291, %v2290, 0
        %v2293 = vshrl.u32 %v2292, 5
        %v2294 = vand.u32 %v2292, 31
        %v2295 = vsub.s32 32, %v2294
        %v2296 = vshrl.u32 683565275, %v2295
        %v2297 = vshll.u32 683565275, %v2294
        %v2298 = vshrl.u32 2475754826, %v2295
        %v2299 = vor.u32 %v2297, %v2298
        %v2300 = vshll.u32 2475754826, %v2294
        %v2301 = vshrl.u32 2131351028, %v2295
        %v2302 = vor.u32 %v2300, %v2301
        %v2303 = vshll.u32 2131351028, %v2294
        %v2304 = vshrl.u32 2102212464, %v2295
        %v2305 = vor.u32 %v2303, %v2304
        %v2306 = vshll.u32 2102212464, %v2294
        %v2307 = vshrl.u32 920167782, %v2295
        %v2308 = vor.u32 %v2306, %v2307
        %v2309 = vshll.u32 920167782, %v2294
        %v2310 = vshrl.u32 1326507024, %v2295
        %v2311 = vor.u32 %v2309, %v2310
        %vm2312 = vcmp.lt.s32.totalorder %v2293, 1
        %vm2313 = vcmp.lt.s32.totalorder %v2293, 2
        %vm2314 = vcmp.lt.s32.totalorder %v2293, 3
        %vm2315 = vcmp.lt.s32.totalorder %v2293, 4
        %v2316 = vsel %vm2312, %v2296, %v2299
        %v2317 = vsel %vm2315, %v2305, 2102212464
        %v2318 = vsel %vm2314, %v2302, %v2317
        %v2319 = vsel %vm2313, %v2316, %v2318
        %v2320 = vsel %vm2312, %v2299, %v2302
        %v2321 = vsel %vm2315, %v2308, 920167782
        %v2322 = vsel %vm2314, %v2305, %v2321
        %v2323 = vsel %vm2313, %v2320, %v2322
        %v2324 = vsel %vm2312, %v2302, %v2305
        %v2325 = vsel %vm2315, %v2311, 1326507024
        %v2326 = vsel %vm2314, %v2308, %v2325
        %v2327 = vsel %vm2313, %v2324, %v2326
        %v2328 = vshll.u32 %v2288, 8
        %v2329 = vmul.u32.u64.compose %v2328, %v2327
        %v2330 = vextract.low.u32 %v2329
        %v2331 = vextract.high.u32 %v2329
        %v2332 = vmul.u32.u64.compose %v2328, %v2323
        %v2333 = vextract.low.u32 %v2332
        %v2334 = vextract.high.u32 %v2332
        %v2335 = vmul.u32 %v2328, %v2319
        %v2336 = vadd.s32 %v2331, %v2333
        %vm2337 = vc.u32 %v2331, %v2333
        %v2338 = vadd.s32 %v2334, 1
        %v2339 = vsel %vm2337, %v2338, %v2334
        %v2340 = vadd.s32 %v2335, %v2339
        %v2341 = vadd.s32 %v2340, 536870912
        %v2342 = vshrl.u32 %v2341, 30
        %v2343 = vshll.u32 %v2342, 30
        %v2344 = vsub.s32 %v2340, %v2343
        %vm2345 = vcmp.lt.s32.totalorder %v2344, 0
        %v2346 = vsub.s32 0, %v2344
        %v2347 = vsel %vm2345, %v2346, %v2344
        %v2348 = vclz %v2347
        %v2349 = vsub.s32 %v2348, 2
        %vm2350 = vcmp.gt.s32.totalorder 0, %v2349
        %v2351 = vsel %vm2350, 0, %v2349
        %v2352 = vsub.s32 32, %v2351
        %v2353 = vshll.u32 %v2344, %v2351
        %v2354 = vshrl.u32 %v2336, %v2352
        %v2355 = vor.u32 %v2353, %v2354
        %v2356 = vsub.s32 4294967266, %v2351
        %v2357 = vadd.s32 %v2356, 127
        %v2358 = vshll.u32 %v2357, 23
        %v2359 = vor.u32 4788187, %v2358
        %v2360 = vand.u32 2147483647, %v2359
        %v2362 = vcvt.s32.f32 %v2355
        %v2363 = vmul.f32 %v2362, %v2360
        %v2364 = vxor.u32 %v2363, 2147483648
        %v2365 = vsel %vm2282, %v2364, %v2363
        %v2366 = vsub.s32 4, %v2342
        %v2367 = vsel %vm2282, %v2366, %v2342
        %v2368 = vsel %vm2281, %v386, %v2365
        %v2369 = vsel %vm2281, 0, %v2367
        %v2370 = vcosq.f32.pop %v2368
        %v2371 = vsinq.f32.pop %v2368
        %vm2372 = vweird.f32 %v386
        %v2373 = vadd.s32 %v2369, 3
        %v2374 = vand.u32 %v2373, 3
        %vm2375 = vcmp.lt.s32.totalorder %v2374, 2
        %vm2376 = vcmp.eq.s32.totalorder %v2374, 0
        %v2377 = vxor.u32 %v2371, 2147483648
        %v2378 = vsel %vm2376, %v2370, %v2377
        %vm2379 = vcmp.eq.s32.totalorder %v2374, 2
        %v2380 = vxor.u32 %v2370, 2147483648
        %v2381 = vsel %vm2379, %v2380, %v2371
        %v2382 = vsel %vm2375, %v2378, %v2381
        %v2383 = vsel %vm2372, nan, %v2382
        %v2384 = vand.u32 2147483647, %v388
        %vm2385 = vcmp.le.f32.partialorder %v2384, 0.7853982
        %vm2386 = vcmp.lt.s32.totalorder %v388, 0
        %v2387 = vand.u32 %v388, 2139095040
        %v2388 = vshrl.u32 %v2387, 23
        %v2389 = vsub.s32 %v2388, 127
        %v2390 = vand.u32 2147483647, %v388
        %v2391 = vand.u32 %v2390, 8388607
        %v2392 = vor.u32 %v2391, 8388608
        %v2393 = vsub.s32 0, %v2392
        %v2394 = vadd.s32 %v2389, 1
        %vm2395 = vcmp.gt.s32.totalorder %v2394, 0
        %v2396 = vsel %vm2395, %v2394, 0
        %v2397 = vshrl.u32 %v2396, 5
        %v2398 = vand.u32 %v2396, 31
        %v2399 = vsub.s32 32, %v2398
        %v2400 = vshrl.u32 683565275, %v2399
        %v2401 = vshll.u32 683565275, %v2398
        %v2402 = vshrl.u32 2475754826, %v2399
        %v2403 = vor.u32 %v2401, %v2402
        %v2404 = vshll.u32 2475754826, %v2398
        %v2405 = vshrl.u32 2131351028, %v2399
        %v2406 = vor.u32 %v2404, %v2405
        %v2407 = vshll.u32 2131351028, %v2398
        %v2408 = vshrl.u32 2102212464, %v2399
        %v2409 = vor.u32 %v2407, %v2408
        %v2410 = vshll.u32 2102212464, %v2398
        %v2411 = vshrl.u32 920167782, %v2399
        %v2412 = vor.u32 %v2410, %v2411
        %v2413 = vshll.u32 920167782, %v2398
        %v2414 = vshrl.u32 1326507024, %v2399
        %v2415 = vor.u32 %v2413, %v2414
        %vm2416 = vcmp.lt.s32.totalorder %v2397, 1
        %vm2417 = vcmp.lt.s32.totalorder %v2397, 2
        %vm2418 = vcmp.lt.s32.totalorder %v2397, 3
        %vm2419 = vcmp.lt.s32.totalorder %v2397, 4
        %v2420 = vsel %vm2416, %v2400, %v2403
        %v2421 = vsel %vm2419, %v2409, 2102212464
        %v2422 = vsel %vm2418, %v2406, %v2421
        %v2423 = vsel %vm2417, %v2420, %v2422
        %v2424 = vsel %vm2416, %v2403, %v2406
        %v2425 = vsel %vm2419, %v2412, 920167782
        %v2426 = vsel %vm2418, %v2409, %v2425
        %v2427 = vsel %vm2417, %v2424, %v2426
        %v2428 = vsel %vm2416, %v2406, %v2409
        %v2429 = vsel %vm2419, %v2415, 1326507024
        %v2430 = vsel %vm2418, %v2412, %v2429
        %v2431 = vsel %vm2417, %v2428, %v2430
        %v2432 = vshll.u32 %v2392, 8
        %v2433 = vmul.u32.u64.compose %v2432, %v2431
        %v2434 = vextract.low.u32 %v2433
        %v2435 = vextract.high.u32 %v2433
        %v2436 = vmul.u32.u64.compose %v2432, %v2427
        %v2437 = vextract.low.u32 %v2436
        %v2438 = vextract.high.u32 %v2436
        %v2439 = vmul.u32 %v2432, %v2423
        %v2440 = vadd.s32 %v2435, %v2437
        %vm2441 = vc.u32 %v2435, %v2437
        %v2442 = vadd.s32 %v2438, 1
        %v2443 = vsel %vm2441, %v2442, %v2438
        %v2444 = vadd.s32 %v2439, %v2443
        %v2445 = vadd.s32 %v2444, 536870912
        %v2446 = vshrl.u32 %v2445, 30
        %v2447 = vshll.u32 %v2446, 30
        %v2448 = vsub.s32 %v2444, %v2447
        %vm2449 = vcmp.lt.s32.totalorder %v2448, 0
        %v2450 = vsub.s32 0, %v2448
        %v2451 = vsel %vm2449, %v2450, %v2448
        %v2452 = vclz %v2451
        %v2453 = vsub.s32 %v2452, 2
        %vm2454 = vcmp.gt.s32.totalorder 0, %v2453
        %v2455 = vsel %vm2454, 0, %v2453
        %v2456 = vsub.s32 32, %v2455
        %v2457 = vshll.u32 %v2448, %v2455
        %v2458 = vshrl.u32 %v2440, %v2456
        %v2459 = vor.u32 %v2457, %v2458
        %v2460 = vsub.s32 4294967266, %v2455
        %v2461 = vadd.s32 %v2460, 127
        %v2462 = vshll.u32 %v2461, 23
        %v2463 = vor.u32 4788187, %v2462
        %v2464 = vand.u32 2147483647, %v2463
        %v2466 = vcvt.s32.f32 %v2459
        %v2467 = vmul.f32 %v2466, %v2464
        %v2468 = vxor.u32 %v2467, 2147483648
        %v2469 = vsel %vm2386, %v2468, %v2467
        %v2470 = vsub.s32 4, %v2446
        %v2471 = vsel %vm2386, %v2470, %v2446
        %v2472 = vsel %vm2385, %v388, %v2469
        %v2473 = vsel %vm2385, 0, %v2471
        %v2474 = vcosq.f32.pop %v2472
        %v2475 = vsinq.f32.pop %v2472
        %vm2476 = vweird.f32 %v388
        %v2477 = vadd.s32 %v2473, 3
        %v2478 = vand.u32 %v2477, 3
        %vm2479 = vcmp.lt.s32.totalorder %v2478, 2
        %vm2480 = vcmp.eq.s32.totalorder %v2478, 0
        %v2481 = vxor.u32 %v2475, 2147483648
        %v2482 = vsel %vm2480, %v2474, %v2481
        %vm2483 = vcmp.eq.s32.totalorder %v2478, 2
        %v2484 = vxor.u32 %v2474, 2147483648
        %v2485 = vsel %vm2483, %v2484, %v2475
        %v2486 = vsel %vm2479, %v2482, %v2485
        %v2487 = vsel %vm2476, nan, %v2486
        %v2488 = vand.u32 2147483647, %v279
        %vm2489 = vcmp.le.f32.partialorder %v2488, 0.7853982
        %vm2490 = vcmp.lt.s32.totalorder %v279, 0
        %v2491 = vand.u32 %v279, 2139095040
        %v2492 = vshrl.u32 %v2491, 23
        %v2493 = vsub.s32 %v2492, 127
        %v2494 = vand.u32 2147483647, %v279
        %v2495 = vand.u32 %v2494, 8388607
        %v2496 = vor.u32 %v2495, 8388608
        %v2497 = vsub.s32 0, %v2496
        %v2498 = vadd.s32 %v2493, 1
        %vm2499 = vcmp.gt.s32.totalorder %v2498, 0
        %v2500 = vsel %vm2499, %v2498, 0
        %v2501 = vshrl.u32 %v2500, 5
        %v2502 = vand.u32 %v2500, 31
        %v2503 = vsub.s32 32, %v2502
        %v2504 = vshrl.u32 683565275, %v2503
        %v2505 = vshll.u32 683565275, %v2502
        %v2506 = vshrl.u32 2475754826, %v2503
        %v2507 = vor.u32 %v2505, %v2506
        %v2508 = vshll.u32 2475754826, %v2502
        %v2509 = vshrl.u32 2131351028, %v2503
        %v2510 = vor.u32 %v2508, %v2509
        %v2511 = vshll.u32 2131351028, %v2502
        %v2512 = vshrl.u32 2102212464, %v2503
        %v2513 = vor.u32 %v2511, %v2512
        %v2514 = vshll.u32 2102212464, %v2502
        %v2515 = vshrl.u32 920167782, %v2503
        %v2516 = vor.u32 %v2514, %v2515
        %v2517 = vshll.u32 920167782, %v2502
        %v2518 = vshrl.u32 1326507024, %v2503
        %v2519 = vor.u32 %v2517, %v2518
        %vm2520 = vcmp.lt.s32.totalorder %v2501, 1
        %vm2521 = vcmp.lt.s32.totalorder %v2501, 2
        %vm2522 = vcmp.lt.s32.totalorder %v2501, 3
        %vm2523 = vcmp.lt.s32.totalorder %v2501, 4
        %v2524 = vsel %vm2520, %v2504, %v2507
        %v2525 = vsel %vm2523, %v2513, 2102212464
        %v2526 = vsel %vm2522, %v2510, %v2525
        %v2527 = vsel %vm2521, %v2524, %v2526
        %v2528 = vsel %vm2520, %v2507, %v2510
        %v2529 = vsel %vm2523, %v2516, 920167782
        %v2530 = vsel %vm2522, %v2513, %v2529
        %v2531 = vsel %vm2521, %v2528, %v2530
        %v2532 = vsel %vm2520, %v2510, %v2513
        %v2533 = vsel %vm2523, %v2519, 1326507024
        %v2534 = vsel %vm2522, %v2516, %v2533
        %v2535 = vsel %vm2521, %v2532, %v2534
        %v2536 = vshll.u32 %v2496, 8
        %v2537 = vmul.u32.u64.compose %v2536, %v2535
        %v2538 = vextract.low.u32 %v2537
        %v2539 = vextract.high.u32 %v2537
        %v2540 = vmul.u32.u64.compose %v2536, %v2531
        %v2541 = vextract.low.u32 %v2540
        %v2542 = vextract.high.u32 %v2540
        %v2543 = vmul.u32 %v2536, %v2527
        %v2544 = vadd.s32 %v2539, %v2541
        %vm2545 = vc.u32 %v2539, %v2541
        %v2546 = vadd.s32 %v2542, 1
        %v2547 = vsel %vm2545, %v2546, %v2542
        %v2548 = vadd.s32 %v2543, %v2547
        %v2549 = vadd.s32 %v2548, 536870912
        %v2550 = vshrl.u32 %v2549, 30
        %v2551 = vshll.u32 %v2550, 30
        %v2552 = vsub.s32 %v2548, %v2551
        %vm2553 = vcmp.lt.s32.totalorder %v2552, 0
        %v2554 = vsub.s32 0, %v2552
        %v2555 = vsel %vm2553, %v2554, %v2552
        %v2556 = vclz %v2555
        %v2557 = vsub.s32 %v2556, 2
        %vm2558 = vcmp.gt.s32.totalorder 0, %v2557
        %v2559 = vsel %vm2558, 0, %v2557
        %v2560 = vsub.s32 32, %v2559
        %v2561 = vshll.u32 %v2552, %v2559
        %v2562 = vshrl.u32 %v2544, %v2560
        %v2563 = vor.u32 %v2561, %v2562
        %v2564 = vsub.s32 4294967266, %v2559
        %v2565 = vadd.s32 %v2564, 127
        %v2566 = vshll.u32 %v2565, 23
        %v2567 = vor.u32 4788187, %v2566
        %v2568 = vand.u32 2147483647, %v2567
        %v2570 = vcvt.s32.f32 %v2563
        %v2571 = vmul.f32 %v2570, %v2568
        %v2572 = vxor.u32 %v2571, 2147483648
        %v2573 = vsel %vm2490, %v2572, %v2571
        %v2574 = vsub.s32 4, %v2550
        %v2575 = vsel %vm2490, %v2574, %v2550
        %v2576 = vsel %vm2489, %v279, %v2573
        %v2577 = vsel %vm2489, 0, %v2575
        %v2578 = vcosq.f32.pop %v2576
        %v2579 = vsinq.f32.pop %v2576
        %vm2580 = vweird.f32 %v279
        %v2581 = vadd.s32 %v2577, 3
        %v2582 = vand.u32 %v2581, 3
        %vm2583 = vcmp.lt.s32.totalorder %v2582, 2
        %vm2584 = vcmp.eq.s32.totalorder %v2582, 0
        %v2585 = vxor.u32 %v2579, 2147483648
        %v2586 = vsel %vm2584, %v2578, %v2585
        %vm2587 = vcmp.eq.s32.totalorder %v2582, 2
        %v2588 = vxor.u32 %v2578, 2147483648
        %v2589 = vsel %vm2587, %v2588, %v2579
        %v2590 = vsel %vm2583, %v2586, %v2589
        %v2591 = vsel %vm2580, nan, %v2590
        %v2592 = vand.u32 2147483647, %v281
        %vm2593 = vcmp.le.f32.partialorder %v2592, 0.7853982
        %vm2594 = vcmp.lt.s32.totalorder %v281, 0
        %v2595 = vand.u32 %v281, 2139095040
        %v2596 = vshrl.u32 %v2595, 23
        %v2597 = vsub.s32 %v2596, 127
        %v2598 = vand.u32 2147483647, %v281
        %v2599 = vand.u32 %v2598, 8388607
        %v2600 = vor.u32 %v2599, 8388608
        %v2601 = vsub.s32 0, %v2600
        %v2602 = vadd.s32 %v2597, 1
        %vm2603 = vcmp.gt.s32.totalorder %v2602, 0
        %v2604 = vsel %vm2603, %v2602, 0
        %v2605 = vshrl.u32 %v2604, 5
        %v2606 = vand.u32 %v2604, 31
        %v2607 = vsub.s32 32, %v2606
        %v2608 = vshrl.u32 683565275, %v2607
        %v2609 = vshll.u32 683565275, %v2606
        %v2610 = vshrl.u32 2475754826, %v2607
        %v2611 = vor.u32 %v2609, %v2610
        %v2612 = vshll.u32 2475754826, %v2606
        %v2613 = vshrl.u32 2131351028, %v2607
        %v2614 = vor.u32 %v2612, %v2613
        %v2615 = vshll.u32 2131351028, %v2606
        %v2616 = vshrl.u32 2102212464, %v2607
        %v2617 = vor.u32 %v2615, %v2616
        %v2618 = vshll.u32 2102212464, %v2606
        %v2619 = vshrl.u32 920167782, %v2607
        %v2620 = vor.u32 %v2618, %v2619
        %v2621 = vshll.u32 920167782, %v2606
        %v2622 = vshrl.u32 1326507024, %v2607
        %v2623 = vor.u32 %v2621, %v2622
        %vm2624 = vcmp.lt.s32.totalorder %v2605, 1
        %vm2625 = vcmp.lt.s32.totalorder %v2605, 2
        %vm2626 = vcmp.lt.s32.totalorder %v2605, 3
        %vm2627 = vcmp.lt.s32.totalorder %v2605, 4
        %v2628 = vsel %vm2624, %v2608, %v2611
        %v2629 = vsel %vm2627, %v2617, 2102212464
        %v2630 = vsel %vm2626, %v2614, %v2629
        %v2631 = vsel %vm2625, %v2628, %v2630
        %v2632 = vsel %vm2624, %v2611, %v2614
        %v2633 = vsel %vm2627, %v2620, 920167782
        %v2634 = vsel %vm2626, %v2617, %v2633
        %v2635 = vsel %vm2625, %v2632, %v2634
        %v2636 = vsel %vm2624, %v2614, %v2617
        %v2637 = vsel %vm2627, %v2623, 1326507024
        %v2638 = vsel %vm2626, %v2620, %v2637
        %v2639 = vsel %vm2625, %v2636, %v2638
        %v2640 = vshll.u32 %v2600, 8
        %v2641 = vmul.u32.u64.compose %v2640, %v2639
        %v2642 = vextract.low.u32 %v2641
        %v2643 = vextract.high.u32 %v2641
        %v2644 = vmul.u32.u64.compose %v2640, %v2635
        %v2645 = vextract.low.u32 %v2644
        %v2646 = vextract.high.u32 %v2644
        %v2647 = vmul.u32 %v2640, %v2631
        %v2648 = vadd.s32 %v2643, %v2645
        %vm2649 = vc.u32 %v2643, %v2645
        %v2650 = vadd.s32 %v2646, 1
        %v2651 = vsel %vm2649, %v2650, %v2646
        %v2652 = vadd.s32 %v2647, %v2651
        %v2653 = vadd.s32 %v2652, 536870912
        %v2654 = vshrl.u32 %v2653, 30
        %v2655 = vshll.u32 %v2654, 30
        %v2656 = vsub.s32 %v2652, %v2655
        %vm2657 = vcmp.lt.s32.totalorder %v2656, 0
        %v2658 = vsub.s32 0, %v2656
        %v2659 = vsel %vm2657, %v2658, %v2656
        %v2660 = vclz %v2659
        %v2661 = vsub.s32 %v2660, 2
        %vm2662 = vcmp.gt.s32.totalorder 0, %v2661
        %v2663 = vsel %vm2662, 0, %v2661
        %v2664 = vsub.s32 32, %v2663
        %v2665 = vshll.u32 %v2656, %v2663
        %v2666 = vshrl.u32 %v2648, %v2664
        %v2667 = vor.u32 %v2665, %v2666
        %v2668 = vsub.s32 4294967266, %v2663
        %v2669 = vadd.s32 %v2668, 127
        %v2670 = vshll.u32 %v2669, 23
        %v2671 = vor.u32 4788187, %v2670
        %v2672 = vand.u32 2147483647, %v2671
        %v2674 = vcvt.s32.f32 %v2667
        %v2675 = vmul.f32 %v2674, %v2672
        %v2676 = vxor.u32 %v2675, 2147483648
        %v2677 = vsel %vm2594, %v2676, %v2675
        %v2678 = vsub.s32 4, %v2654
        %v2679 = vsel %vm2594, %v2678, %v2654
        %v2680 = vsel %vm2593, %v281, %v2677
        %v2681 = vsel %vm2593, 0, %v2679
        %v2682 = vcosq.f32.pop %v2680
        %v2683 = vsinq.f32.pop %v2680
        %vm2684 = vweird.f32 %v281
        %v2685 = vadd.s32 %v2681, 3
        %v2686 = vand.u32 %v2685, 3
        %vm2687 = vcmp.lt.s32.totalorder %v2686, 2
        %vm2688 = vcmp.eq.s32.totalorder %v2686, 0
        %v2689 = vxor.u32 %v2683, 2147483648
        %v2690 = vsel %vm2688, %v2682, %v2689
        %vm2691 = vcmp.eq.s32.totalorder %v2686, 2
        %v2692 = vxor.u32 %v2682, 2147483648
        %v2693 = vsel %vm2691, %v2692, %v2683
        %v2694 = vsel %vm2687, %v2690, %v2693
        %v2695 = vsel %vm2684, nan, %v2694
        %v2696 = vand.u32 2147483647, %v392
        %vm2697 = vcmp.le.f32.partialorder %v2696, 0.7853982
        %vm2698 = vcmp.lt.s32.totalorder %v392, 0
        %v2699 = vand.u32 %v392, 2139095040
        %v2700 = vshrl.u32 %v2699, 23
        %v2701 = vsub.s32 %v2700, 127
        %v2702 = vand.u32 2147483647, %v392
        %v2703 = vand.u32 %v2702, 8388607
        %v2704 = vor.u32 %v2703, 8388608
        %v2705 = vsub.s32 0, %v2704
        %v2706 = vadd.s32 %v2701, 1
        %vm2707 = vcmp.gt.s32.totalorder %v2706, 0
        %v2708 = vsel %vm2707, %v2706, 0
        %v2709 = vshrl.u32 %v2708, 5
        %v2710 = vand.u32 %v2708, 31
        %v2711 = vsub.s32 32, %v2710
        %v2712 = vshrl.u32 683565275, %v2711
        %v2713 = vshll.u32 683565275, %v2710
        %v2714 = vshrl.u32 2475754826, %v2711
        %v2715 = vor.u32 %v2713, %v2714
        %v2716 = vshll.u32 2475754826, %v2710
        %v2717 = vshrl.u32 2131351028, %v2711
        %v2718 = vor.u32 %v2716, %v2717
        %v2719 = vshll.u32 2131351028, %v2710
        %v2720 = vshrl.u32 2102212464, %v2711
        %v2721 = vor.u32 %v2719, %v2720
        %v2722 = vshll.u32 2102212464, %v2710
        %v2723 = vshrl.u32 920167782, %v2711
        %v2724 = vor.u32 %v2722, %v2723
        %v2725 = vshll.u32 920167782, %v2710
        %v2726 = vshrl.u32 1326507024, %v2711
        %v2727 = vor.u32 %v2725, %v2726
        %vm2728 = vcmp.lt.s32.totalorder %v2709, 1
        %vm2729 = vcmp.lt.s32.totalorder %v2709, 2
        %vm2730 = vcmp.lt.s32.totalorder %v2709, 3
        %vm2731 = vcmp.lt.s32.totalorder %v2709, 4
        %v2732 = vsel %vm2728, %v2712, %v2715
        %v2733 = vsel %vm2731, %v2721, 2102212464
        %v2734 = vsel %vm2730, %v2718, %v2733
        %v2735 = vsel %vm2729, %v2732, %v2734
        %v2736 = vsel %vm2728, %v2715, %v2718
        %v2737 = vsel %vm2731, %v2724, 920167782
        %v2738 = vsel %vm2730, %v2721, %v2737
        %v2739 = vsel %vm2729, %v2736, %v2738
        %v2740 = vsel %vm2728, %v2718, %v2721
        %v2741 = vsel %vm2731, %v2727, 1326507024
        %v2742 = vsel %vm2730, %v2724, %v2741
        %v2743 = vsel %vm2729, %v2740, %v2742
        %v2744 = vshll.u32 %v2704, 8
        %v2745 = vmul.u32.u64.compose %v2744, %v2743
        %v2746 = vextract.low.u32 %v2745
        %v2747 = vextract.high.u32 %v2745
        %v2748 = vmul.u32.u64.compose %v2744, %v2739
        %v2749 = vextract.low.u32 %v2748
        %v2750 = vextract.high.u32 %v2748
        %v2751 = vmul.u32 %v2744, %v2735
        %v2752 = vadd.s32 %v2747, %v2749
        %vm2753 = vc.u32 %v2747, %v2749
        %v2754 = vadd.s32 %v2750, 1
        %v2755 = vsel %vm2753, %v2754, %v2750
        %v2756 = vadd.s32 %v2751, %v2755
        %v2757 = vadd.s32 %v2756, 536870912
        %v2758 = vshrl.u32 %v2757, 30
        %v2759 = vshll.u32 %v2758, 30
        %v2760 = vsub.s32 %v2756, %v2759
        %vm2761 = vcmp.lt.s32.totalorder %v2760, 0
        %v2762 = vsub.s32 0, %v2760
        %v2763 = vsel %vm2761, %v2762, %v2760
        %v2764 = vclz %v2763
        %v2765 = vsub.s32 %v2764, 2
        %vm2766 = vcmp.gt.s32.totalorder 0, %v2765
        %v2767 = vsel %vm2766, 0, %v2765
        %v2768 = vsub.s32 32, %v2767
        %v2769 = vshll.u32 %v2760, %v2767
        %v2770 = vshrl.u32 %v2752, %v2768
        %v2771 = vor.u32 %v2769, %v2770
        %v2772 = vsub.s32 4294967266, %v2767
        %v2773 = vadd.s32 %v2772, 127
        %v2774 = vshll.u32 %v2773, 23
        %v2775 = vor.u32 4788187, %v2774
        %v2776 = vand.u32 2147483647, %v2775
        %v2778 = vcvt.s32.f32 %v2771
        %v2779 = vmul.f32 %v2778, %v2776
        %v2780 = vxor.u32 %v2779, 2147483648
        %v2781 = vsel %vm2698, %v2780, %v2779
        %v2782 = vsub.s32 4, %v2758
        %v2783 = vsel %vm2698, %v2782, %v2758
        %v2784 = vsel %vm2697, %v392, %v2781
        %v2785 = vsel %vm2697, 0, %v2783
        %v2786 = vcosq.f32.pop %v2784
        %v2787 = vsinq.f32.pop %v2784
        %vm2788 = vweird.f32 %v392
        %v2789 = vadd.s32 %v2785, 3
        %v2790 = vand.u32 %v2789, 3
        %vm2791 = vcmp.lt.s32.totalorder %v2790, 2
        %vm2792 = vcmp.eq.s32.totalorder %v2790, 0
        %v2793 = vxor.u32 %v2787, 2147483648
        %v2794 = vsel %vm2792, %v2786, %v2793
        %vm2795 = vcmp.eq.s32.totalorder %v2790, 2
        %v2796 = vxor.u32 %v2786, 2147483648
        %v2797 = vsel %vm2795, %v2796, %v2787
        %v2798 = vsel %vm2791, %v2794, %v2797
        %v2799 = vsel %vm2788, nan, %v2798
        %v2800 = vand.u32 2147483647, %v394
        %vm2801 = vcmp.le.f32.partialorder %v2800, 0.7853982
        %vm2802 = vcmp.lt.s32.totalorder %v394, 0
        %v2803 = vand.u32 %v394, 2139095040
        %v2804 = vshrl.u32 %v2803, 23
        %v2805 = vsub.s32 %v2804, 127
        %v2806 = vand.u32 2147483647, %v394
        %v2807 = vand.u32 %v2806, 8388607
        %v2808 = vor.u32 %v2807, 8388608
        %v2809 = vsub.s32 0, %v2808
        %v2810 = vadd.s32 %v2805, 1
        %vm2811 = vcmp.gt.s32.totalorder %v2810, 0
        %v2812 = vsel %vm2811, %v2810, 0
        %v2813 = vshrl.u32 %v2812, 5
        %v2814 = vand.u32 %v2812, 31
        %v2815 = vsub.s32 32, %v2814
        %v2816 = vshrl.u32 683565275, %v2815
        %v2817 = vshll.u32 683565275, %v2814
        %v2818 = vshrl.u32 2475754826, %v2815
        %v2819 = vor.u32 %v2817, %v2818
        %v2820 = vshll.u32 2475754826, %v2814
        %v2821 = vshrl.u32 2131351028, %v2815
        %v2822 = vor.u32 %v2820, %v2821
        %v2823 = vshll.u32 2131351028, %v2814
        %v2824 = vshrl.u32 2102212464, %v2815
        %v2825 = vor.u32 %v2823, %v2824
        %v2826 = vshll.u32 2102212464, %v2814
        %v2827 = vshrl.u32 920167782, %v2815
        %v2828 = vor.u32 %v2826, %v2827
        %v2829 = vshll.u32 920167782, %v2814
        %v2830 = vshrl.u32 1326507024, %v2815
        %v2831 = vor.u32 %v2829, %v2830
        %vm2832 = vcmp.lt.s32.totalorder %v2813, 1
        %vm2833 = vcmp.lt.s32.totalorder %v2813, 2
        %vm2834 = vcmp.lt.s32.totalorder %v2813, 3
        %vm2835 = vcmp.lt.s32.totalorder %v2813, 4
        %v2836 = vsel %vm2832, %v2816, %v2819
        %v2837 = vsel %vm2835, %v2825, 2102212464
        %v2838 = vsel %vm2834, %v2822, %v2837
        %v2839 = vsel %vm2833, %v2836, %v2838
        %v2840 = vsel %vm2832, %v2819, %v2822
        %v2841 = vsel %vm2835, %v2828, 920167782
        %v2842 = vsel %vm2834, %v2825, %v2841
        %v2843 = vsel %vm2833, %v2840, %v2842
        %v2844 = vsel %vm2832, %v2822, %v2825
        %v2845 = vsel %vm2835, %v2831, 1326507024
        %v2846 = vsel %vm2834, %v2828, %v2845
        %v2847 = vsel %vm2833, %v2844, %v2846
        %v2848 = vshll.u32 %v2808, 8
        %v2849 = vmul.u32.u64.compose %v2848, %v2847
        %v2850 = vextract.low.u32 %v2849
        %v2851 = vextract.high.u32 %v2849
        %v2852 = vmul.u32.u64.compose %v2848, %v2843
        %v2853 = vextract.low.u32 %v2852
        %v2854 = vextract.high.u32 %v2852
        %v2855 = vmul.u32 %v2848, %v2839
        %v2856 = vadd.s32 %v2851, %v2853
        %vm2857 = vc.u32 %v2851, %v2853
        %v2858 = vadd.s32 %v2854, 1
        %v2859 = vsel %vm2857, %v2858, %v2854
        %v2860 = vadd.s32 %v2855, %v2859
        %v2861 = vadd.s32 %v2860, 536870912
        %v2862 = vshrl.u32 %v2861, 30
        %v2863 = vshll.u32 %v2862, 30
        %v2864 = vsub.s32 %v2860, %v2863
        %vm2865 = vcmp.lt.s32.totalorder %v2864, 0
        %v2866 = vsub.s32 0, %v2864
        %v2867 = vsel %vm2865, %v2866, %v2864
        %v2868 = vclz %v2867
        %v2869 = vsub.s32 %v2868, 2
        %vm2870 = vcmp.gt.s32.totalorder 0, %v2869
        %v2871 = vsel %vm2870, 0, %v2869
        %v2872 = vsub.s32 32, %v2871
        %v2873 = vshll.u32 %v2864, %v2871
        %v2874 = vshrl.u32 %v2856, %v2872
        %v2875 = vor.u32 %v2873, %v2874
        %v2876 = vsub.s32 4294967266, %v2871
        %v2877 = vadd.s32 %v2876, 127
        %v2878 = vshll.u32 %v2877, 23
        %v2879 = vor.u32 4788187, %v2878
        %v2880 = vand.u32 2147483647, %v2879
        %v2882 = vcvt.s32.f32 %v2875
        %v2883 = vmul.f32 %v2882, %v2880
        %v2884 = vxor.u32 %v2883, 2147483648
        %v2885 = vsel %vm2802, %v2884, %v2883
        %v2886 = vsub.s32 4, %v2862
        %v2887 = vsel %vm2802, %v2886, %v2862
        %v2888 = vsel %vm2801, %v394, %v2885
        %v2889 = vsel %vm2801, 0, %v2887
        %v2890 = vcosq.f32.pop %v2888
        %v2891 = vsinq.f32.pop %v2888
        %vm2892 = vweird.f32 %v394
        %v2893 = vadd.s32 %v2889, 3
        %v2894 = vand.u32 %v2893, 3
        %vm2895 = vcmp.lt.s32.totalorder %v2894, 2
        %vm2896 = vcmp.eq.s32.totalorder %v2894, 0
        %v2897 = vxor.u32 %v2891, 2147483648
        %v2898 = vsel %vm2896, %v2890, %v2897
        %vm2899 = vcmp.eq.s32.totalorder %v2894, 2
        %v2900 = vxor.u32 %v2890, 2147483648
        %v2901 = vsel %vm2899, %v2900, %v2891
        %v2902 = vsel %vm2895, %v2898, %v2901
        %v2903 = vsel %vm2892, nan, %v2902
        %v2904 = vand.u32 2147483647, %v285
        %vm2905 = vcmp.le.f32.partialorder %v2904, 0.7853982
        %vm2906 = vcmp.lt.s32.totalorder %v285, 0
        %v2907 = vand.u32 %v285, 2139095040
        %v2908 = vshrl.u32 %v2907, 23
        %v2909 = vsub.s32 %v2908, 127
        %v2910 = vand.u32 2147483647, %v285
        %v2911 = vand.u32 %v2910, 8388607
        %v2912 = vor.u32 %v2911, 8388608
        %v2913 = vsub.s32 0, %v2912
        %v2914 = vadd.s32 %v2909, 1
        %vm2915 = vcmp.gt.s32.totalorder %v2914, 0
        %v2916 = vsel %vm2915, %v2914, 0
        %v2917 = vshrl.u32 %v2916, 5
        %v2918 = vand.u32 %v2916, 31
        %v2919 = vsub.s32 32, %v2918
        %v2920 = vshrl.u32 683565275, %v2919
        %v2921 = vshll.u32 683565275, %v2918
        %v2922 = vshrl.u32 2475754826, %v2919
        %v2923 = vor.u32 %v2921, %v2922
        %v2924 = vshll.u32 2475754826, %v2918
        %v2925 = vshrl.u32 2131351028, %v2919
        %v2926 = vor.u32 %v2924, %v2925
        %v2927 = vshll.u32 2131351028, %v2918
        %v2928 = vshrl.u32 2102212464, %v2919
        %v2929 = vor.u32 %v2927, %v2928
        %v2930 = vshll.u32 2102212464, %v2918
        %v2931 = vshrl.u32 920167782, %v2919
        %v2932 = vor.u32 %v2930, %v2931
        %v2933 = vshll.u32 920167782, %v2918
        %v2934 = vshrl.u32 1326507024, %v2919
        %v2935 = vor.u32 %v2933, %v2934
        %vm2936 = vcmp.lt.s32.totalorder %v2917, 1
        %vm2937 = vcmp.lt.s32.totalorder %v2917, 2
        %vm2938 = vcmp.lt.s32.totalorder %v2917, 3
        %vm2939 = vcmp.lt.s32.totalorder %v2917, 4
        %v2940 = vsel %vm2936, %v2920, %v2923
        %v2941 = vsel %vm2939, %v2929, 2102212464
        %v2942 = vsel %vm2938, %v2926, %v2941
        %v2943 = vsel %vm2937, %v2940, %v2942
        %v2944 = vsel %vm2936, %v2923, %v2926
        %v2945 = vsel %vm2939, %v2932, 920167782
        %v2946 = vsel %vm2938, %v2929, %v2945
        %v2947 = vsel %vm2937, %v2944, %v2946
        %v2948 = vsel %vm2936, %v2926, %v2929
        %v2949 = vsel %vm2939, %v2935, 1326507024
        %v2950 = vsel %vm2938, %v2932, %v2949
        %v2951 = vsel %vm2937, %v2948, %v2950
        %v2952 = vshll.u32 %v2912, 8
        %v2953 = vmul.u32.u64.compose %v2952, %v2951
        %v2954 = vextract.low.u32 %v2953
        %v2955 = vextract.high.u32 %v2953
        %v2956 = vmul.u32.u64.compose %v2952, %v2947
        %v2957 = vextract.low.u32 %v2956
        %v2958 = vextract.high.u32 %v2956
        %v2959 = vmul.u32 %v2952, %v2943
        %v2960 = vadd.s32 %v2955, %v2957
        %vm2961 = vc.u32 %v2955, %v2957
        %v2962 = vadd.s32 %v2958, 1
        %v2963 = vsel %vm2961, %v2962, %v2958
        %v2964 = vadd.s32 %v2959, %v2963
        %v2965 = vadd.s32 %v2964, 536870912
        %v2966 = vshrl.u32 %v2965, 30
        %v2967 = vshll.u32 %v2966, 30
        %v2968 = vsub.s32 %v2964, %v2967
        %vm2969 = vcmp.lt.s32.totalorder %v2968, 0
        %v2970 = vsub.s32 0, %v2968
        %v2971 = vsel %vm2969, %v2970, %v2968
        %v2972 = vclz %v2971
        %v2973 = vsub.s32 %v2972, 2
        %vm2974 = vcmp.gt.s32.totalorder 0, %v2973
        %v2975 = vsel %vm2974, 0, %v2973
        %v2976 = vsub.s32 32, %v2975
        %v2977 = vshll.u32 %v2968, %v2975
        %v2978 = vshrl.u32 %v2960, %v2976
        %v2979 = vor.u32 %v2977, %v2978
        %v2980 = vsub.s32 4294967266, %v2975
        %v2981 = vadd.s32 %v2980, 127
        %v2982 = vshll.u32 %v2981, 23
        %v2983 = vor.u32 4788187, %v2982
        %v2984 = vand.u32 2147483647, %v2983
        %v2986 = vcvt.s32.f32 %v2979
        %v2987 = vmul.f32 %v2986, %v2984
        %v2988 = vxor.u32 %v2987, 2147483648
        %v2989 = vsel %vm2906, %v2988, %v2987
        %v2990 = vsub.s32 4, %v2966
        %v2991 = vsel %vm2906, %v2990, %v2966
        %v2992 = vsel %vm2905, %v285, %v2989
        %v2993 = vsel %vm2905, 0, %v2991
        %v2994 = vcosq.f32.pop %v2992
        %v2995 = vsinq.f32.pop %v2992
        %vm2996 = vweird.f32 %v285
        %v2997 = vadd.s32 %v2993, 3
        %v2998 = vand.u32 %v2997, 3
        %vm2999 = vcmp.lt.s32.totalorder %v2998, 2
        %vm3000 = vcmp.eq.s32.totalorder %v2998, 0
        %v3001 = vxor.u32 %v2995, 2147483648
        %v3002 = vsel %vm3000, %v2994, %v3001
        %vm3003 = vcmp.eq.s32.totalorder %v2998, 2
        %v3004 = vxor.u32 %v2994, 2147483648
        %v3005 = vsel %vm3003, %v3004, %v2995
        %v3006 = vsel %vm2999, %v3002, %v3005
        %v3007 = vsel %vm2996, nan, %v3006
        %v3008 = vand.u32 2147483647, %v287
        %vm3009 = vcmp.le.f32.partialorder %v3008, 0.7853982
        %vm3010 = vcmp.lt.s32.totalorder %v287, 0
        %v3011 = vand.u32 %v287, 2139095040
        %v3012 = vshrl.u32 %v3011, 23
        %v3013 = vsub.s32 %v3012, 127
        %v3014 = vand.u32 2147483647, %v287
        %v3015 = vand.u32 %v3014, 8388607
        %v3016 = vor.u32 %v3015, 8388608
        %v3017 = vsub.s32 0, %v3016
        %v3018 = vadd.s32 %v3013, 1
        %vm3019 = vcmp.gt.s32.totalorder %v3018, 0
        %v3020 = vsel %vm3019, %v3018, 0
        %v3021 = vshrl.u32 %v3020, 5
        %v3022 = vand.u32 %v3020, 31
        %v3023 = vsub.s32 32, %v3022
        %v3024 = vshrl.u32 683565275, %v3023
        %v3025 = vshll.u32 683565275, %v3022
        %v3026 = vshrl.u32 2475754826, %v3023
        %v3027 = vor.u32 %v3025, %v3026
        %v3028 = vshll.u32 2475754826, %v3022
        %v3029 = vshrl.u32 2131351028, %v3023
        %v3030 = vor.u32 %v3028, %v3029
        %v3031 = vshll.u32 2131351028, %v3022
        %v3032 = vshrl.u32 2102212464, %v3023
        %v3033 = vor.u32 %v3031, %v3032
        %v3034 = vshll.u32 2102212464, %v3022
        %v3035 = vshrl.u32 920167782, %v3023
        %v3036 = vor.u32 %v3034, %v3035
        %v3037 = vshll.u32 920167782, %v3022
        %v3038 = vshrl.u32 1326507024, %v3023
        %v3039 = vor.u32 %v3037, %v3038
        %vm3040 = vcmp.lt.s32.totalorder %v3021, 1
        %vm3041 = vcmp.lt.s32.totalorder %v3021, 2
        %vm3042 = vcmp.lt.s32.totalorder %v3021, 3
        %vm3043 = vcmp.lt.s32.totalorder %v3021, 4
        %v3044 = vsel %vm3040, %v3024, %v3027
        %v3045 = vsel %vm3043, %v3033, 2102212464
        %v3046 = vsel %vm3042, %v3030, %v3045
        %v3047 = vsel %vm3041, %v3044, %v3046
        %v3048 = vsel %vm3040, %v3027, %v3030
        %v3049 = vsel %vm3043, %v3036, 920167782
        %v3050 = vsel %vm3042, %v3033, %v3049
        %v3051 = vsel %vm3041, %v3048, %v3050
        %v3052 = vsel %vm3040, %v3030, %v3033
        %v3053 = vsel %vm3043, %v3039, 1326507024
        %v3054 = vsel %vm3042, %v3036, %v3053
        %v3055 = vsel %vm3041, %v3052, %v3054
        %v3056 = vshll.u32 %v3016, 8
        %v3057 = vmul.u32.u64.compose %v3056, %v3055
        %v3058 = vextract.low.u32 %v3057
        %v3059 = vextract.high.u32 %v3057
        %v3060 = vmul.u32.u64.compose %v3056, %v3051
        %v3061 = vextract.low.u32 %v3060
        %v3062 = vextract.high.u32 %v3060
        %v3063 = vmul.u32 %v3056, %v3047
        %v3064 = vadd.s32 %v3059, %v3061
        %vm3065 = vc.u32 %v3059, %v3061
        %v3066 = vadd.s32 %v3062, 1
        %v3067 = vsel %vm3065, %v3066, %v3062
        %v3068 = vadd.s32 %v3063, %v3067
        %v3069 = vadd.s32 %v3068, 536870912
        %v3070 = vshrl.u32 %v3069, 30
        %v3071 = vshll.u32 %v3070, 30
        %v3072 = vsub.s32 %v3068, %v3071
        %vm3073 = vcmp.lt.s32.totalorder %v3072, 0
        %v3074 = vsub.s32 0, %v3072
        %v3075 = vsel %vm3073, %v3074, %v3072
        %v3076 = vclz %v3075
        %v3077 = vsub.s32 %v3076, 2
        %vm3078 = vcmp.gt.s32.totalorder 0, %v3077
        %v3079 = vsel %vm3078, 0, %v3077
        %v3080 = vsub.s32 32, %v3079
        %v3081 = vshll.u32 %v3072, %v3079
        %v3082 = vshrl.u32 %v3064, %v3080
        %v3083 = vor.u32 %v3081, %v3082
        %v3084 = vsub.s32 4294967266, %v3079
        %v3085 = vadd.s32 %v3084, 127
        %v3086 = vshll.u32 %v3085, 23
        %v3087 = vor.u32 4788187, %v3086
        %v3088 = vand.u32 2147483647, %v3087
        %v3090 = vcvt.s32.f32 %v3083
        %v3091 = vmul.f32 %v3090, %v3088
        %v3092 = vxor.u32 %v3091, 2147483648
        %v3093 = vsel %vm3010, %v3092, %v3091
        %v3094 = vsub.s32 4, %v3070
        %v3095 = vsel %vm3010, %v3094, %v3070
        %v3096 = vsel %vm3009, %v287, %v3093
        %v3097 = vsel %vm3009, 0, %v3095
        %v3098 = vcosq.f32.pop %v3096
        %v3099 = vsinq.f32.pop %v3096
        %vm3100 = vweird.f32 %v287
        %v3101 = vadd.s32 %v3097, 3
        %v3102 = vand.u32 %v3101, 3
        %vm3103 = vcmp.lt.s32.totalorder %v3102, 2
        %vm3104 = vcmp.eq.s32.totalorder %v3102, 0
        %v3105 = vxor.u32 %v3099, 2147483648
        %v3106 = vsel %vm3104, %v3098, %v3105
        %vm3107 = vcmp.eq.s32.totalorder %v3102, 2
        %v3108 = vxor.u32 %v3098, 2147483648
        %v3109 = vsel %vm3107, %v3108, %v3099
        %v3110 = vsel %vm3103, %v3106, %v3109
        %v3111 = vsel %vm3100, nan, %v3110
        %v3112 = vand.u32 2147483647, %v398
        %vm3113 = vcmp.le.f32.partialorder %v3112, 0.7853982
        %vm3114 = vcmp.lt.s32.totalorder %v398, 0
        %v3115 = vand.u32 %v398, 2139095040
        %v3116 = vshrl.u32 %v3115, 23
        %v3117 = vsub.s32 %v3116, 127
        %v3118 = vand.u32 2147483647, %v398
        %v3119 = vand.u32 %v3118, 8388607
        %v3120 = vor.u32 %v3119, 8388608
        %v3121 = vsub.s32 0, %v3120
        %v3122 = vadd.s32 %v3117, 1
        %vm3123 = vcmp.gt.s32.totalorder %v3122, 0
        %v3124 = vsel %vm3123, %v3122, 0
        %v3125 = vshrl.u32 %v3124, 5
        %v3126 = vand.u32 %v3124, 31
        %v3127 = vsub.s32 32, %v3126
        %v3128 = vshrl.u32 683565275, %v3127
        %v3129 = vshll.u32 683565275, %v3126
        %v3130 = vshrl.u32 2475754826, %v3127
        %v3131 = vor.u32 %v3129, %v3130
        %v3132 = vshll.u32 2475754826, %v3126
        %v3133 = vshrl.u32 2131351028, %v3127
        %v3134 = vor.u32 %v3132, %v3133
        %v3135 = vshll.u32 2131351028, %v3126
        %v3136 = vshrl.u32 2102212464, %v3127
        %v3137 = vor.u32 %v3135, %v3136
        %v3138 = vshll.u32 2102212464, %v3126
        %v3139 = vshrl.u32 920167782, %v3127
        %v3140 = vor.u32 %v3138, %v3139
        %v3141 = vshll.u32 920167782, %v3126
        %v3142 = vshrl.u32 1326507024, %v3127
        %v3143 = vor.u32 %v3141, %v3142
        %vm3144 = vcmp.lt.s32.totalorder %v3125, 1
        %vm3145 = vcmp.lt.s32.totalorder %v3125, 2
        %vm3146 = vcmp.lt.s32.totalorder %v3125, 3
        %vm3147 = vcmp.lt.s32.totalorder %v3125, 4
        %v3148 = vsel %vm3144, %v3128, %v3131
        %v3149 = vsel %vm3147, %v3137, 2102212464
        %v3150 = vsel %vm3146, %v3134, %v3149
        %v3151 = vsel %vm3145, %v3148, %v3150
        %v3152 = vsel %vm3144, %v3131, %v3134
        %v3153 = vsel %vm3147, %v3140, 920167782
        %v3154 = vsel %vm3146, %v3137, %v3153
        %v3155 = vsel %vm3145, %v3152, %v3154
        %v3156 = vsel %vm3144, %v3134, %v3137
        %v3157 = vsel %vm3147, %v3143, 1326507024
        %v3158 = vsel %vm3146, %v3140, %v3157
        %v3159 = vsel %vm3145, %v3156, %v3158
        %v3160 = vshll.u32 %v3120, 8
        %v3161 = vmul.u32.u64.compose %v3160, %v3159
        %v3162 = vextract.low.u32 %v3161
        %v3163 = vextract.high.u32 %v3161
        %v3164 = vmul.u32.u64.compose %v3160, %v3155
        %v3165 = vextract.low.u32 %v3164
        %v3166 = vextract.high.u32 %v3164
        %v3167 = vmul.u32 %v3160, %v3151
        %v3168 = vadd.s32 %v3163, %v3165
        %vm3169 = vc.u32 %v3163, %v3165
        %v3170 = vadd.s32 %v3166, 1
        %v3171 = vsel %vm3169, %v3170, %v3166
        %v3172 = vadd.s32 %v3167, %v3171
        %v3173 = vadd.s32 %v3172, 536870912
        %v3174 = vshrl.u32 %v3173, 30
        %v3175 = vshll.u32 %v3174, 30
        %v3176 = vsub.s32 %v3172, %v3175
        %vm3177 = vcmp.lt.s32.totalorder %v3176, 0
        %v3178 = vsub.s32 0, %v3176
        %v3179 = vsel %vm3177, %v3178, %v3176
        %v3180 = vclz %v3179
        %v3181 = vsub.s32 %v3180, 2
        %vm3182 = vcmp.gt.s32.totalorder 0, %v3181
        %v3183 = vsel %vm3182, 0, %v3181
        %v3184 = vsub.s32 32, %v3183
        %v3185 = vshll.u32 %v3176, %v3183
        %v3186 = vshrl.u32 %v3168, %v3184
        %v3187 = vor.u32 %v3185, %v3186
        %v3188 = vsub.s32 4294967266, %v3183
        %v3189 = vadd.s32 %v3188, 127
        %v3190 = vshll.u32 %v3189, 23
        %v3191 = vor.u32 4788187, %v3190
        %v3192 = vand.u32 2147483647, %v3191
        %v3194 = vcvt.s32.f32 %v3187
        %v3195 = vmul.f32 %v3194, %v3192
        %v3196 = vxor.u32 %v3195, 2147483648
        %v3197 = vsel %vm3114, %v3196, %v3195
        %v3198 = vsub.s32 4, %v3174
        %v3199 = vsel %vm3114, %v3198, %v3174
        %v3200 = vsel %vm3113, %v398, %v3197
        %v3201 = vsel %vm3113, 0, %v3199
        %v3202 = vcosq.f32.pop %v3200
        %v3203 = vsinq.f32.pop %v3200
        %vm3204 = vweird.f32 %v398
        %v3205 = vadd.s32 %v3201, 3
        %v3206 = vand.u32 %v3205, 3
        %vm3207 = vcmp.lt.s32.totalorder %v3206, 2
        %vm3208 = vcmp.eq.s32.totalorder %v3206, 0
        %v3209 = vxor.u32 %v3203, 2147483648
        %v3210 = vsel %vm3208, %v3202, %v3209
        %vm3211 = vcmp.eq.s32.totalorder %v3206, 2
        %v3212 = vxor.u32 %v3202, 2147483648
        %v3213 = vsel %vm3211, %v3212, %v3203
        %v3214 = vsel %vm3207, %v3210, %v3213
        %v3215 = vsel %vm3204, nan, %v3214
        %v3216 = vand.u32 2147483647, %v400
        %vm3217 = vcmp.le.f32.partialorder %v3216, 0.7853982
        %vm3218 = vcmp.lt.s32.totalorder %v400, 0
        %v3219 = vand.u32 %v400, 2139095040
        %v3220 = vshrl.u32 %v3219, 23
        %v3221 = vsub.s32 %v3220, 127
        %v3222 = vand.u32 2147483647, %v400
        %v3223 = vand.u32 %v3222, 8388607
        %v3224 = vor.u32 %v3223, 8388608
        %v3225 = vsub.s32 0, %v3224
        %v3226 = vadd.s32 %v3221, 1
        %vm3227 = vcmp.gt.s32.totalorder %v3226, 0
        %v3228 = vsel %vm3227, %v3226, 0
        %v3229 = vshrl.u32 %v3228, 5
        %v3230 = vand.u32 %v3228, 31
        %v3231 = vsub.s32 32, %v3230
        %v3232 = vshrl.u32 683565275, %v3231
        %v3233 = vshll.u32 683565275, %v3230
        %v3234 = vshrl.u32 2475754826, %v3231
        %v3235 = vor.u32 %v3233, %v3234
        %v3236 = vshll.u32 2475754826, %v3230
        %v3237 = vshrl.u32 2131351028, %v3231
        %v3238 = vor.u32 %v3236, %v3237
        %v3239 = vshll.u32 2131351028, %v3230
        %v3240 = vshrl.u32 2102212464, %v3231
        %v3241 = vor.u32 %v3239, %v3240
        %v3242 = vshll.u32 2102212464, %v3230
        %v3243 = vshrl.u32 920167782, %v3231
        %v3244 = vor.u32 %v3242, %v3243
        %v3245 = vshll.u32 920167782, %v3230
        %v3246 = vshrl.u32 1326507024, %v3231
        %v3247 = vor.u32 %v3245, %v3246
        %vm3248 = vcmp.lt.s32.totalorder %v3229, 1
        %vm3249 = vcmp.lt.s32.totalorder %v3229, 2
        %vm3250 = vcmp.lt.s32.totalorder %v3229, 3
        %vm3251 = vcmp.lt.s32.totalorder %v3229, 4
        %v3252 = vsel %vm3248, %v3232, %v3235
        %v3253 = vsel %vm3251, %v3241, 2102212464
        %v3254 = vsel %vm3250, %v3238, %v3253
        %v3255 = vsel %vm3249, %v3252, %v3254
        %v3256 = vsel %vm3248, %v3235, %v3238
        %v3257 = vsel %vm3251, %v3244, 920167782
        %v3258 = vsel %vm3250, %v3241, %v3257
        %v3259 = vsel %vm3249, %v3256, %v3258
        %v3260 = vsel %vm3248, %v3238, %v3241
        %v3261 = vsel %vm3251, %v3247, 1326507024
        %v3262 = vsel %vm3250, %v3244, %v3261
        %v3263 = vsel %vm3249, %v3260, %v3262
        %v3264 = vshll.u32 %v3224, 8
        %v3265 = vmul.u32.u64.compose %v3264, %v3263
        %v3266 = vextract.low.u32 %v3265
        %v3267 = vextract.high.u32 %v3265
        %v3268 = vmul.u32.u64.compose %v3264, %v3259
        %v3269 = vextract.low.u32 %v3268
        %v3270 = vextract.high.u32 %v3268
        %v3271 = vmul.u32 %v3264, %v3255
        %v3272 = vadd.s32 %v3267, %v3269
        %vm3273 = vc.u32 %v3267, %v3269
        %v3274 = vadd.s32 %v3270, 1
        %v3275 = vsel %vm3273, %v3274, %v3270
        %v3276 = vadd.s32 %v3271, %v3275
        %v3277 = vadd.s32 %v3276, 536870912
        %v3278 = vshrl.u32 %v3277, 30
        %v3279 = vshll.u32 %v3278, 30
        %v3280 = vsub.s32 %v3276, %v3279
        %vm3281 = vcmp.lt.s32.totalorder %v3280, 0
        %v3282 = vsub.s32 0, %v3280
        %v3283 = vsel %vm3281, %v3282, %v3280
        %v3284 = vclz %v3283
        %v3285 = vsub.s32 %v3284, 2
        %vm3286 = vcmp.gt.s32.totalorder 0, %v3285
        %v3287 = vsel %vm3286, 0, %v3285
        %v3288 = vsub.s32 32, %v3287
        %v3289 = vshll.u32 %v3280, %v3287
        %v3290 = vshrl.u32 %v3272, %v3288
        %v3291 = vor.u32 %v3289, %v3290
        %v3292 = vsub.s32 4294967266, %v3287
        %v3293 = vadd.s32 %v3292, 127
        %v3294 = vshll.u32 %v3293, 23
        %v3295 = vor.u32 4788187, %v3294
        %v3296 = vand.u32 2147483647, %v3295
        %v3298 = vcvt.s32.f32 %v3291
        %v3299 = vmul.f32 %v3298, %v3296
        %v3300 = vxor.u32 %v3299, 2147483648
        %v3301 = vsel %vm3218, %v3300, %v3299
        %v3302 = vsub.s32 4, %v3278
        %v3303 = vsel %vm3218, %v3302, %v3278
        %v3304 = vsel %vm3217, %v400, %v3301
        %v3305 = vsel %vm3217, 0, %v3303
        %v3306 = vcosq.f32.pop %v3304
        %v3307 = vsinq.f32.pop %v3304
        %vm3308 = vweird.f32 %v400
        %v3309 = vadd.s32 %v3305, 3
        %v3310 = vand.u32 %v3309, 3
        %vm3311 = vcmp.lt.s32.totalorder %v3310, 2
        %vm3312 = vcmp.eq.s32.totalorder %v3310, 0
        %v3313 = vxor.u32 %v3307, 2147483648
        %v3314 = vsel %vm3312, %v3306, %v3313
        %vm3315 = vcmp.eq.s32.totalorder %v3310, 2
        %v3316 = vxor.u32 %v3306, 2147483648
        %v3317 = vsel %vm3315, %v3316, %v3307
        %v3318 = vsel %vm3311, %v3314, %v3317
        %v3319 = vsel %vm3308, nan, %v3318
        %v3320 = vand.u32 2147483647, %v291
        %vm3321 = vcmp.le.f32.partialorder %v3320, 0.7853982
        %vm3322 = vcmp.lt.s32.totalorder %v291, 0
        %v3323 = vand.u32 %v291, 2139095040
        %v3324 = vshrl.u32 %v3323, 23
        %v3325 = vsub.s32 %v3324, 127
        %v3326 = vand.u32 2147483647, %v291
        %v3327 = vand.u32 %v3326, 8388607
        %v3328 = vor.u32 %v3327, 8388608
        %v3329 = vsub.s32 0, %v3328
        %v3330 = vadd.s32 %v3325, 1
        %vm3331 = vcmp.gt.s32.totalorder %v3330, 0
        %v3332 = vsel %vm3331, %v3330, 0
        %v3333 = vshrl.u32 %v3332, 5
        %v3334 = vand.u32 %v3332, 31
        %v3335 = vsub.s32 32, %v3334
        %v3336 = vshrl.u32 683565275, %v3335
        %v3337 = vshll.u32 683565275, %v3334
        %v3338 = vshrl.u32 2475754826, %v3335
        %v3339 = vor.u32 %v3337, %v3338
        %v3340 = vshll.u32 2475754826, %v3334
        %v3341 = vshrl.u32 2131351028, %v3335
        %v3342 = vor.u32 %v3340, %v3341
        %v3343 = vshll.u32 2131351028, %v3334
        %v3344 = vshrl.u32 2102212464, %v3335
        %v3345 = vor.u32 %v3343, %v3344
        %v3346 = vshll.u32 2102212464, %v3334
        %v3347 = vshrl.u32 920167782, %v3335
        %v3348 = vor.u32 %v3346, %v3347
        %v3349 = vshll.u32 920167782, %v3334
        %v3350 = vshrl.u32 1326507024, %v3335
        %v3351 = vor.u32 %v3349, %v3350
        %vm3352 = vcmp.lt.s32.totalorder %v3333, 1
        %vm3353 = vcmp.lt.s32.totalorder %v3333, 2
        %vm3354 = vcmp.lt.s32.totalorder %v3333, 3
        %vm3355 = vcmp.lt.s32.totalorder %v3333, 4
        %v3356 = vsel %vm3352, %v3336, %v3339
        %v3357 = vsel %vm3355, %v3345, 2102212464
        %v3358 = vsel %vm3354, %v3342, %v3357
        %v3359 = vsel %vm3353, %v3356, %v3358
        %v3360 = vsel %vm3352, %v3339, %v3342
        %v3361 = vsel %vm3355, %v3348, 920167782
        %v3362 = vsel %vm3354, %v3345, %v3361
        %v3363 = vsel %vm3353, %v3360, %v3362
        %v3364 = vsel %vm3352, %v3342, %v3345
        %v3365 = vsel %vm3355, %v3351, 1326507024
        %v3366 = vsel %vm3354, %v3348, %v3365
        %v3367 = vsel %vm3353, %v3364, %v3366
        %v3368 = vshll.u32 %v3328, 8
        %v3369 = vmul.u32.u64.compose %v3368, %v3367
        %v3370 = vextract.low.u32 %v3369
        %v3371 = vextract.high.u32 %v3369
        %v3372 = vmul.u32.u64.compose %v3368, %v3363
        %v3373 = vextract.low.u32 %v3372
        %v3374 = vextract.high.u32 %v3372
        %v3375 = vmul.u32 %v3368, %v3359
        %v3376 = vadd.s32 %v3371, %v3373
        %vm3377 = vc.u32 %v3371, %v3373
        %v3378 = vadd.s32 %v3374, 1
        %v3379 = vsel %vm3377, %v3378, %v3374
        %v3380 = vadd.s32 %v3375, %v3379
        %v3381 = vadd.s32 %v3380, 536870912
        %v3382 = vshrl.u32 %v3381, 30
        %v3383 = vshll.u32 %v3382, 30
        %v3384 = vsub.s32 %v3380, %v3383
        %vm3385 = vcmp.lt.s32.totalorder %v3384, 0
        %v3386 = vsub.s32 0, %v3384
        %v3387 = vsel %vm3385, %v3386, %v3384
        %v3388 = vclz %v3387
        %v3389 = vsub.s32 %v3388, 2
        %vm3390 = vcmp.gt.s32.totalorder 0, %v3389
        %v3391 = vsel %vm3390, 0, %v3389
        %v3392 = vsub.s32 32, %v3391
        %v3393 = vshll.u32 %v3384, %v3391
        %v3394 = vshrl.u32 %v3376, %v3392
        %v3395 = vor.u32 %v3393, %v3394
        %v3396 = vsub.s32 4294967266, %v3391
        %v3397 = vadd.s32 %v3396, 127
        %v3398 = vshll.u32 %v3397, 23
        %v3399 = vor.u32 4788187, %v3398
        %v3400 = vand.u32 2147483647, %v3399
        %v3402 = vcvt.s32.f32 %v3395
        %v3403 = vmul.f32 %v3402, %v3400
        %v3404 = vxor.u32 %v3403, 2147483648
        %v3405 = vsel %vm3322, %v3404, %v3403
        %v3406 = vsub.s32 4, %v3382
        %v3407 = vsel %vm3322, %v3406, %v3382
        %v3408 = vsel %vm3321, %v291, %v3405
        %v3409 = vsel %vm3321, 0, %v3407
        %v3410 = vcosq.f32.pop %v3408
        %v3411 = vsinq.f32.pop %v3408
        %vm3412 = vweird.f32 %v291
        %v3413 = vadd.s32 %v3409, 3
        %v3414 = vand.u32 %v3413, 3
        %vm3415 = vcmp.lt.s32.totalorder %v3414, 2
        %vm3416 = vcmp.eq.s32.totalorder %v3414, 0
        %v3417 = vxor.u32 %v3411, 2147483648
        %v3418 = vsel %vm3416, %v3410, %v3417
        %vm3419 = vcmp.eq.s32.totalorder %v3414, 2
        %v3420 = vxor.u32 %v3410, 2147483648
        %v3421 = vsel %vm3419, %v3420, %v3411
        %v3422 = vsel %vm3415, %v3418, %v3421
        %v3423 = vsel %vm3412, nan, %v3422
        %v3424 = vand.u32 2147483647, %v293
        %vm3425 = vcmp.le.f32.partialorder %v3424, 0.7853982
        %vm3426 = vcmp.lt.s32.totalorder %v293, 0
        %v3427 = vand.u32 %v293, 2139095040
        %v3428 = vshrl.u32 %v3427, 23
        %v3429 = vsub.s32 %v3428, 127
        %v3430 = vand.u32 2147483647, %v293
        %v3431 = vand.u32 %v3430, 8388607
        %v3432 = vor.u32 %v3431, 8388608
        %v3433 = vsub.s32 0, %v3432
        %v3434 = vadd.s32 %v3429, 1
        %vm3435 = vcmp.gt.s32.totalorder %v3434, 0
        %v3436 = vsel %vm3435, %v3434, 0
        %v3437 = vshrl.u32 %v3436, 5
        %v3438 = vand.u32 %v3436, 31
        %v3439 = vsub.s32 32, %v3438
        %v3440 = vshrl.u32 683565275, %v3439
        %v3441 = vshll.u32 683565275, %v3438
        %v3442 = vshrl.u32 2475754826, %v3439
        %v3443 = vor.u32 %v3441, %v3442
        %v3444 = vshll.u32 2475754826, %v3438
        %v3445 = vshrl.u32 2131351028, %v3439
        %v3446 = vor.u32 %v3444, %v3445
        %v3447 = vshll.u32 2131351028, %v3438
        %v3448 = vshrl.u32 2102212464, %v3439
        %v3449 = vor.u32 %v3447, %v3448
        %v3450 = vshll.u32 2102212464, %v3438
        %v3451 = vshrl.u32 920167782, %v3439
        %v3452 = vor.u32 %v3450, %v3451
        %v3453 = vshll.u32 920167782, %v3438
        %v3454 = vshrl.u32 1326507024, %v3439
        %v3455 = vor.u32 %v3453, %v3454
        %vm3456 = vcmp.lt.s32.totalorder %v3437, 1
        %vm3457 = vcmp.lt.s32.totalorder %v3437, 2
        %vm3458 = vcmp.lt.s32.totalorder %v3437, 3
        %vm3459 = vcmp.lt.s32.totalorder %v3437, 4
        %v3460 = vsel %vm3456, %v3440, %v3443
        %v3461 = vsel %vm3459, %v3449, 2102212464
        %v3462 = vsel %vm3458, %v3446, %v3461
        %v3463 = vsel %vm3457, %v3460, %v3462
        %v3464 = vsel %vm3456, %v3443, %v3446
        %v3465 = vsel %vm3459, %v3452, 920167782
        %v3466 = vsel %vm3458, %v3449, %v3465
        %v3467 = vsel %vm3457, %v3464, %v3466
        %v3468 = vsel %vm3456, %v3446, %v3449
        %v3469 = vsel %vm3459, %v3455, 1326507024
        %v3470 = vsel %vm3458, %v3452, %v3469
        %v3471 = vsel %vm3457, %v3468, %v3470
        %v3472 = vshll.u32 %v3432, 8
        %v3473 = vmul.u32.u64.compose %v3472, %v3471
        %v3474 = vextract.low.u32 %v3473
        %v3475 = vextract.high.u32 %v3473
        %v3476 = vmul.u32.u64.compose %v3472, %v3467
        %v3477 = vextract.low.u32 %v3476
        %v3478 = vextract.high.u32 %v3476
        %v3479 = vmul.u32 %v3472, %v3463
        %v3480 = vadd.s32 %v3475, %v3477
        %vm3481 = vc.u32 %v3475, %v3477
        %v3482 = vadd.s32 %v3478, 1
        %v3483 = vsel %vm3481, %v3482, %v3478
        %v3484 = vadd.s32 %v3479, %v3483
        %v3485 = vadd.s32 %v3484, 536870912
        %v3486 = vshrl.u32 %v3485, 30
        %v3487 = vshll.u32 %v3486, 30
        %v3488 = vsub.s32 %v3484, %v3487
        %vm3489 = vcmp.lt.s32.totalorder %v3488, 0
        %v3490 = vsub.s32 0, %v3488
        %v3491 = vsel %vm3489, %v3490, %v3488
        %v3492 = vclz %v3491
        %v3493 = vsub.s32 %v3492, 2
        %vm3494 = vcmp.gt.s32.totalorder 0, %v3493
        %v3495 = vsel %vm3494, 0, %v3493
        %v3496 = vsub.s32 32, %v3495
        %v3497 = vshll.u32 %v3488, %v3495
        %v3498 = vshrl.u32 %v3480, %v3496
        %v3499 = vor.u32 %v3497, %v3498
        %v3500 = vsub.s32 4294967266, %v3495
        %v3501 = vadd.s32 %v3500, 127
        %v3502 = vshll.u32 %v3501, 23
        %v3503 = vor.u32 4788187, %v3502
        %v3504 = vand.u32 2147483647, %v3503
        %v3506 = vcvt.s32.f32 %v3499
        %v3507 = vmul.f32 %v3506, %v3504
        %v3508 = vxor.u32 %v3507, 2147483648
        %v3509 = vsel %vm3426, %v3508, %v3507
        %v3510 = vsub.s32 4, %v3486
        %v3511 = vsel %vm3426, %v3510, %v3486
        %v3512 = vsel %vm3425, %v293, %v3509
        %v3513 = vsel %vm3425, 0, %v3511
        %v3514 = vcosq.f32.pop %v3512
        %v3515 = vsinq.f32.pop %v3512
        %vm3516 = vweird.f32 %v293
        %v3517 = vadd.s32 %v3513, 3
        %v3518 = vand.u32 %v3517, 3
        %vm3519 = vcmp.lt.s32.totalorder %v3518, 2
        %vm3520 = vcmp.eq.s32.totalorder %v3518, 0
        %v3521 = vxor.u32 %v3515, 2147483648
        %v3522 = vsel %vm3520, %v3514, %v3521
        %vm3523 = vcmp.eq.s32.totalorder %v3518, 2
        %v3524 = vxor.u32 %v3514, 2147483648
        %v3525 = vsel %vm3523, %v3524, %v3515
        %v3526 = vsel %vm3519, %v3522, %v3525
        %v3527 = vsel %vm3516, nan, %v3526
        %v3528 = vand.u32 2147483647, %v404
        %vm3529 = vcmp.le.f32.partialorder %v3528, 0.7853982
        %vm3530 = vcmp.lt.s32.totalorder %v404, 0
        %v3531 = vand.u32 %v404, 2139095040
        %v3532 = vshrl.u32 %v3531, 23
        %v3533 = vsub.s32 %v3532, 127
        %v3534 = vand.u32 2147483647, %v404
        %v3535 = vand.u32 %v3534, 8388607
        %v3536 = vor.u32 %v3535, 8388608
        %v3537 = vsub.s32 0, %v3536
        %v3538 = vadd.s32 %v3533, 1
        %vm3539 = vcmp.gt.s32.totalorder %v3538, 0
        %v3540 = vsel %vm3539, %v3538, 0
        %v3541 = vshrl.u32 %v3540, 5
        %v3542 = vand.u32 %v3540, 31
        %v3543 = vsub.s32 32, %v3542
        %v3544 = vshrl.u32 683565275, %v3543
        %v3545 = vshll.u32 683565275, %v3542
        %v3546 = vshrl.u32 2475754826, %v3543
        %v3547 = vor.u32 %v3545, %v3546
        %v3548 = vshll.u32 2475754826, %v3542
        %v3549 = vshrl.u32 2131351028, %v3543
        %v3550 = vor.u32 %v3548, %v3549
        %v3551 = vshll.u32 2131351028, %v3542
        %v3552 = vshrl.u32 2102212464, %v3543
        %v3553 = vor.u32 %v3551, %v3552
        %v3554 = vshll.u32 2102212464, %v3542
        %v3555 = vshrl.u32 920167782, %v3543
        %v3556 = vor.u32 %v3554, %v3555
        %v3557 = vshll.u32 920167782, %v3542
        %v3558 = vshrl.u32 1326507024, %v3543
        %v3559 = vor.u32 %v3557, %v3558
        %vm3560 = vcmp.lt.s32.totalorder %v3541, 1
        %vm3561 = vcmp.lt.s32.totalorder %v3541, 2
        %vm3562 = vcmp.lt.s32.totalorder %v3541, 3
        %vm3563 = vcmp.lt.s32.totalorder %v3541, 4
        %v3564 = vsel %vm3560, %v3544, %v3547
        %v3565 = vsel %vm3563, %v3553, 2102212464
        %v3566 = vsel %vm3562, %v3550, %v3565
        %v3567 = vsel %vm3561, %v3564, %v3566
        %v3568 = vsel %vm3560, %v3547, %v3550
        %v3569 = vsel %vm3563, %v3556, 920167782
        %v3570 = vsel %vm3562, %v3553, %v3569
        %v3571 = vsel %vm3561, %v3568, %v3570
        %v3572 = vsel %vm3560, %v3550, %v3553
        %v3573 = vsel %vm3563, %v3559, 1326507024
        %v3574 = vsel %vm3562, %v3556, %v3573
        %v3575 = vsel %vm3561, %v3572, %v3574
        %v3576 = vshll.u32 %v3536, 8
        %v3577 = vmul.u32.u64.compose %v3576, %v3575
        %v3578 = vextract.low.u32 %v3577
        %v3579 = vextract.high.u32 %v3577
        %v3580 = vmul.u32.u64.compose %v3576, %v3571
        %v3581 = vextract.low.u32 %v3580
        %v3582 = vextract.high.u32 %v3580
        %v3583 = vmul.u32 %v3576, %v3567
        %v3584 = vadd.s32 %v3579, %v3581
        %vm3585 = vc.u32 %v3579, %v3581
        %v3586 = vadd.s32 %v3582, 1
        %v3587 = vsel %vm3585, %v3586, %v3582
        %v3588 = vadd.s32 %v3583, %v3587
        %v3589 = vadd.s32 %v3588, 536870912
        %v3590 = vshrl.u32 %v3589, 30
        %v3591 = vshll.u32 %v3590, 30
        %v3592 = vsub.s32 %v3588, %v3591
        %vm3593 = vcmp.lt.s32.totalorder %v3592, 0
        %v3594 = vsub.s32 0, %v3592
        %v3595 = vsel %vm3593, %v3594, %v3592
        %v3596 = vclz %v3595
        %v3597 = vsub.s32 %v3596, 2
        %vm3598 = vcmp.gt.s32.totalorder 0, %v3597
        %v3599 = vsel %vm3598, 0, %v3597
        %v3600 = vsub.s32 32, %v3599
        %v3601 = vshll.u32 %v3592, %v3599
        %v3602 = vshrl.u32 %v3584, %v3600
        %v3603 = vor.u32 %v3601, %v3602
        %v3604 = vsub.s32 4294967266, %v3599
        %v3605 = vadd.s32 %v3604, 127
        %v3606 = vshll.u32 %v3605, 23
        %v3607 = vor.u32 4788187, %v3606
        %v3608 = vand.u32 2147483647, %v3607
        %v3610 = vcvt.s32.f32 %v3603
        %v3611 = vmul.f32 %v3610, %v3608
        %v3612 = vxor.u32 %v3611, 2147483648
        %v3613 = vsel %vm3530, %v3612, %v3611
        %v3614 = vsub.s32 4, %v3590
        %v3615 = vsel %vm3530, %v3614, %v3590
        %v3616 = vsel %vm3529, %v404, %v3613
        %v3617 = vsel %vm3529, 0, %v3615
        %v3618 = vcosq.f32.pop %v3616
        %v3619 = vsinq.f32.pop %v3616
        %vm3620 = vweird.f32 %v404
        %v3621 = vadd.s32 %v3617, 3
        %v3622 = vand.u32 %v3621, 3
        %vm3623 = vcmp.lt.s32.totalorder %v3622, 2
        %vm3624 = vcmp.eq.s32.totalorder %v3622, 0
        %v3625 = vxor.u32 %v3619, 2147483648
        %v3626 = vsel %vm3624, %v3618, %v3625
        %vm3627 = vcmp.eq.s32.totalorder %v3622, 2
        %v3628 = vxor.u32 %v3618, 2147483648
        %v3629 = vsel %vm3627, %v3628, %v3619
        %v3630 = vsel %vm3623, %v3626, %v3629
        %v3631 = vsel %vm3620, nan, %v3630
        %v3632 = vand.u32 2147483647, %v406
        %vm3633 = vcmp.le.f32.partialorder %v3632, 0.7853982
        %vm3634 = vcmp.lt.s32.totalorder %v406, 0
        %v3635 = vand.u32 %v406, 2139095040
        %v3636 = vshrl.u32 %v3635, 23
        %v3637 = vsub.s32 %v3636, 127
        %v3638 = vand.u32 2147483647, %v406
        %v3639 = vand.u32 %v3638, 8388607
        %v3640 = vor.u32 %v3639, 8388608
        %v3641 = vsub.s32 0, %v3640
        %v3642 = vadd.s32 %v3637, 1
        %vm3643 = vcmp.gt.s32.totalorder %v3642, 0
        %v3644 = vsel %vm3643, %v3642, 0
        %v3645 = vshrl.u32 %v3644, 5
        %v3646 = vand.u32 %v3644, 31
        %v3647 = vsub.s32 32, %v3646
        %v3648 = vshrl.u32 683565275, %v3647
        %v3649 = vshll.u32 683565275, %v3646
        %v3650 = vshrl.u32 2475754826, %v3647
        %v3651 = vor.u32 %v3649, %v3650
        %v3652 = vshll.u32 2475754826, %v3646
        %v3653 = vshrl.u32 2131351028, %v3647
        %v3654 = vor.u32 %v3652, %v3653
        %v3655 = vshll.u32 2131351028, %v3646
        %v3656 = vshrl.u32 2102212464, %v3647
        %v3657 = vor.u32 %v3655, %v3656
        %v3658 = vshll.u32 2102212464, %v3646
        %v3659 = vshrl.u32 920167782, %v3647
        %v3660 = vor.u32 %v3658, %v3659
        %v3661 = vshll.u32 920167782, %v3646
        %v3662 = vshrl.u32 1326507024, %v3647
        %v3663 = vor.u32 %v3661, %v3662
        %vm3664 = vcmp.lt.s32.totalorder %v3645, 1
        %vm3665 = vcmp.lt.s32.totalorder %v3645, 2
        %vm3666 = vcmp.lt.s32.totalorder %v3645, 3
        %vm3667 = vcmp.lt.s32.totalorder %v3645, 4
        %v3668 = vsel %vm3664, %v3648, %v3651
        %v3669 = vsel %vm3667, %v3657, 2102212464
        %v3670 = vsel %vm3666, %v3654, %v3669
        %v3671 = vsel %vm3665, %v3668, %v3670
        %v3672 = vsel %vm3664, %v3651, %v3654
        %v3673 = vsel %vm3667, %v3660, 920167782
        %v3674 = vsel %vm3666, %v3657, %v3673
        %v3675 = vsel %vm3665, %v3672, %v3674
        %v3676 = vsel %vm3664, %v3654, %v3657
        %v3677 = vsel %vm3667, %v3663, 1326507024
        %v3678 = vsel %vm3666, %v3660, %v3677
        %v3679 = vsel %vm3665, %v3676, %v3678
        %v3680 = vshll.u32 %v3640, 8
        %v3681 = vmul.u32.u64.compose %v3680, %v3679
        %v3682 = vextract.low.u32 %v3681
        %v3683 = vextract.high.u32 %v3681
        %v3684 = vmul.u32.u64.compose %v3680, %v3675
        %v3685 = vextract.low.u32 %v3684
        %v3686 = vextract.high.u32 %v3684
        %v3687 = vmul.u32 %v3680, %v3671
        %v3688 = vadd.s32 %v3683, %v3685
        %vm3689 = vc.u32 %v3683, %v3685
        %v3690 = vadd.s32 %v3686, 1
        %v3691 = vsel %vm3689, %v3690, %v3686
        %v3692 = vadd.s32 %v3687, %v3691
        %v3693 = vadd.s32 %v3692, 536870912
        %v3694 = vshrl.u32 %v3693, 30
        %v3695 = vshll.u32 %v3694, 30
        %v3696 = vsub.s32 %v3692, %v3695
        %vm3697 = vcmp.lt.s32.totalorder %v3696, 0
        %v3698 = vsub.s32 0, %v3696
        %v3699 = vsel %vm3697, %v3698, %v3696
        %v3700 = vclz %v3699
        %v3701 = vsub.s32 %v3700, 2
        %vm3702 = vcmp.gt.s32.totalorder 0, %v3701
        %v3703 = vsel %vm3702, 0, %v3701
        %v3704 = vsub.s32 32, %v3703
        %v3705 = vshll.u32 %v3696, %v3703
        %v3706 = vshrl.u32 %v3688, %v3704
        %v3707 = vor.u32 %v3705, %v3706
        %v3708 = vsub.s32 4294967266, %v3703
        %v3709 = vadd.s32 %v3708, 127
        %v3710 = vshll.u32 %v3709, 23
        %v3711 = vor.u32 4788187, %v3710
        %v3712 = vand.u32 2147483647, %v3711
        %v3714 = vcvt.s32.f32 %v3707
        %v3715 = vmul.f32 %v3714, %v3712
        %v3716 = vxor.u32 %v3715, 2147483648
        %v3717 = vsel %vm3634, %v3716, %v3715
        %v3718 = vsub.s32 4, %v3694
        %v3719 = vsel %vm3634, %v3718, %v3694
        %v3720 = vsel %vm3633, %v406, %v3717
        %v3721 = vsel %vm3633, 0, %v3719
        %v3722 = vcosq.f32.pop %v3720
        %v3723 = vsinq.f32.pop %v3720
        %vm3724 = vweird.f32 %v406
        %v3725 = vadd.s32 %v3721, 3
        %v3726 = vand.u32 %v3725, 3
        %vm3727 = vcmp.lt.s32.totalorder %v3726, 2
        %vm3728 = vcmp.eq.s32.totalorder %v3726, 0
        %v3729 = vxor.u32 %v3723, 2147483648
        %v3730 = vsel %vm3728, %v3722, %v3729
        %vm3731 = vcmp.eq.s32.totalorder %v3726, 2
        %v3732 = vxor.u32 %v3722, 2147483648
        %v3733 = vsel %vm3731, %v3732, %v3723
        %v3734 = vsel %vm3727, %v3730, %v3733
        %v3735 = vsel %vm3724, nan, %v3734
        %v3736 = vld [vmem:[%s1 + $0x40] sm:$0xff]
        %v3737 = vld [vmem:[%s1 + $0x48] sm:$0xff]
        %v3738 = vld [vmem:[%s1 + $0x50] sm:$0xff]
        %v3739 = vld [vmem:[%s1 + $0x58] sm:$0xff]
        %v3740 = vld [vmem:[%s1 + $0x60] sm:$0xff]
        %v3741 = vld [vmem:[%s1 + $0x68] sm:$0xff]
        %v3742 = vld [vmem:[%s1 + $0x70] sm:$0xff]
        %v3743 = vld [vmem:[%s1 + $0x78] sm:$0xff]
        %v3744 = vld [vmem:[%s1 + $0x80] sm:$0xff]
        %v3745 = vld [vmem:[%s1 + $0x88] sm:$0xff]
        %v3746 = vld [vmem:[%s1 + $0x90] sm:$0xff]
        %v3747 = vld [vmem:[%s1 + $0x98] sm:$0xff]
        %v3748 = vld [vmem:[%s1 + $0xa0] sm:$0xff]
        %v3749 = vld [vmem:[%s1 + $0xa8] sm:$0xff]
        %v3750 = vld [vmem:[%s1 + $0xb0] sm:$0xff]
        %v3751 = vld [vmem:[%s1 + $0xb8] sm:$0xff]
        %vm3752 = vcmask 523264
        %v3754 = vsel %vm3752, %v3736, 0
        %v3757 = vsel %vm3752, %v3737, 0
        %v3760 = vsel %vm3752, %v3738, 0
        %v3763 = vsel %vm3752, %v3739, 0
        %v3766 = vsel %vm3752, %v3740, 0
        %v3769 = vsel %vm3752, %v3741, 0
        %v3772 = vsel %vm3752, %v3742, 0
        %v3775 = vsel %vm3752, %v3743, 0
        %v3778 = vsel %vm3752, %v3744, 0
        %v3781 = vsel %vm3752, %v3745, 0
        %v3784 = vsel %vm3752, %v3746, 0
        %v3787 = vsel %vm3752, %v3747, 0
        %v3790 = vsel %vm3752, %v3748, 0
        %v3793 = vsel %vm3752, %v3749, 0
        %v3796 = vsel %vm3752, %v3750, 0
        %v3799 = vsel %vm3752, %v3751, 0
        %3801 = vmatprep.subr.mxu0 %v615
        %3802 = vmatpush1.msra.mxu0 %v511
        %3803 = vmatprep.subr.mxu0 %v1031
        %3804 = vmatpush1.msra.mxu0 %v927
        %3805 = vmatprep.subr.mxu0 %v1447
        %3806 = vmatpush1.msra.mxu0 %v1343
        %3807 = vmatprep.subr.mxu0 %v1863
        %3808 = vmatpush1.msra.mxu0 %v1759
        %3809 = vmatprep.subr.mxu0 %v2279
        %3810 = vmatpush1.msra.mxu0 %v2175
        %3811 = vmatprep.subr.mxu0 %v2695
        %3812 = vmatpush1.msra.mxu0 %v2591
        %3813 = vmatprep.subr.mxu0 %v3111
        %3814 = vmatpush1.msra.mxu0 %v3007
        %3815 = vmatprep.subr.mxu0 %v3527
        %3816 = vmatpush1.msra.mxu0 %v3423
        %3817 = vmatprep.subr.mxu0 0.0
        %3818 = vmatpush1.msra.mxu0 0.0
        %3819 = vmatprep.subr.mxu0 0.0
        %3820 = vmatpush1.msra.mxu0 0.0
        %3821 = vmatprep.subr.mxu0 0.0
        %3822 = vmatpush1.msra.mxu0 0.0
        %3823 = vmatprep.subr.mxu0 0.0
        %3824 = vmatpush1.msra.mxu0 0.0
        %3825 = vmatprep.subr.mxu0 0.0
        %3826 = vmatpush1.msra.mxu0 0.0
        %3827 = vmatprep.subr.mxu0 0.0
        %3828 = vmatpush1.msra.mxu0 0.0
        %3829 = vmatprep.subr.mxu0 0.0
        %3830 = vmatpush1.msra.mxu0 0.0
        %3831 = vmatprep.subr.mxu0 0.0
        %3832 = vmatpush1.msra.mxu0 0.0
        %3833 = vmatprep.subr.mxu0 0.0
        %3834 = vmatpush1.msra.mxu0 0.0
        %3835 = vmatprep.subr.mxu0 0.0
        %3836 = vmatpush1.msra.mxu0 0.0
        %3837 = vmatprep.subr.mxu0 0.0
        %3838 = vmatpush1.msra.mxu0 0.0
        %3839 = vmatprep.subr.mxu0 0.0
        %3840 = vmatpush1.msra.mxu0 0.0
        %3841 = vmatprep.subr.mxu0 0.0
        %3842 = vmatpush1.msra.mxu0 0.0
        %3843 = vmatprep.subr.mxu0 0.0
        %3844 = vmatpush1.msra.mxu0 0.0
        %3845 = vmatprep.subr.mxu0 0.0
        %3846 = vmatpush1.msra.mxu0 0.0
        %3847 = vmatprep.subr.mxu0 0.0
        %3848 = vmatpush1.msra.mxu0 0.0
        %3849 = vmatprep.subr.mxu0 0.0
        %3850 = vmatpush1.msra.mxu0 0.0
        %3851 = vmatprep.subr.mxu0 0.0
        %3852 = vmatpush1.msra.mxu0 0.0
        %3853 = vmatprep.subr.mxu0 0.0
        %3854 = vmatpush1.msra.mxu0 0.0
        %3855 = vmatprep.subr.mxu0 0.0
        %3856 = vmatpush1.msra.mxu0 0.0
        %3857 = vmatprep.subr.mxu0 0.0
        %3858 = vmatpush1.msra.mxu0 0.0
        %3859 = vmatprep.subr.mxu0 0.0
        %3860 = vmatpush1.msra.mxu0 0.0
        %3861 = vmatprep.subr.mxu0 0.0
        %3862 = vmatpush1.msra.mxu0 0.0
        %3863 = vmatprep.subr.mxu0 0.0
        %3864 = vmatpush1.msra.mxu0 0.0
        %3865 = vmatprep.mubr.f32.mxu0 0.0
        %3866 = vmatmul.mubr.f32.gmra.mrb[0].mxu0 %v3754
        %v3867 = vpop.f32.mrb[0].mxu0
        %v3868 = vadd.f32 0.0, %v3867
        %v3869 = vpop.f32.mrb[0].mxu0
        %v3870 = vadd.f32 0.0, %v3869
        %3871 = vmatprep.mubr.f32.mxu0 0.0
        %3872 = vmatmul.mubr.f32.gmra.mrb[0].mxu0 %v3757
        %v3873 = vpop.f32.mrb[0].mxu0
        %v3874 = vadd.f32 0.0, %v3873
        %v3875 = vpop.f32.mrb[0].mxu0
        %v3876 = vadd.f32 0.0, %v3875
        %3877 = vmatprep.mubr.f32.mxu0 0.0
        %3878 = vmatmul.mubr.f32.gmra.mrb[0].mxu0 %v3760
        %v3879 = vpop.f32.mrb[0].mxu0
        %v3880 = vadd.f32 0.0, %v3879
        %v3881 = vpop.f32.mrb[0].mxu0
        %v3882 = vadd.f32 0.0, %v3881
        %3883 = vmatprep.mubr.f32.mxu0 0.0
        %3884 = vmatmul.mubr.f32.gmra.mrb[0].mxu0 %v3763
        %v3885 = vpop.f32.mrb[0].mxu0
        %v3886 = vadd.f32 0.0, %v3885
        %v3887 = vpop.f32.mrb[0].mxu0
        %v3888 = vadd.f32 0.0, %v3887
        %3889 = vmatprep.mubr.f32.mxu0 0.0
        %3890 = vmatmul.mubr.f32.gmra.mrb[0].mxu0 %v3766
        %v3891 = vpop.f32.mrb[0].mxu0
        %v3892 = vadd.f32 0.0, %v3891
        %v3893 = vpop.f32.mrb[0].mxu0
        %v3894 = vadd.f32 0.0, %v3893
        %3895 = vmatprep.mubr.f32.mxu0 0.0
        %3896 = vmatmul.mubr.f32.gmra.mrb[0].mxu0 %v3769
        %v3897 = vpop.f32.mrb[0].mxu0
        %v3898 = vadd.f32 0.0, %v3897
        %v3899 = vpop.f32.mrb[0].mxu0
        %v3900 = vadd.f32 0.0, %v3899
        %3901 = vmatprep.mubr.f32.mxu0 0.0
        %3902 = vmatmul.mubr.f32.gmra.mrb[0].mxu0 %v3772
        %v3903 = vpop.f32.mrb[0].mxu0
        %v3904 = vadd.f32 0.0, %v3903
        %v3905 = vpop.f32.mrb[0].mxu0
        %v3906 = vadd.f32 0.0, %v3905
        %3907 = vmatprep.mubr.f32.mxu0 0.0
        %3908 = vmatmul.mubr.f32.gmra.mrb[0].mxu0 %v3775
        %v3909 = vpop.f32.mrb[0].mxu0
        %v3910 = vadd.f32 0.0, %v3909
        %v3911 = vpop.f32.mrb[0].mxu0
        %v3912 = vadd.f32 0.0, %v3911
        %3913 = vmatprep.mubr.f32.mxu0 0.0
        %3914 = vmatmul.mubr.f32.gmra.mrb[0].mxu0 %v3778
        %v3915 = vpop.f32.mrb[0].mxu0
        %v3916 = vadd.f32 0.0, %v3915
        %v3917 = vpop.f32.mrb[0].mxu0
        %v3918 = vadd.f32 0.0, %v3917
        %3919 = vmatprep.mubr.f32.mxu0 0.0
        %3920 = vmatmul.mubr.f32.gmra.mrb[0].mxu0 %v3781
        %v3921 = vpop.f32.mrb[0].mxu0
        %v3922 = vadd.f32 0.0, %v3921
        %v3923 = vpop.f32.mrb[0].mxu0
        %v3924 = vadd.f32 0.0, %v3923
        %3925 = vmatprep.mubr.f32.mxu0 0.0
        %3926 = vmatmul.mubr.f32.gmra.mrb[0].mxu0 %v3784
        %v3927 = vpop.f32.mrb[0].mxu0
        %v3928 = vadd.f32 0.0, %v3927
        %v3929 = vpop.f32.mrb[0].mxu0
        %v3930 = vadd.f32 0.0, %v3929
        %3931 = vmatprep.mubr.f32.mxu0 0.0
        %3932 = vmatmul.mubr.f32.gmra.mrb[0].mxu0 %v3787
        %v3933 = vpop.f32.mrb[0].mxu0
        %v3934 = vadd.f32 0.0, %v3933
        %v3935 = vpop.f32.mrb[0].mxu0
        %v3936 = vadd.f32 0.0, %v3935
        %3937 = vmatprep.mubr.f32.mxu0 0.0
        %3938 = vmatmul.mubr.f32.gmra.mrb[0].mxu0 %v3790
        %v3939 = vpop.f32.mrb[0].mxu0
        %v3940 = vadd.f32 0.0, %v3939
        %v3941 = vpop.f32.mrb[0].mxu0
        %v3942 = vadd.f32 0.0, %v3941
        %3943 = vmatprep.mubr.f32.mxu0 0.0
        %3944 = vmatmul.mubr.f32.gmra.mrb[0].mxu0 %v3793
        %v3945 = vpop.f32.mrb[0].mxu0
        %v3946 = vadd.f32 0.0, %v3945
        %v3947 = vpop.f32.mrb[0].mxu0
        %v3948 = vadd.f32 0.0, %v3947
        %3949 = vmatprep.mubr.f32.mxu0 0.0
        %3950 = vmatmul.mubr.f32.gmra.mrb[0].mxu0 %v3796
        %v3951 = vpop.f32.mrb[0].mxu0
        %v3952 = vadd.f32 0.0, %v3951
        %v3953 = vpop.f32.mrb[0].mxu0
        %v3954 = vadd.f32 0.0, %v3953
        %3955 = vmatprep.mubr.f32.mxu0 0.0
        %3956 = vmatmul.mubr.f32.gmra.mrb[0].mxu0 %v3799
        %v3957 = vpop.f32.mrb[0].mxu0
        %v3958 = vadd.f32 0.0, %v3957
        %v3959 = vpop.f32.mrb[0].mxu0
        %v3960 = vadd.f32 0.0, %v3959
        %3961 = vdwg.mxu0
        %3962 = vmatprep.subr.mxu0 %v823
        %3963 = vmatpush1.msra.mxu0 %v719
        %3964 = vmatprep.subr.mxu0 %v1239
        %3965 = vmatpush1.msra.mxu0 %v1135
        %3966 = vmatprep.subr.mxu0 %v1655
        %3967 = vmatpush1.msra.mxu0 %v1551
        %3968 = vmatprep.subr.mxu0 %v2071
        %3969 = vmatpush1.msra.mxu0 %v1967
        %3970 = vmatprep.subr.mxu0 %v2487
        %3971 = vmatpush1.msra.mxu0 %v2383
        %3972 = vmatprep.subr.mxu0 %v2903
        %3973 = vmatpush1.msra.mxu0 %v2799
        %3974 = vmatprep.subr.mxu0 %v3319
        %3975 = vmatpush1.msra.mxu0 %v3215
        %3976 = vmatprep.subr.mxu0 %v3735
        %3977 = vmatpush1.msra.mxu0 %v3631
        %3978 = vmatprep.subr.mxu0 0.0
        %3979 = vmatpush1.msra.mxu0 0.0
        %3980 = vmatprep.subr.mxu0 0.0
        %3981 = vmatpush1.msra.mxu0 0.0
        %3982 = vmatprep.subr.mxu0 0.0
        %3983 = vmatpush1.msra.mxu0 0.0
        %3984 = vmatprep.subr.mxu0 0.0
        %3985 = vmatpush1.msra.mxu0 0.0
        %3986 = vmatprep.subr.mxu0 0.0
        %3987 = vmatpush1.msra.mxu0 0.0
        %3988 = vmatprep.subr.mxu0 0.0
        %3989 = vmatpush1.msra.mxu0 0.0
        %3990 = vmatprep.subr.mxu0 0.0
        %3991 = vmatpush1.msra.mxu0 0.0
        %3992 = vmatprep.subr.mxu0 0.0
        %3993 = vmatpush1.msra.mxu0 0.0
        %3994 = vmatprep.subr.mxu0 0.0
        %3995 = vmatpush1.msra.mxu0 0.0
        %3996 = vmatprep.subr.mxu0 0.0
        %3997 = vmatpush1.msra.mxu0 0.0
        %3998 = vmatprep.subr.mxu0 0.0
        %3999 = vmatpush1.msra.mxu0 0.0
        %4000 = vmatprep.subr.mxu0 0.0
        %4001 = vmatpush1.msra.mxu0 0.0
        %4002 = vmatprep.subr.mxu0 0.0
        %4003 = vmatpush1.msra.mxu0 0.0
        %4004 = vmatprep.subr.mxu0 0.0
        %4005 = vmatpush1.msra.mxu0 0.0
        %4006 = vmatprep.subr.mxu0 0.0
        %4007 = vmatpush1.msra.mxu0 0.0
        %4008 = vmatprep.subr.mxu0 0.0
        %4009 = vmatpush1.msra.mxu0 0.0
        %4010 = vmatprep.subr.mxu0 0.0
        %4011 = vmatpush1.msra.mxu0 0.0
        %4012 = vmatprep.subr.mxu0 0.0
        %4013 = vmatpush1.msra.mxu0 0.0
        %4014 = vmatprep.subr.mxu0 0.0
        %4015 = vmatpush1.msra.mxu0 0.0
        %4016 = vmatprep.subr.mxu0 0.0
        %4017 = vmatpush1.msra.mxu0 0.0
        %4018 = vmatprep.subr.mxu0 0.0
        %4019 = vmatpush1.msra.mxu0 0.0
        %4020 = vmatprep.subr.mxu0 0.0
        %4021 = vmatpush1.msra.mxu0 0.0
        %4022 = vmatprep.subr.mxu0 0.0
        %4023 = vmatpush1.msra.mxu0 0.0
        %4024 = vmatprep.subr.mxu0 0.0
        %4025 = vmatpush1.msra.mxu0 0.0
        %4026 = vmatprep.mubr.f32.mxu0 0.0
        %4027 = vmatmul.mubr.f32.gmra.mrb[0].mxu0 %v3754
        %v4028 = vpop.f32.mrb[0].mxu0
        %v4029 = vadd.f32 0.0, %v4028
        %v4030 = vpop.f32.mrb[0].mxu0
        %v4031 = vadd.f32 0.0, %v4030
        %4032 = vmatprep.mubr.f32.mxu0 0.0
        %4033 = vmatmul.mubr.f32.gmra.mrb[0].mxu0 %v3757
        %v4034 = vpop.f32.mrb[0].mxu0
        %v4035 = vadd.f32 0.0, %v4034
        %v4036 = vpop.f32.mrb[0].mxu0
        %v4037 = vadd.f32 0.0, %v4036
        %4038 = vmatprep.mubr.f32.mxu0 0.0
        %4039 = vmatmul.mubr.f32.gmra.mrb[0].mxu0 %v3760
        %v4040 = vpop.f32.mrb[0].mxu0
        %v4041 = vadd.f32 0.0, %v4040
        %v4042 = vpop.f32.mrb[0].mxu0
        %v4043 = vadd.f32 0.0, %v4042
        %4044 = vmatprep.mubr.f32.mxu0 0.0
        %4045 = vmatmul.mubr.f32.gmra.mrb[0].mxu0 %v3763
        %v4046 = vpop.f32.mrb[0].mxu0
        %v4047 = vadd.f32 0.0, %v4046
        %v4048 = vpop.f32.mrb[0].mxu0
        %v4049 = vadd.f32 0.0, %v4048
        %4050 = vmatprep.mubr.f32.mxu0 0.0
        %4051 = vmatmul.mubr.f32.gmra.mrb[0].mxu0 %v3766
        %v4052 = vpop.f32.mrb[0].mxu0
        %v4053 = vadd.f32 0.0, %v4052
        %v4054 = vpop.f32.mrb[0].mxu0
        %v4055 = vadd.f32 0.0, %v4054
        %4056 = vmatprep.mubr.f32.mxu0 0.0
        %4057 = vmatmul.mubr.f32.gmra.mrb[0].mxu0 %v3769
        %v4058 = vpop.f32.mrb[0].mxu0
        %v4059 = vadd.f32 0.0, %v4058
        %v4060 = vpop.f32.mrb[0].mxu0
        %v4061 = vadd.f32 0.0, %v4060
        %4062 = vmatprep.mubr.f32.mxu0 0.0
        %4063 = vmatmul.mubr.f32.gmra.mrb[0].mxu0 %v3772
        %v4064 = vpop.f32.mrb[0].mxu0
        %v4065 = vadd.f32 0.0, %v4064
        %v4066 = vpop.f32.mrb[0].mxu0
        %v4067 = vadd.f32 0.0, %v4066
        %4068 = vmatprep.mubr.f32.mxu0 0.0
        %4069 = vmatmul.mubr.f32.gmra.mrb[0].mxu0 %v3775
        %v4070 = vpop.f32.mrb[0].mxu0
        %v4071 = vadd.f32 0.0, %v4070
        %v4072 = vpop.f32.mrb[0].mxu0
        %v4073 = vadd.f32 0.0, %v4072
        %4074 = vmatprep.mubr.f32.mxu0 0.0
        %4075 = vmatmul.mubr.f32.gmra.mrb[0].mxu0 %v3778
        %v4076 = vpop.f32.mrb[0].mxu0
        %v4077 = vadd.f32 0.0, %v4076
        %v4078 = vpop.f32.mrb[0].mxu0
        %v4079 = vadd.f32 0.0, %v4078
        %4080 = vmatprep.mubr.f32.mxu0 0.0
        %4081 = vmatmul.mubr.f32.gmra.mrb[0].mxu0 %v3781
        %v4082 = vpop.f32.mrb[0].mxu0
        %v4083 = vadd.f32 0.0, %v4082
        %v4084 = vpop.f32.mrb[0].mxu0
        %v4085 = vadd.f32 0.0, %v4084
        %4086 = vmatprep.mubr.f32.mxu0 0.0
        %4087 = vmatmul.mubr.f32.gmra.mrb[0].mxu0 %v3784
        %v4088 = vpop.f32.mrb[0].mxu0
        %v4089 = vadd.f32 0.0, %v4088
        %v4090 = vpop.f32.mrb[0].mxu0
        %v4091 = vadd.f32 0.0, %v4090
        %4092 = vmatprep.mubr.f32.mxu0 0.0
        %4093 = vmatmul.mubr.f32.gmra.mrb[0].mxu0 %v3787
        %v4094 = vpop.f32.mrb[0].mxu0
        %v4095 = vadd.f32 0.0, %v4094
        %v4096 = vpop.f32.mrb[0].mxu0
        %v4097 = vadd.f32 0.0, %v4096
        %4098 = vmatprep.mubr.f32.mxu0 0.0
        %4099 = vmatmul.mubr.f32.gmra.mrb[0].mxu0 %v3790
        %v4100 = vpop.f32.mrb[0].mxu0
        %v4101 = vadd.f32 0.0, %v4100
        %v4102 = vpop.f32.mrb[0].mxu0
        %v4103 = vadd.f32 0.0, %v4102
        %4104 = vmatprep.mubr.f32.mxu0 0.0
        %4105 = vmatmul.mubr.f32.gmra.mrb[0].mxu0 %v3793
        %v4106 = vpop.f32.mrb[0].mxu0
        %v4107 = vadd.f32 0.0, %v4106
        %v4108 = vpop.f32.mrb[0].mxu0
        %v4109 = vadd.f32 0.0, %v4108
        %4110 = vmatprep.mubr.f32.mxu0 0.0
        %4111 = vmatmul.mubr.f32.gmra.mrb[0].mxu0 %v3796
        %v4112 = vpop.f32.mrb[0].mxu0
        %v4113 = vadd.f32 0.0, %v4112
        %v4114 = vpop.f32.mrb[0].mxu0
        %v4115 = vadd.f32 0.0, %v4114
        %4116 = vmatprep.mubr.f32.mxu0 0.0
        %4117 = vmatmul.mubr.f32.gmra.mrb[0].mxu0 %v3799
        %v4118 = vpop.f32.mrb[0].mxu0
        %v4119 = vadd.f32 0.0, %v4118
        %v4120 = vpop.f32.mrb[0].mxu0
        %v4121 = vadd.f32 0.0, %v4120
        %4122 = vdwg.mxu0
        %v4123 = vmul.f32 %v3868, 0.5
        %v4124 = vmul.f32 %v3870, 0.5
        %v4125 = vmul.f32 %v4029, 0.5
        %v4126 = vmul.f32 %v4031, 0.5
        %v4127 = vmul.f32 %v3874, 0.5
        %v4128 = vmul.f32 %v3876, 0.5
        %v4129 = vmul.f32 %v4035, 0.5
        %v4130 = vmul.f32 %v4037, 0.5
        %v4131 = vmul.f32 %v3880, 0.5
        %v4132 = vmul.f32 %v3882, 0.5
        %v4133 = vmul.f32 %v4041, 0.5
        %v4134 = vmul.f32 %v4043, 0.5
        %v4135 = vmul.f32 %v3886, 0.5
        %v4136 = vmul.f32 %v3888, 0.5
        %v4137 = vmul.f32 %v4047, 0.5
        %v4138 = vmul.f32 %v4049, 0.5
        %v4139 = vmul.f32 %v3892, 0.5
        %v4140 = vmul.f32 %v3894, 0.5
        %v4141 = vmul.f32 %v4053, 0.5
        %v4142 = vmul.f32 %v4055, 0.5
        %v4143 = vmul.f32 %v3898, 0.5
        %v4144 = vmul.f32 %v3900, 0.5
        %v4145 = vmul.f32 %v4059, 0.5
        %v4146 = vmul.f32 %v4061, 0.5
        %v4147 = vmul.f32 %v3904, 0.5
        %v4148 = vmul.f32 %v3906, 0.5
        %v4149 = vmul.f32 %v4065, 0.5
        %v4150 = vmul.f32 %v4067, 0.5
        %v4151 = vmul.f32 %v3910, 0.5
        %v4152 = vmul.f32 %v3912, 0.5
        %v4153 = vmul.f32 %v4071, 0.5
        %v4154 = vmul.f32 %v4073, 0.5
        %v4155 = vmul.f32 %v3868, 0.70710677
        %v4156 = vmul.f32 %v3870, 0.70710677
        %v4157 = vmul.f32 %v4029, 0.70710677
        %v4158 = vmul.f32 %v4031, 0.70710677
        %v4159 = vmul.f32 %v3874, 0.70710677
        %v4160 = vmul.f32 %v3876, 0.70710677
        %v4161 = vmul.f32 %v4035, 0.70710677
        %v4162 = vmul.f32 %v4037, 0.70710677
        %v4163 = vmul.f32 %v3880, 0.70710677
        %v4164 = vmul.f32 %v3882, 0.70710677
        %v4165 = vmul.f32 %v4041, 0.70710677
        %v4166 = vmul.f32 %v4043, 0.70710677
        %v4167 = vmul.f32 %v3886, 0.70710677
        %v4168 = vmul.f32 %v3888, 0.70710677
        %v4169 = vmul.f32 %v4047, 0.70710677
        %v4170 = vmul.f32 %v4049, 0.70710677
        %v4171 = vmul.f32 %v3892, 0.70710677
        %v4172 = vmul.f32 %v3894, 0.70710677
        %v4173 = vmul.f32 %v4053, 0.70710677
        %v4174 = vmul.f32 %v4055, 0.70710677
        %v4175 = vmul.f32 %v3898, 0.70710677
        %v4176 = vmul.f32 %v3900, 0.70710677
        %v4177 = vmul.f32 %v4059, 0.70710677
        %v4178 = vmul.f32 %v4061, 0.70710677
        %v4179 = vmul.f32 %v3904, 0.70710677
        %v4180 = vmul.f32 %v3906, 0.70710677
        %v4181 = vmul.f32 %v4065, 0.70710677
        %v4182 = vmul.f32 %v4067, 0.70710677
        %v4183 = vmul.f32 %v3910, 0.70710677
        %v4184 = vmul.f32 %v3912, 0.70710677
        %v4185 = vmul.f32 %v4071, 0.70710677
        %v4186 = vmul.f32 %v4073, 0.70710677
        %v4187 = verf.f32.pop %v4155
        %v4188 = verf.f32.pop %v4156
        %v4189 = verf.f32.pop %v4157
        %v4190 = verf.f32.pop %v4158
        %v4191 = verf.f32.pop %v4159
        %v4192 = verf.f32.pop %v4160
        %v4193 = verf.f32.pop %v4161
        %v4194 = verf.f32.pop %v4162
        %v4195 = verf.f32.pop %v4163
        %v4196 = verf.f32.pop %v4164
        %v4197 = verf.f32.pop %v4165
        %v4198 = verf.f32.pop %v4166
        %v4199 = verf.f32.pop %v4167
        %v4200 = verf.f32.pop %v4168
        %v4201 = verf.f32.pop %v4169
        %v4202 = verf.f32.pop %v4170
        %v4203 = verf.f32.pop %v4171
        %v4204 = verf.f32.pop %v4172
        %v4205 = verf.f32.pop %v4173
        %v4206 = verf.f32.pop %v4174
        %v4207 = verf.f32.pop %v4175
        %v4208 = verf.f32.pop %v4176
        %v4209 = verf.f32.pop %v4177
        %v4210 = verf.f32.pop %v4178
        %v4211 = verf.f32.pop %v4179
        %v4212 = verf.f32.pop %v4180
        %v4213 = verf.f32.pop %v4181
        %v4214 = verf.f32.pop %v4182
        %v4215 = verf.f32.pop %v4183
        %v4216 = verf.f32.pop %v4184
        %v4217 = verf.f32.pop %v4185
        %v4218 = verf.f32.pop %v4186
        %v4219 = vadd.f32 %v4187, 1.0
        %v4220 = vadd.f32 %v4188, 1.0
        %v4221 = vadd.f32 %v4189, 1.0
        %v4222 = vadd.f32 %v4190, 1.0
        %v4223 = vadd.f32 %v4191, 1.0
        %v4224 = vadd.f32 %v4192, 1.0
        %v4225 = vadd.f32 %v4193, 1.0
        %v4226 = vadd.f32 %v4194, 1.0
        %v4227 = vadd.f32 %v4195, 1.0
        %v4228 = vadd.f32 %v4196, 1.0
        %v4229 = vadd.f32 %v4197, 1.0
        %v4230 = vadd.f32 %v4198, 1.0
        %v4231 = vadd.f32 %v4199, 1.0
        %v4232 = vadd.f32 %v4200, 1.0
        %v4233 = vadd.f32 %v4201, 1.0
        %v4234 = vadd.f32 %v4202, 1.0
        %v4235 = vadd.f32 %v4203, 1.0
        %v4236 = vadd.f32 %v4204, 1.0
        %v4237 = vadd.f32 %v4205, 1.0
        %v4238 = vadd.f32 %v4206, 1.0
        %v4239 = vadd.f32 %v4207, 1.0
        %v4240 = vadd.f32 %v4208, 1.0
        %v4241 = vadd.f32 %v4209, 1.0
        %v4242 = vadd.f32 %v4210, 1.0
        %v4243 = vadd.f32 %v4211, 1.0
        %v4244 = vadd.f32 %v4212, 1.0
        %v4245 = vadd.f32 %v4213, 1.0
        %v4246 = vadd.f32 %v4214, 1.0
        %v4247 = vadd.f32 %v4215, 1.0
        %v4248 = vadd.f32 %v4216, 1.0
        %v4249 = vadd.f32 %v4217, 1.0
        %v4250 = vadd.f32 %v4218, 1.0
        %v4251 = vmul.f32 %v4123, %v4219
        %v4252 = vmul.f32 %v4124, %v4220
        %v4253 = vmul.f32 %v4125, %v4221
        %v4254 = vmul.f32 %v4126, %v4222
        %v4255 = vmul.f32 %v4127, %v4223
        %v4256 = vmul.f32 %v4128, %v4224
        %v4257 = vmul.f32 %v4129, %v4225
        %v4258 = vmul.f32 %v4130, %v4226
        %v4259 = vmul.f32 %v4131, %v4227
        %v4260 = vmul.f32 %v4132, %v4228
        %v4261 = vmul.f32 %v4133, %v4229
        %v4262 = vmul.f32 %v4134, %v4230
        %v4263 = vmul.f32 %v4135, %v4231
        %v4264 = vmul.f32 %v4136, %v4232
        %v4265 = vmul.f32 %v4137, %v4233
        %v4266 = vmul.f32 %v4138, %v4234
        %v4267 = vmul.f32 %v4139, %v4235
        %v4268 = vmul.f32 %v4140, %v4236
        %v4269 = vmul.f32 %v4141, %v4237
        %v4270 = vmul.f32 %v4142, %v4238
        %v4271 = vmul.f32 %v4143, %v4239
        %v4272 = vmul.f32 %v4144, %v4240
        %v4273 = vmul.f32 %v4145, %v4241
        %v4274 = vmul.f32 %v4146, %v4242
        %v4275 = vmul.f32 %v4147, %v4243
        %v4276 = vmul.f32 %v4148, %v4244
        %v4277 = vmul.f32 %v4149, %v4245
        %v4278 = vmul.f32 %v4150, %v4246
        %v4279 = vmul.f32 %v4151, %v4247
        %v4280 = vmul.f32 %v4152, %v4248
        %v4281 = vmul.f32 %v4153, %v4249
        %v4282 = vmul.f32 %v4154, %v4250
        %v4283 = vld [vmem:[%s1 + $0xc0] sm:$0xff]
        %v4284 = vld [vmem:[%s1 + $0xc8] sm:$0xff]
        %v4285 = vld [vmem:[%s1 + $0xd0] sm:$0xff]
        %v4286 = vld [vmem:[%s1 + $0xd8] sm:$0xff]
        %v4287 = vld [vmem:[%s1 + $0xe0] sm:$0xff]
        %v4288 = vld [vmem:[%s1 + $0xe8] sm:$0xff]
        %v4289 = vld [vmem:[%s1 + $0xf0] sm:$0xff]
        %v4290 = vld [vmem:[%s1 + $0xf8] sm:$0xff]
        %v4292 = vsel %vm3752, %v4283, 0
        %v4295 = vsel %vm3752, %v4284, 0
        %v4298 = vsel %vm3752, %v4285, 0
        %v4301 = vsel %vm3752, %v4286, 0
        %v4304 = vsel %vm3752, %v4287, 0
        %v4307 = vsel %vm3752, %v4288, 0
        %v4310 = vsel %vm3752, %v4289, 0
        %v4313 = vsel %vm3752, %v4290, 0
        %4315 = vmatprep.subr.mxu0 %v4252
        %4316 = vmatpush1.msra.mxu0 %v4251
        %4317 = vmatprep.subr.mxu0 %v4256
        %4318 = vmatpush1.msra.mxu0 %v4255
        %4319 = vmatprep.subr.mxu0 %v4260
        %4320 = vmatpush1.msra.mxu0 %v4259
        %4321 = vmatprep.subr.mxu0 %v4264
        %4322 = vmatpush1.msra.mxu0 %v4263
        %4323 = vmatprep.subr.mxu0 %v4268
        %4324 = vmatpush1.msra.mxu0 %v4267
        %4325 = vmatprep.subr.mxu0 %v4272
        %4326 = vmatpush1.msra.mxu0 %v4271
        %4327 = vmatprep.subr.mxu0 %v4276
        %4328 = vmatpush1.msra.mxu0 %v4275
        %4329 = vmatprep.subr.mxu0 %v4280
        %4330 = vmatpush1.msra.mxu0 %v4279
        %4331 = vmatprep.subr.mxu0 0.0
        %4332 = vmatpush1.msra.mxu0 0.0
        %4333 = vmatprep.subr.mxu0 0.0
        %4334 = vmatpush1.msra.mxu0 0.0
        %4335 = vmatprep.subr.mxu0 0.0
        %4336 = vmatpush1.msra.mxu0 0.0
        %4337 = vmatprep.subr.mxu0 0.0
        %4338 = vmatpush1.msra.mxu0 0.0
        %4339 = vmatprep.subr.mxu0 0.0
        %4340 = vmatpush1.msra.mxu0 0.0
        %4341 = vmatprep.subr.mxu0 0.0
        %4342 = vmatpush1.msra.mxu0 0.0
        %4343 = vmatprep.subr.mxu0 0.0
        %4344 = vmatpush1.msra.mxu0 0.0
        %4345 = vmatprep.subr.mxu0 0.0
        %4346 = vmatpush1.msra.mxu0 0.0
        %4347 = vmatprep.subr.mxu0 0.0
        %4348 = vmatpush1.msra.mxu0 0.0
        %4349 = vmatprep.subr.mxu0 0.0
        %4350 = vmatpush1.msra.mxu0 0.0
        %4351 = vmatprep.subr.mxu0 0.0
        %4352 = vmatpush1.msra.mxu0 0.0
        %4353 = vmatprep.subr.mxu0 0.0
        %4354 = vmatpush1.msra.mxu0 0.0
        %4355 = vmatprep.subr.mxu0 0.0
        %4356 = vmatpush1.msra.mxu0 0.0
        %4357 = vmatprep.subr.mxu0 0.0
        %4358 = vmatpush1.msra.mxu0 0.0
        %4359 = vmatprep.subr.mxu0 0.0
        %4360 = vmatpush1.msra.mxu0 0.0
        %4361 = vmatprep.subr.mxu0 0.0
        %4362 = vmatpush1.msra.mxu0 0.0
        %4363 = vmatprep.subr.mxu0 0.0
        %4364 = vmatpush1.msra.mxu0 0.0
        %4365 = vmatprep.subr.mxu0 0.0
        %4366 = vmatpush1.msra.mxu0 0.0
        %4367 = vmatprep.subr.mxu0 0.0
        %4368 = vmatpush1.msra.mxu0 0.0
        %4369 = vmatprep.subr.mxu0 0.0
        %4370 = vmatpush1.msra.mxu0 0.0
        %4371 = vmatprep.subr.mxu0 0.0
        %4372 = vmatpush1.msra.mxu0 0.0
        %4373 = vmatprep.subr.mxu0 0.0
        %4374 = vmatpush1.msra.mxu0 0.0
        %4375 = vmatprep.subr.mxu0 0.0
        %4376 = vmatpush1.msra.mxu0 0.0
        %4377 = vmatprep.subr.mxu0 0.0
        %4378 = vmatpush1.msra.mxu0 0.0
        %4379 = vmatprep.mubr.f32.mxu0 0.0
        %4380 = vmatmul.mubr.f32.gmra.mrb[0].mxu0 %v4292
        %v4381 = vpop.f32.mrb[0].mxu0
        %v4382 = vadd.f32 0.0, %v4381
        %v4383 = vpop.f32.mrb[0].mxu0
        %v4384 = vadd.f32 0.0, %v4383
        %4385 = vmatprep.mubr.f32.mxu0 0.0
        %4386 = vmatmul.mubr.f32.gmra.mrb[0].mxu0 %v4295
        %v4387 = vpop.f32.mrb[0].mxu0
        %v4388 = vadd.f32 0.0, %v4387
        %v4389 = vpop.f32.mrb[0].mxu0
        %v4390 = vadd.f32 0.0, %v4389
        %4391 = vmatprep.mubr.f32.mxu0 0.0
        %4392 = vmatmul.mubr.f32.gmra.mrb[0].mxu0 %v4298
        %v4393 = vpop.f32.mrb[0].mxu0
        %v4394 = vadd.f32 0.0, %v4393
        %v4395 = vpop.f32.mrb[0].mxu0
        %v4396 = vadd.f32 0.0, %v4395
        %4397 = vmatprep.mubr.f32.mxu0 0.0
        %4398 = vmatmul.mubr.f32.gmra.mrb[0].mxu0 %v4301
        %v4399 = vpop.f32.mrb[0].mxu0
        %v4400 = vadd.f32 0.0, %v4399
        %v4401 = vpop.f32.mrb[0].mxu0
        %v4402 = vadd.f32 0.0, %v4401
        %4403 = vmatprep.mubr.f32.mxu0 0.0
        %4404 = vmatmul.mubr.f32.gmra.mrb[0].mxu0 %v4304
        %v4405 = vpop.f32.mrb[0].mxu0
        %v4406 = vadd.f32 0.0, %v4405
        %v4407 = vpop.f32.mrb[0].mxu0
        %v4408 = vadd.f32 0.0, %v4407
        %4409 = vmatprep.mubr.f32.mxu0 0.0
        %4410 = vmatmul.mubr.f32.gmra.mrb[0].mxu0 %v4307
        %v4411 = vpop.f32.mrb[0].mxu0
        %v4412 = vadd.f32 0.0, %v4411
        %v4413 = vpop.f32.mrb[0].mxu0
        %v4414 = vadd.f32 0.0, %v4413
        %4415 = vmatprep.mubr.f32.mxu0 0.0
        %4416 = vmatmul.mubr.f32.gmra.mrb[0].mxu0 %v4310
        %v4417 = vpop.f32.mrb[0].mxu0
        %v4418 = vadd.f32 0.0, %v4417
        %v4419 = vpop.f32.mrb[0].mxu0
        %v4420 = vadd.f32 0.0, %v4419
        %4421 = vmatprep.mubr.f32.mxu0 0.0
        %4422 = vmatmul.mubr.f32.gmra.mrb[0].mxu0 %v4313
        %v4423 = vpop.f32.mrb[0].mxu0
        %v4424 = vadd.f32 0.0, %v4423
        %v4425 = vpop.f32.mrb[0].mxu0
        %v4426 = vadd.f32 0.0, %v4425
        %4427 = vdwg.mxu0
        %4428 = vmatprep.subr.mxu0 %v4254
        %4429 = vmatpush1.msra.mxu0 %v4253
        %4430 = vmatprep.subr.mxu0 %v4258
        %4431 = vmatpush1.msra.mxu0 %v4257
        %4432 = vmatprep.subr.mxu0 %v4262
        %4433 = vmatpush1.msra.mxu0 %v4261
        %4434 = vmatprep.subr.mxu0 %v4266
        %4435 = vmatpush1.msra.mxu0 %v4265
        %4436 = vmatprep.subr.mxu0 %v4270
        %4437 = vmatpush1.msra.mxu0 %v4269
        %4438 = vmatprep.subr.mxu0 %v4274
        %4439 = vmatpush1.msra.mxu0 %v4273
        %4440 = vmatprep.subr.mxu0 %v4278
        %4441 = vmatpush1.msra.mxu0 %v4277
        %4442 = vmatprep.subr.mxu0 %v4282
        %4443 = vmatpush1.msra.mxu0 %v4281
        %4444 = vmatprep.subr.mxu0 0.0
        %4445 = vmatpush1.msra.mxu0 0.0
        %4446 = vmatprep.subr.mxu0 0.0
        %4447 = vmatpush1.msra.mxu0 0.0
        %4448 = vmatprep.subr.mxu0 0.0
        %4449 = vmatpush1.msra.mxu0 0.0
        %4450 = vmatprep.subr.mxu0 0.0
        %4451 = vmatpush1.msra.mxu0 0.0
        %4452 = vmatprep.subr.mxu0 0.0
        %4453 = vmatpush1.msra.mxu0 0.0
        %4454 = vmatprep.subr.mxu0 0.0
        %4455 = vmatpush1.msra.mxu0 0.0
        %4456 = vmatprep.subr.mxu0 0.0
        %4457 = vmatpush1.msra.mxu0 0.0
        %4458 = vmatprep.subr.mxu0 0.0
        %4459 = vmatpush1.msra.mxu0 0.0
        %4460 = vmatprep.subr.mxu0 0.0
        %4461 = vmatpush1.msra.mxu0 0.0
        %4462 = vmatprep.subr.mxu0 0.0
        %4463 = vmatpush1.msra.mxu0 0.0
        %4464 = vmatprep.subr.mxu0 0.0
        %4465 = vmatpush1.msra.mxu0 0.0
        %4466 = vmatprep.subr.mxu0 0.0
        %4467 = vmatpush1.msra.mxu0 0.0
        %4468 = vmatprep.subr.mxu0 0.0
        %4469 = vmatpush1.msra.mxu0 0.0
        %4470 = vmatprep.subr.mxu0 0.0
        %4471 = vmatpush1.msra.mxu0 0.0
        %4472 = vmatprep.subr.mxu0 0.0
        %4473 = vmatpush1.msra.mxu0 0.0
        %4474 = vmatprep.subr.mxu0 0.0
        %4475 = vmatpush1.msra.mxu0 0.0
        %4476 = vmatprep.subr.mxu0 0.0
        %4477 = vmatpush1.msra.mxu0 0.0
        %4478 = vmatprep.subr.mxu0 0.0
        %4479 = vmatpush1.msra.mxu0 0.0
        %4480 = vmatprep.subr.mxu0 0.0
        %4481 = vmatpush1.msra.mxu0 0.0
        %4482 = vmatprep.subr.mxu0 0.0
        %4483 = vmatpush1.msra.mxu0 0.0
        %4484 = vmatprep.subr.mxu0 0.0
        %4485 = vmatpush1.msra.mxu0 0.0
        %4486 = vmatprep.subr.mxu0 0.0
        %4487 = vmatpush1.msra.mxu0 0.0
        %4488 = vmatprep.subr.mxu0 0.0
        %4489 = vmatpush1.msra.mxu0 0.0
        %4490 = vmatprep.subr.mxu0 0.0
        %4491 = vmatpush1.msra.mxu0 0.0
        %4492 = vmatprep.mubr.f32.mxu0 0.0
        %4493 = vmatmul.mubr.f32.gmra.mrb[0].mxu0 %v4292
        %v4494 = vpop.f32.mrb[0].mxu0
        %v4495 = vadd.f32 0.0, %v4494
        %v4496 = vpop.f32.mrb[0].mxu0
        %v4497 = vadd.f32 0.0, %v4496
        %4498 = vmatprep.mubr.f32.mxu0 0.0
        %4499 = vmatmul.mubr.f32.gmra.mrb[0].mxu0 %v4295
        %v4500 = vpop.f32.mrb[0].mxu0
        %v4501 = vadd.f32 0.0, %v4500
        %v4502 = vpop.f32.mrb[0].mxu0
        %v4503 = vadd.f32 0.0, %v4502
        %4504 = vmatprep.mubr.f32.mxu0 0.0
        %4505 = vmatmul.mubr.f32.gmra.mrb[0].mxu0 %v4298
        %v4506 = vpop.f32.mrb[0].mxu0
        %v4507 = vadd.f32 0.0, %v4506
        %v4508 = vpop.f32.mrb[0].mxu0
        %v4509 = vadd.f32 0.0, %v4508
        %4510 = vmatprep.mubr.f32.mxu0 0.0
        %4511 = vmatmul.mubr.f32.gmra.mrb[0].mxu0 %v4301
        %v4512 = vpop.f32.mrb[0].mxu0
        %v4513 = vadd.f32 0.0, %v4512
        %v4514 = vpop.f32.mrb[0].mxu0
        %v4515 = vadd.f32 0.0, %v4514
        %4516 = vmatprep.mubr.f32.mxu0 0.0
        %4517 = vmatmul.mubr.f32.gmra.mrb[0].mxu0 %v4304
        %v4518 = vpop.f32.mrb[0].mxu0
        %v4519 = vadd.f32 0.0, %v4518
        %v4520 = vpop.f32.mrb[0].mxu0
        %v4521 = vadd.f32 0.0, %v4520
        %4522 = vmatprep.mubr.f32.mxu0 0.0
        %4523 = vmatmul.mubr.f32.gmra.mrb[0].mxu0 %v4307
        %v4524 = vpop.f32.mrb[0].mxu0
        %v4525 = vadd.f32 0.0, %v4524
        %v4526 = vpop.f32.mrb[0].mxu0
        %v4527 = vadd.f32 0.0, %v4526
        %4528 = vmatprep.mubr.f32.mxu0 0.0
        %4529 = vmatmul.mubr.f32.gmra.mrb[0].mxu0 %v4310
        %v4530 = vpop.f32.mrb[0].mxu0
        %v4531 = vadd.f32 0.0, %v4530
        %v4532 = vpop.f32.mrb[0].mxu0
        %v4533 = vadd.f32 0.0, %v4532
        %4534 = vmatprep.mubr.f32.mxu0 0.0
        %4535 = vmatmul.mubr.f32.gmra.mrb[0].mxu0 %v4313
        %v4536 = vpop.f32.mrb[0].mxu0
        %v4537 = vadd.f32 0.0, %v4536
        %v4538 = vpop.f32.mrb[0].mxu0
        %v4539 = vadd.f32 0.0, %v4538
        %4540 = vdwg.mxu0
        %v4541 = vadd.f32 %v3916, %v4382
        %v4542 = vadd.f32 %v3918, %v4384
        %v4543 = vadd.f32 %v4077, %v4495
        %v4544 = vadd.f32 %v4079, %v4497
        %v4545 = vadd.f32 %v3922, %v4388
        %v4546 = vadd.f32 %v3924, %v4390
        %v4547 = vadd.f32 %v4083, %v4501
        %v4548 = vadd.f32 %v4085, %v4503
        %v4549 = vadd.f32 %v3928, %v4394
        %v4550 = vadd.f32 %v3930, %v4396
        %v4551 = vadd.f32 %v4089, %v4507
        %v4552 = vadd.f32 %v4091, %v4509
        %v4553 = vadd.f32 %v3934, %v4400
        %v4554 = vadd.f32 %v3936, %v4402
        %v4555 = vadd.f32 %v4095, %v4513
        %v4556 = vadd.f32 %v4097, %v4515
        %v4557 = vadd.f32 %v3940, %v4406
        %v4558 = vadd.f32 %v3942, %v4408
        %v4559 = vadd.f32 %v4101, %v4519
        %v4560 = vadd.f32 %v4103, %v4521
        %v4561 = vadd.f32 %v3946, %v4412
        %v4562 = vadd.f32 %v3948, %v4414
        %v4563 = vadd.f32 %v4107, %v4525
        %v4564 = vadd.f32 %v4109, %v4527
        %v4565 = vadd.f32 %v3952, %v4418
        %v4566 = vadd.f32 %v3954, %v4420
        %v4567 = vadd.f32 %v4113, %v4531
        %v4568 = vadd.f32 %v4115, %v4533
        %v4569 = vadd.f32 %v3958, %v4424
        %v4570 = vadd.f32 %v3960, %v4426
        %v4571 = vadd.f32 %v4119, %v4537
        %v4572 = vadd.f32 %v4121, %v4539
        %v4573 = vmul.f32 %v4541, 0.5
        %v4574 = vmul.f32 %v4542, 0.5
        %v4575 = vmul.f32 %v4543, 0.5
        %v4576 = vmul.f32 %v4544, 0.5
        %v4577 = vmul.f32 %v4545, 0.5
        %v4578 = vmul.f32 %v4546, 0.5
        %v4579 = vmul.f32 %v4547, 0.5
        %v4580 = vmul.f32 %v4548, 0.5
        %v4581 = vmul.f32 %v4549, 0.5
        %v4582 = vmul.f32 %v4550, 0.5
        %v4583 = vmul.f32 %v4551, 0.5
        %v4584 = vmul.f32 %v4552, 0.5
        %v4585 = vmul.f32 %v4553, 0.5
        %v4586 = vmul.f32 %v4554, 0.5
        %v4587 = vmul.f32 %v4555, 0.5
        %v4588 = vmul.f32 %v4556, 0.5
        %v4589 = vmul.f32 %v4557, 0.5
        %v4590 = vmul.f32 %v4558, 0.5
        %v4591 = vmul.f32 %v4559, 0.5
        %v4592 = vmul.f32 %v4560, 0.5
        %v4593 = vmul.f32 %v4561, 0.5
        %v4594 = vmul.f32 %v4562, 0.5
        %v4595 = vmul.f32 %v4563, 0.5
        %v4596 = vmul.f32 %v4564, 0.5
        %v4597 = vmul.f32 %v4565, 0.5
        %v4598 = vmul.f32 %v4566, 0.5
        %v4599 = vmul.f32 %v4567, 0.5
        %v4600 = vmul.f32 %v4568, 0.5
        %v4601 = vmul.f32 %v4569, 0.5
        %v4602 = vmul.f32 %v4570, 0.5
        %v4603 = vmul.f32 %v4571, 0.5
        %v4604 = vmul.f32 %v4572, 0.5
        %v4605 = vmul.f32 %v4541, 0.70710677
        %v4606 = vmul.f32 %v4542, 0.70710677
        %v4607 = vmul.f32 %v4543, 0.70710677
        %v4608 = vmul.f32 %v4544, 0.70710677
        %v4609 = vmul.f32 %v4545, 0.70710677
        %v4610 = vmul.f32 %v4546, 0.70710677
        %v4611 = vmul.f32 %v4547, 0.70710677
        %v4612 = vmul.f32 %v4548, 0.70710677
        %v4613 = vmul.f32 %v4549, 0.70710677
        %v4614 = vmul.f32 %v4550, 0.70710677
        %v4615 = vmul.f32 %v4551, 0.70710677
        %v4616 = vmul.f32 %v4552, 0.70710677
        %v4617 = vmul.f32 %v4553, 0.70710677
        %v4618 = vmul.f32 %v4554, 0.70710677
        %v4619 = vmul.f32 %v4555, 0.70710677
        %v4620 = vmul.f32 %v4556, 0.70710677
        %v4621 = vmul.f32 %v4557, 0.70710677
        %v4622 = vmul.f32 %v4558, 0.70710677
        %v4623 = vmul.f32 %v4559, 0.70710677
        %v4624 = vmul.f32 %v4560, 0.70710677
        %v4625 = vmul.f32 %v4561, 0.70710677
        %v4626 = vmul.f32 %v4562, 0.70710677
        %v4627 = vmul.f32 %v4563, 0.70710677
        %v4628 = vmul.f32 %v4564, 0.70710677
        %v4629 = vmul.f32 %v4565, 0.70710677
        %v4630 = vmul.f32 %v4566, 0.70710677
        %v4631 = vmul.f32 %v4567, 0.70710677
        %v4632 = vmul.f32 %v4568, 0.70710677
        %v4633 = vmul.f32 %v4569, 0.70710677
        %v4634 = vmul.f32 %v4570, 0.70710677
        %v4635 = vmul.f32 %v4571, 0.70710677
        %v4636 = vmul.f32 %v4572, 0.70710677
        %v4637 = verf.f32.pop %v4605
        %v4638 = verf.f32.pop %v4606
        %v4639 = verf.f32.pop %v4607
        %v4640 = verf.f32.pop %v4608
        %v4641 = verf.f32.pop %v4609
        %v4642 = verf.f32.pop %v4610
        %v4643 = verf.f32.pop %v4611
        %v4644 = verf.f32.pop %v4612
        %v4645 = verf.f32.pop %v4613
        %v4646 = verf.f32.pop %v4614
        %v4647 = verf.f32.pop %v4615
        %v4648 = verf.f32.pop %v4616
        %v4649 = verf.f32.pop %v4617
        %v4650 = verf.f32.pop %v4618
        %v4651 = verf.f32.pop %v4619
        %v4652 = verf.f32.pop %v4620
        %v4653 = verf.f32.pop %v4621
        %v4654 = verf.f32.pop %v4622
        %v4655 = verf.f32.pop %v4623
        %v4656 = verf.f32.pop %v4624
        %v4657 = verf.f32.pop %v4625
        %v4658 = verf.f32.pop %v4626
        %v4659 = verf.f32.pop %v4627
        %v4660 = verf.f32.pop %v4628
        %v4661 = verf.f32.pop %v4629
        %v4662 = verf.f32.pop %v4630
        %v4663 = verf.f32.pop %v4631
        %v4664 = verf.f32.pop %v4632
        %v4665 = verf.f32.pop %v4633
        %v4666 = verf.f32.pop %v4634
        %v4667 = verf.f32.pop %v4635
        %v4668 = verf.f32.pop %v4636
        %v4669 = vadd.f32 %v4637, 1.0
        %v4670 = vadd.f32 %v4638, 1.0
        %v4671 = vadd.f32 %v4639, 1.0
        %v4672 = vadd.f32 %v4640, 1.0
        %v4673 = vadd.f32 %v4641, 1.0
        %v4674 = vadd.f32 %v4642, 1.0
        %v4675 = vadd.f32 %v4643, 1.0
        %v4676 = vadd.f32 %v4644, 1.0
        %v4677 = vadd.f32 %v4645, 1.0
        %v4678 = vadd.f32 %v4646, 1.0
        %v4679 = vadd.f32 %v4647, 1.0
        %v4680 = vadd.f32 %v4648, 1.0
        %v4681 = vadd.f32 %v4649, 1.0
        %v4682 = vadd.f32 %v4650, 1.0
        %v4683 = vadd.f32 %v4651, 1.0
        %v4684 = vadd.f32 %v4652, 1.0
        %v4685 = vadd.f32 %v4653, 1.0
        %v4686 = vadd.f32 %v4654, 1.0
        %v4687 = vadd.f32 %v4655, 1.0
        %v4688 = vadd.f32 %v4656, 1.0
        %v4689 = vadd.f32 %v4657, 1.0
        %v4690 = vadd.f32 %v4658, 1.0
        %v4691 = vadd.f32 %v4659, 1.0
        %v4692 = vadd.f32 %v4660, 1.0
        %v4693 = vadd.f32 %v4661, 1.0
        %v4694 = vadd.f32 %v4662, 1.0
        %v4695 = vadd.f32 %v4663, 1.0
        %v4696 = vadd.f32 %v4664, 1.0
        %v4697 = vadd.f32 %v4665, 1.0
        %v4698 = vadd.f32 %v4666, 1.0
        %v4699 = vadd.f32 %v4667, 1.0
        %v4700 = vadd.f32 %v4668, 1.0
        %v4701 = vmul.f32 %v4573, %v4669
        %v4702 = vmul.f32 %v4574, %v4670
        %v4703 = vmul.f32 %v4575, %v4671
        %v4704 = vmul.f32 %v4576, %v4672
        %v4705 = vmul.f32 %v4577, %v4673
        %v4706 = vmul.f32 %v4578, %v4674
        %v4707 = vmul.f32 %v4579, %v4675
        %v4708 = vmul.f32 %v4580, %v4676
        %v4709 = vmul.f32 %v4581, %v4677
        %v4710 = vmul.f32 %v4582, %v4678
        %v4711 = vmul.f32 %v4583, %v4679
        %v4712 = vmul.f32 %v4584, %v4680
        %v4713 = vmul.f32 %v4585, %v4681
        %v4714 = vmul.f32 %v4586, %v4682
        %v4715 = vmul.f32 %v4587, %v4683
        %v4716 = vmul.f32 %v4588, %v4684
        %v4717 = vmul.f32 %v4589, %v4685
        %v4718 = vmul.f32 %v4590, %v4686
        %v4719 = vmul.f32 %v4591, %v4687
        %v4720 = vmul.f32 %v4592, %v4688
        %v4721 = vmul.f32 %v4593, %v4689
        %v4722 = vmul.f32 %v4594, %v4690
        %v4723 = vmul.f32 %v4595, %v4691
        %v4724 = vmul.f32 %v4596, %v4692
        %v4725 = vmul.f32 %v4597, %v4693
        %v4726 = vmul.f32 %v4598, %v4694
        %v4727 = vmul.f32 %v4599, %v4695
        %v4728 = vmul.f32 %v4600, %v4696
        %v4729 = vmul.f32 %v4601, %v4697
        %v4730 = vmul.f32 %v4602, %v4698
        %v4731 = vmul.f32 %v4603, %v4699
        %v4732 = vmul.f32 %v4604, %v4700
        %v4733 = vld [vmem:[%s1 + $0x100] sm:$0xff]
        %v4734 = vld [vmem:[%s1 + $0x108] sm:$0xff]
        %v4735 = vld [vmem:[%s1 + $0x110] sm:$0xff]
        %v4736 = vld [vmem:[%s1 + $0x118] sm:$0xff]
        %v4737 = vld [vmem:[%s1 + $0x120] sm:$0xff]
        %v4738 = vld [vmem:[%s1 + $0x128] sm:$0xff]
        %v4739 = vld [vmem:[%s1 + $0x130] sm:$0xff]
        %v4740 = vld [vmem:[%s1 + $0x138] sm:$0xff]
        %v4741 = vld [vmem:[%s1 + $0x140] sm:$0xff]
        %v4742 = vld [vmem:[%s1 + $0x148] sm:$0xff]
        %v4743 = vld [vmem:[%s1 + $0x150] sm:$0xff]
        %v4744 = vld [vmem:[%s1 + $0x158] sm:$0xff]
        %v4745 = vld [vmem:[%s1 + $0x160] sm:$0xff]
        %v4746 = vld [vmem:[%s1 + $0x168] sm:$0xff]
        %v4747 = vld [vmem:[%s1 + $0x170] sm:$0xff]
        %v4748 = vld [vmem:[%s1 + $0x178] sm:$0xff]
        %v4750 = vsel %vm3752, %v4741, 0
        %v4753 = vsel %vm3752, %v4742, 0
        %v4756 = vsel %vm3752, %v4743, 0
        %v4759 = vsel %vm3752, %v4744, 0
        %v4762 = vsel %vm3752, %v4745, 0
        %v4765 = vsel %vm3752, %v4746, 0
        %v4768 = vsel %vm3752, %v4747, 0
        %v4771 = vsel %vm3752, %v4748, 0
        %4773 = vmatprep.subr.mxu0 %v4252
        %4774 = vmatpush1.msra.mxu0 %v4251
        %4775 = vmatprep.subr.mxu0 %v4256
        %4776 = vmatpush1.msra.mxu0 %v4255
        %4777 = vmatprep.subr.mxu0 %v4260
        %4778 = vmatpush1.msra.mxu0 %v4259
        %4779 = vmatprep.subr.mxu0 %v4264
        %4780 = vmatpush1.msra.mxu0 %v4263
        %4781 = vmatprep.subr.mxu0 %v4268
        %4782 = vmatpush1.msra.mxu0 %v4267
        %4783 = vmatprep.subr.mxu0 %v4272
        %4784 = vmatpush1.msra.mxu0 %v4271
        %4785 = vmatprep.subr.mxu0 %v4276
        %4786 = vmatpush1.msra.mxu0 %v4275
        %4787 = vmatprep.subr.mxu0 %v4280
        %4788 = vmatpush1.msra.mxu0 %v4279
        %4789 = vmatprep.subr.mxu0 0.0
        %4790 = vmatpush1.msra.mxu0 0.0
        %4791 = vmatprep.subr.mxu0 0.0
        %4792 = vmatpush1.msra.mxu0 0.0
        %4793 = vmatprep.subr.mxu0 0.0
        %4794 = vmatpush1.msra.mxu0 0.0
        %4795 = vmatprep.subr.mxu0 0.0
        %4796 = vmatpush1.msra.mxu0 0.0
        %4797 = vmatprep.subr.mxu0 0.0
        %4798 = vmatpush1.msra.mxu0 0.0
        %4799 = vmatprep.subr.mxu0 0.0
        %4800 = vmatpush1.msra.mxu0 0.0
        %4801 = vmatprep.subr.mxu0 0.0
        %4802 = vmatpush1.msra.mxu0 0.0
        %4803 = vmatprep.subr.mxu0 0.0
        %4804 = vmatpush1.msra.mxu0 0.0
        %4805 = vmatprep.subr.mxu0 0.0
        %4806 = vmatpush1.msra.mxu0 0.0
        %4807 = vmatprep.subr.mxu0 0.0
        %4808 = vmatpush1.msra.mxu0 0.0
        %4809 = vmatprep.subr.mxu0 0.0
        %4810 = vmatpush1.msra.mxu0 0.0
        %4811 = vmatprep.subr.mxu0 0.0
        %4812 = vmatpush1.msra.mxu0 0.0
        %4813 = vmatprep.subr.mxu0 0.0
        %4814 = vmatpush1.msra.mxu0 0.0
        %4815 = vmatprep.subr.mxu0 0.0
        %4816 = vmatpush1.msra.mxu0 0.0
        %4817 = vmatprep.subr.mxu0 0.0
        %4818 = vmatpush1.msra.mxu0 0.0
        %4819 = vmatprep.subr.mxu0 0.0
        %4820 = vmatpush1.msra.mxu0 0.0
        %4821 = vmatprep.subr.mxu0 0.0
        %4822 = vmatpush1.msra.mxu0 0.0
        %4823 = vmatprep.subr.mxu0 0.0
        %4824 = vmatpush1.msra.mxu0 0.0
        %4825 = vmatprep.subr.mxu0 0.0
        %4826 = vmatpush1.msra.mxu0 0.0
        %4827 = vmatprep.subr.mxu0 0.0
        %4828 = vmatpush1.msra.mxu0 0.0
        %4829 = vmatprep.subr.mxu0 0.0
        %4830 = vmatpush1.msra.mxu0 0.0
        %4831 = vmatprep.subr.mxu0 0.0
        %4832 = vmatpush1.msra.mxu0 0.0
        %4833 = vmatprep.subr.mxu0 0.0
        %4834 = vmatpush1.msra.mxu0 0.0
        %4835 = vmatprep.subr.mxu0 0.0
        %4836 = vmatpush1.msra.mxu0 0.0
        %4837 = vmatprep.mubr.f32.mxu0 0.0
        %4838 = vmatmul.mubr.f32.gmra.mrb[0].mxu0 %v4750
        %v4839 = vpop.f32.mrb[0].mxu0
        %v4840 = vadd.f32 0.0, %v4839
        %v4841 = vpop.f32.mrb[0].mxu0
        %v4842 = vadd.f32 0.0, %v4841
        %4843 = vmatprep.mubr.f32.mxu0 0.0
        %4844 = vmatmul.mubr.f32.gmra.mrb[0].mxu0 %v4753
        %v4845 = vpop.f32.mrb[0].mxu0
        %v4846 = vadd.f32 0.0, %v4845
        %v4847 = vpop.f32.mrb[0].mxu0
        %v4848 = vadd.f32 0.0, %v4847
        %4849 = vmatprep.mubr.f32.mxu0 0.0
        %4850 = vmatmul.mubr.f32.gmra.mrb[0].mxu0 %v4756
        %v4851 = vpop.f32.mrb[0].mxu0
        %v4852 = vadd.f32 0.0, %v4851
        %v4853 = vpop.f32.mrb[0].mxu0
        %v4854 = vadd.f32 0.0, %v4853
        %4855 = vmatprep.mubr.f32.mxu0 0.0
        %4856 = vmatmul.mubr.f32.gmra.mrb[0].mxu0 %v4759
        %v4857 = vpop.f32.mrb[0].mxu0
        %v4858 = vpop.f32.mrb[0].mxu0
        %4859 = vmatprep.mubr.f32.mxu0 0.0
        %4860 = vmatmul.mubr.f32.gmra.mrb[0].mxu0 %v4762
        %v4861 = vpop.f32.mrb[0].mxu0
        %v4862 = vpop.f32.mrb[0].mxu0
        %4863 = vmatprep.mubr.f32.mxu0 0.0
        %4864 = vmatmul.mubr.f32.gmra.mrb[0].mxu0 %v4765
        %v4865 = vpop.f32.mrb[0].mxu0
        %v4866 = vpop.f32.mrb[0].mxu0
        %4867 = vmatprep.mubr.f32.mxu0 0.0
        %4868 = vmatmul.mubr.f32.gmra.mrb[0].mxu0 %v4768
        %v4869 = vpop.f32.mrb[0].mxu0
        %v4870 = vpop.f32.mrb[0].mxu0
        %4871 = vmatprep.mubr.f32.mxu0 0.0
        %4872 = vmatmul.mubr.f32.gmra.mrb[0].mxu0 %v4771
        %v4873 = vpop.f32.mrb[0].mxu0
        %v4874 = vpop.f32.mrb[0].mxu0
        %4875 = vdwg.mxu0
        %4876 = vmatprep.subr.mxu0 %v4254
        %4877 = vmatpush1.msra.mxu0 %v4253
        %4878 = vmatprep.subr.mxu0 %v4258
        %4879 = vmatpush1.msra.mxu0 %v4257
        %4880 = vmatprep.subr.mxu0 %v4262
        %4881 = vmatpush1.msra.mxu0 %v4261
        %4882 = vmatprep.subr.mxu0 %v4266
        %4883 = vmatpush1.msra.mxu0 %v4265
        %4884 = vmatprep.subr.mxu0 %v4270
        %4885 = vmatpush1.msra.mxu0 %v4269
        %4886 = vmatprep.subr.mxu0 %v4274
        %4887 = vmatpush1.msra.mxu0 %v4273
        %4888 = vmatprep.subr.mxu0 %v4278
        %4889 = vmatpush1.msra.mxu0 %v4277
        %4890 = vmatprep.subr.mxu0 %v4282
        %4891 = vmatpush1.msra.mxu0 %v4281
        %4892 = vmatprep.subr.mxu0 0.0
        %4893 = vmatpush1.msra.mxu0 0.0
        %4894 = vmatprep.subr.mxu0 0.0
        %4895 = vmatpush1.msra.mxu0 0.0
        %4896 = vmatprep.subr.mxu0 0.0
        %4897 = vmatpush1.msra.mxu0 0.0
        %4898 = vmatprep.subr.mxu0 0.0
        %4899 = vmatpush1.msra.mxu0 0.0
        %4900 = vmatprep.subr.mxu0 0.0
        %4901 = vmatpush1.msra.mxu0 0.0
        %4902 = vmatprep.subr.mxu0 0.0
        %4903 = vmatpush1.msra.mxu0 0.0
        %4904 = vmatprep.subr.mxu0 0.0
        %4905 = vmatpush1.msra.mxu0 0.0
        %4906 = vmatprep.subr.mxu0 0.0
        %4907 = vmatpush1.msra.mxu0 0.0
        %4908 = vmatprep.subr.mxu0 0.0
        %4909 = vmatpush1.msra.mxu0 0.0
        %4910 = vmatprep.subr.mxu0 0.0
        %4911 = vmatpush1.msra.mxu0 0.0
        %4912 = vmatprep.subr.mxu0 0.0
        %4913 = vmatpush1.msra.mxu0 0.0
        %4914 = vmatprep.subr.mxu0 0.0
        %4915 = vmatpush1.msra.mxu0 0.0
        %4916 = vmatprep.subr.mxu0 0.0
        %4917 = vmatpush1.msra.mxu0 0.0
        %4918 = vmatprep.subr.mxu0 0.0
        %4919 = vmatpush1.msra.mxu0 0.0
        %4920 = vmatprep.subr.mxu0 0.0
        %4921 = vmatpush1.msra.mxu0 0.0
        %4922 = vmatprep.subr.mxu0 0.0
        %4923 = vmatpush1.msra.mxu0 0.0
        %4924 = vmatprep.subr.mxu0 0.0
        %4925 = vmatpush1.msra.mxu0 0.0
        %4926 = vmatprep.subr.mxu0 0.0
        %4927 = vmatpush1.msra.mxu0 0.0
        %4928 = vmatprep.subr.mxu0 0.0
        %4929 = vmatpush1.msra.mxu0 0.0
        %4930 = vmatprep.subr.mxu0 0.0
        %4931 = vmatpush1.msra.mxu0 0.0
        %4932 = vmatprep.subr.mxu0 0.0
        %4933 = vmatpush1.msra.mxu0 0.0
        %4934 = vmatprep.subr.mxu0 0.0
        %4935 = vmatpush1.msra.mxu0 0.0
        %4936 = vmatprep.subr.mxu0 0.0
        %4937 = vmatpush1.msra.mxu0 0.0
        %4938 = vmatprep.subr.mxu0 0.0
        %4939 = vmatpush1.msra.mxu0 0.0
        %4940 = vmatprep.mubr.f32.mxu0 0.0
        %4941 = vmatmul.mubr.f32.gmra.mrb[0].mxu0 %v4750
        %v4942 = vpop.f32.mrb[0].mxu0
        %v4943 = vadd.f32 0.0, %v4942
        %v4944 = vpop.f32.mrb[0].mxu0
        %v4945 = vadd.f32 0.0, %v4944
        %4946 = vmatprep.mubr.f32.mxu0 0.0
        %4947 = vmatmul.mubr.f32.gmra.mrb[0].mxu0 %v4753
        %v4948 = vpop.f32.mrb[0].mxu0
        %v4949 = vadd.f32 0.0, %v4948
        %v4950 = vpop.f32.mrb[0].mxu0
        %v4951 = vadd.f32 0.0, %v4950
        %4952 = vmatprep.mubr.f32.mxu0 0.0
        %4953 = vmatmul.mubr.f32.gmra.mrb[0].mxu0 %v4756
        %v4954 = vpop.f32.mrb[0].mxu0
        %v4955 = vadd.f32 0.0, %v4954
        %v4956 = vpop.f32.mrb[0].mxu0
        %v4957 = vadd.f32 0.0, %v4956
        %4958 = vmatprep.mubr.f32.mxu0 0.0
        %4959 = vmatmul.mubr.f32.gmra.mrb[0].mxu0 %v4759
        %v4960 = vpop.f32.mrb[0].mxu0
        %v4961 = vpop.f32.mrb[0].mxu0
        %4962 = vmatprep.mubr.f32.mxu0 0.0
        %4963 = vmatmul.mubr.f32.gmra.mrb[0].mxu0 %v4762
        %v4964 = vpop.f32.mrb[0].mxu0
        %v4965 = vpop.f32.mrb[0].mxu0
        %4966 = vmatprep.mubr.f32.mxu0 0.0
        %4967 = vmatmul.mubr.f32.gmra.mrb[0].mxu0 %v4765
        %v4968 = vpop.f32.mrb[0].mxu0
        %v4969 = vpop.f32.mrb[0].mxu0
        %4970 = vmatprep.mubr.f32.mxu0 0.0
        %4971 = vmatmul.mubr.f32.gmra.mrb[0].mxu0 %v4768
        %v4972 = vpop.f32.mrb[0].mxu0
        %v4973 = vpop.f32.mrb[0].mxu0
        %4974 = vmatprep.mubr.f32.mxu0 0.0
        %4975 = vmatmul.mubr.f32.gmra.mrb[0].mxu0 %v4771
        %v4976 = vpop.f32.mrb[0].mxu0
        %v4977 = vpop.f32.mrb[0].mxu0
        %4978 = vdwg.mxu0
        %v4980 = vsel %vm3752, %v4733, 0
        %v4983 = vsel %vm3752, %v4734, 0
        %v4986 = vsel %vm3752, %v4735, 0
        %v4989 = vsel %vm3752, %v4736, 0
        %v4992 = vsel %vm3752, %v4737, 0
        %v4995 = vsel %vm3752, %v4738, 0
        %v4998 = vsel %vm3752, %v4739, 0
        %v5001 = vsel %vm3752, %v4740, 0
        %5003 = vmatprep.subr.mxu0 %v4702
        %5004 = vmatpush1.msra.mxu0 %v4701
        %5005 = vmatprep.subr.mxu0 %v4706
        %5006 = vmatpush1.msra.mxu0 %v4705
        %5007 = vmatprep.subr.mxu0 %v4710
        %5008 = vmatpush1.msra.mxu0 %v4709
        %5009 = vmatprep.subr.mxu0 %v4714
        %5010 = vmatpush1.msra.mxu0 %v4713
        %5011 = vmatprep.subr.mxu0 %v4718
        %5012 = vmatpush1.msra.mxu0 %v4717
        %5013 = vmatprep.subr.mxu0 %v4722
        %5014 = vmatpush1.msra.mxu0 %v4721
        %5015 = vmatprep.subr.mxu0 %v4726
        %5016 = vmatpush1.msra.mxu0 %v4725
        %5017 = vmatprep.subr.mxu0 %v4730
        %5018 = vmatpush1.msra.mxu0 %v4729
        %5019 = vmatprep.subr.mxu0 0.0
        %5020 = vmatpush1.msra.mxu0 0.0
        %5021 = vmatprep.subr.mxu0 0.0
        %5022 = vmatpush1.msra.mxu0 0.0
        %5023 = vmatprep.subr.mxu0 0.0
        %5024 = vmatpush1.msra.mxu0 0.0
        %5025 = vmatprep.subr.mxu0 0.0
        %5026 = vmatpush1.msra.mxu0 0.0
        %5027 = vmatprep.subr.mxu0 0.0
        %5028 = vmatpush1.msra.mxu0 0.0
        %5029 = vmatprep.subr.mxu0 0.0
        %5030 = vmatpush1.msra.mxu0 0.0
        %5031 = vmatprep.subr.mxu0 0.0
        %5032 = vmatpush1.msra.mxu0 0.0
        %5033 = vmatprep.subr.mxu0 0.0
        %5034 = vmatpush1.msra.mxu0 0.0
        %5035 = vmatprep.subr.mxu0 0.0
        %5036 = vmatpush1.msra.mxu0 0.0
        %5037 = vmatprep.subr.mxu0 0.0
        %5038 = vmatpush1.msra.mxu0 0.0
        %5039 = vmatprep.subr.mxu0 0.0
        %5040 = vmatpush1.msra.mxu0 0.0
        %5041 = vmatprep.subr.mxu0 0.0
        %5042 = vmatpush1.msra.mxu0 0.0
        %5043 = vmatprep.subr.mxu0 0.0
        %5044 = vmatpush1.msra.mxu0 0.0
        %5045 = vmatprep.subr.mxu0 0.0
        %5046 = vmatpush1.msra.mxu0 0.0
        %5047 = vmatprep.subr.mxu0 0.0
        %5048 = vmatpush1.msra.mxu0 0.0
        %5049 = vmatprep.subr.mxu0 0.0
        %5050 = vmatpush1.msra.mxu0 0.0
        %5051 = vmatprep.subr.mxu0 0.0
        %5052 = vmatpush1.msra.mxu0 0.0
        %5053 = vmatprep.subr.mxu0 0.0
        %5054 = vmatpush1.msra.mxu0 0.0
        %5055 = vmatprep.subr.mxu0 0.0
        %5056 = vmatpush1.msra.mxu0 0.0
        %5057 = vmatprep.subr.mxu0 0.0
        %5058 = vmatpush1.msra.mxu0 0.0
        %5059 = vmatprep.subr.mxu0 0.0
        %5060 = vmatpush1.msra.mxu0 0.0
        %5061 = vmatprep.subr.mxu0 0.0
        %5062 = vmatpush1.msra.mxu0 0.0
        %5063 = vmatprep.subr.mxu0 0.0
        %5064 = vmatpush1.msra.mxu0 0.0
        %5065 = vmatprep.subr.mxu0 0.0
        %5066 = vmatpush1.msra.mxu0 0.0
        %5067 = vmatprep.mubr.f32.mxu0 0.0
        %5068 = vmatmul.mubr.f32.gmra.mrb[0].mxu0 %v4980
        %v5069 = vpop.f32.mrb[0].mxu0
        %v5070 = vadd.f32 %v4840, %v5069
        %v5071 = vpop.f32.mrb[0].mxu0
        %v5072 = vadd.f32 %v4842, %v5071
        %5073 = vmatprep.mubr.f32.mxu0 0.0
        %5074 = vmatmul.mubr.f32.gmra.mrb[0].mxu0 %v4983
        %v5075 = vpop.f32.mrb[0].mxu0
        %v5076 = vadd.f32 %v4846, %v5075
        %v5077 = vpop.f32.mrb[0].mxu0
        %v5078 = vadd.f32 %v4848, %v5077
        %5079 = vmatprep.mubr.f32.mxu0 0.0
        %5080 = vmatmul.mubr.f32.gmra.mrb[0].mxu0 %v4986
        %v5081 = vpop.f32.mrb[0].mxu0
        %v5082 = vadd.f32 %v4852, %v5081
        %v5083 = vpop.f32.mrb[0].mxu0
        %v5084 = vadd.f32 %v4854, %v5083
        %5085 = vmatprep.mubr.f32.mxu0 0.0
        %5086 = vmatmul.mubr.f32.gmra.mrb[0].mxu0 %v4989
        %v5087 = vpop.f32.mrb[0].mxu0
        %v5088 = vpop.f32.mrb[0].mxu0
        %5089 = vmatprep.mubr.f32.mxu0 0.0
        %5090 = vmatmul.mubr.f32.gmra.mrb[0].mxu0 %v4992
        %v5091 = vpop.f32.mrb[0].mxu0
        %v5092 = vpop.f32.mrb[0].mxu0
        %5093 = vmatprep.mubr.f32.mxu0 0.0
        %5094 = vmatmul.mubr.f32.gmra.mrb[0].mxu0 %v4995
        %v5095 = vpop.f32.mrb[0].mxu0
        %v5096 = vpop.f32.mrb[0].mxu0
        %5097 = vmatprep.mubr.f32.mxu0 0.0
        %5098 = vmatmul.mubr.f32.gmra.mrb[0].mxu0 %v4998
        %v5099 = vpop.f32.mrb[0].mxu0
        %v5100 = vpop.f32.mrb[0].mxu0
        %5101 = vmatprep.mubr.f32.mxu0 0.0
        %5102 = vmatmul.mubr.f32.gmra.mrb[0].mxu0 %v5001
        %v5103 = vpop.f32.mrb[0].mxu0
        %v5104 = vpop.f32.mrb[0].mxu0
        %5105 = vdwg.mxu0
        %5106 = vmatprep.subr.mxu0 %v4704
        %5107 = vmatpush1.msra.mxu0 %v4703
        %5108 = vmatprep.subr.mxu0 %v4708
        %5109 = vmatpush1.msra.mxu0 %v4707
        %5110 = vmatprep.subr.mxu0 %v4712
        %5111 = vmatpush1.msra.mxu0 %v4711
        %5112 = vmatprep.subr.mxu0 %v4716
        %5113 = vmatpush1.msra.mxu0 %v4715
        %5114 = vmatprep.subr.mxu0 %v4720
        %5115 = vmatpush1.msra.mxu0 %v4719
        %5116 = vmatprep.subr.mxu0 %v4724
        %5117 = vmatpush1.msra.mxu0 %v4723
        %5118 = vmatprep.subr.mxu0 %v4728
        %5119 = vmatpush1.msra.mxu0 %v4727
        %5120 = vmatprep.subr.mxu0 %v4732
        %5121 = vmatpush1.msra.mxu0 %v4731
        %5122 = vmatprep.subr.mxu0 0.0
        %5123 = vmatpush1.msra.mxu0 0.0
        %5124 = vmatprep.subr.mxu0 0.0
        %5125 = vmatpush1.msra.mxu0 0.0
        %5126 = vmatprep.subr.mxu0 0.0
        %5127 = vmatpush1.msra.mxu0 0.0
        %5128 = vmatprep.subr.mxu0 0.0
        %5129 = vmatpush1.msra.mxu0 0.0
        %5130 = vmatprep.subr.mxu0 0.0
        %5131 = vmatpush1.msra.mxu0 0.0
        %5132 = vmatprep.subr.mxu0 0.0
        %5133 = vmatpush1.msra.mxu0 0.0
        %5134 = vmatprep.subr.mxu0 0.0
        %5135 = vmatpush1.msra.mxu0 0.0
        %5136 = vmatprep.subr.mxu0 0.0
        %5137 = vmatpush1.msra.mxu0 0.0
        %5138 = vmatprep.subr.mxu0 0.0
        %5139 = vmatpush1.msra.mxu0 0.0
        %5140 = vmatprep.subr.mxu0 0.0
        %5141 = vmatpush1.msra.mxu0 0.0
        %5142 = vmatprep.subr.mxu0 0.0
        %5143 = vmatpush1.msra.mxu0 0.0
        %5144 = vmatprep.subr.mxu0 0.0
        %5145 = vmatpush1.msra.mxu0 0.0
        %5146 = vmatprep.subr.mxu0 0.0
        %5147 = vmatpush1.msra.mxu0 0.0
        %5148 = vmatprep.subr.mxu0 0.0
        %5149 = vmatpush1.msra.mxu0 0.0
        %5150 = vmatprep.subr.mxu0 0.0
        %5151 = vmatpush1.msra.mxu0 0.0
        %5152 = vmatprep.subr.mxu0 0.0
        %5153 = vmatpush1.msra.mxu0 0.0
        %5154 = vmatprep.subr.mxu0 0.0
        %5155 = vmatpush1.msra.mxu0 0.0
        %5156 = vmatprep.subr.mxu0 0.0
        %5157 = vmatpush1.msra.mxu0 0.0
        %5158 = vmatprep.subr.mxu0 0.0
        %5159 = vmatpush1.msra.mxu0 0.0
        %5160 = vmatprep.subr.mxu0 0.0
        %5161 = vmatpush1.msra.mxu0 0.0
        %5162 = vmatprep.subr.mxu0 0.0
        %5163 = vmatpush1.msra.mxu0 0.0
        %5164 = vmatprep.subr.mxu0 0.0
        %5165 = vmatpush1.msra.mxu0 0.0
        %5166 = vmatprep.subr.mxu0 0.0
        %5167 = vmatpush1.msra.mxu0 0.0
        %5168 = vmatprep.subr.mxu0 0.0
        %5169 = vmatpush1.msra.mxu0 0.0
        %5170 = vmatprep.mubr.f32.mxu0 0.0
        %5171 = vmatmul.mubr.f32.gmra.mrb[0].mxu0 %v4980
        %v5172 = vpop.f32.mrb[0].mxu0
        %v5173 = vadd.f32 %v4943, %v5172
        %v5174 = vpop.f32.mrb[0].mxu0
        %v5175 = vadd.f32 %v4945, %v5174
        %5176 = vmatprep.mubr.f32.mxu0 0.0
        %5177 = vmatmul.mubr.f32.gmra.mrb[0].mxu0 %v4983
        %v5178 = vpop.f32.mrb[0].mxu0
        %v5179 = vadd.f32 %v4949, %v5178
        %v5180 = vpop.f32.mrb[0].mxu0
        %v5181 = vadd.f32 %v4951, %v5180
        %5182 = vmatprep.mubr.f32.mxu0 0.0
        %5183 = vmatmul.mubr.f32.gmra.mrb[0].mxu0 %v4986
        %v5184 = vpop.f32.mrb[0].mxu0
        %v5185 = vadd.f32 %v4955, %v5184
        %v5186 = vpop.f32.mrb[0].mxu0
        %v5187 = vadd.f32 %v4957, %v5186
        %5188 = vmatprep.mubr.f32.mxu0 0.0
        %5189 = vmatmul.mubr.f32.gmra.mrb[0].mxu0 %v4989
        %v5190 = vpop.f32.mrb[0].mxu0
        %v5191 = vpop.f32.mrb[0].mxu0
        %5192 = vmatprep.mubr.f32.mxu0 0.0
        %5193 = vmatmul.mubr.f32.gmra.mrb[0].mxu0 %v4992
        %v5194 = vpop.f32.mrb[0].mxu0
        %v5195 = vpop.f32.mrb[0].mxu0
        %5196 = vmatprep.mubr.f32.mxu0 0.0
        %5197 = vmatmul.mubr.f32.gmra.mrb[0].mxu0 %v4995
        %v5198 = vpop.f32.mrb[0].mxu0
        %v5199 = vpop.f32.mrb[0].mxu0
        %5200 = vmatprep.mubr.f32.mxu0 0.0
        %5201 = vmatmul.mubr.f32.gmra.mrb[0].mxu0 %v4998
        %v5202 = vpop.f32.mrb[0].mxu0
        %v5203 = vpop.f32.mrb[0].mxu0
        %5204 = vmatprep.mubr.f32.mxu0 0.0
        %5205 = vmatmul.mubr.f32.gmra.mrb[0].mxu0 %v5001
        %v5206 = vpop.f32.mrb[0].mxu0
        %v5207 = vpop.f32.mrb[0].mxu0
        %5208 = vdwg.mxu0
        %v5209 = vld [vmem:[%s1 + $0x180] sm:$0xff]
        %v5210 = vld [vmem:[%s1 + $0x188] sm:$0xff]
        %v5211 = vld [vmem:[%s1 + $0x190] sm:$0x1]
        %5213 = vset.pattern.permute.xlu0 0
        %5214 = vperm.xlu0 %5213, %v5209
        %v5215 = vpop.permute.xlu0 %5214
        %5218 = vset.pattern.permute.xlu0 0
        %5219 = vperm.xlu0 %5218, %v5210
        %v5220 = vpop.permute.xlu0 %5219
        %5223 = vset.pattern.permute.xlu0 0
        %5224 = vperm.xlu0 %5223, %v5211
        %v5225 = vpop.permute.xlu0 %5224
        %v5227 = vadd.f32 %v5070, %v5215
        %v5228 = vadd.f32 %v5072, %v5215
        %v5229 = vadd.f32 %v5173, %v5215
        %v5230 = vadd.f32 %v5175, %v5215
        %v5231 = vadd.f32 %v5076, %v5220
        %v5232 = vadd.f32 %v5078, %v5220
        %v5233 = vadd.f32 %v5179, %v5220
        %v5234 = vadd.f32 %v5181, %v5220
        %v5235 = vadd.f32 %v5082, %v5225
        %v5236 = vadd.f32 %v5084, %v5225
        %v5237 = vadd.f32 %v5185, %v5225
        %v5238 = vadd.f32 %v5187, %v5225
        %5239 = vst [vmem:[%s137] sm:$0xff] %v5227
        %5240 = vst [vmem:[%s137 + $0x8] sm:$0xff] %v5228
        %5241 = vst [vmem:[%s137 + $0x10] sm:$0xff] %v5229
        %5242 = vst [vmem:[%s137 + $0x18] sm:$0xff] %v5230
        %5243 = vst [vmem:[%s137 + $0x20] sm:$0xff] %v5231
        %5244 = vst [vmem:[%s137 + $0x28] sm:$0xff] %v5232
        %5245 = vst [vmem:[%s137 + $0x30] sm:$0xff] %v5233
        %5246 = vst [vmem:[%s137 + $0x38] sm:$0xff] %v5234
        %5247 = vst [vmem:[%s137 + $0x40] sm:$0x1] %v5235
        %5248 = vst [vmem:[%s137 + $0x48] sm:$0x1] %v5236
        %5249 = vst [vmem:[%s137 + $0x50] sm:$0x1] %v5237
        %5250 = vst [vmem:[%s137 + $0x58] sm:$0x1] %v5238
        %vm5251 = vcmp.gt.f32.partialorder %v5227, 20.0
        %vm5252 = vcmp.gt.f32.partialorder %v5228, 20.0
        %vm5253 = vcmp.gt.f32.partialorder %v5229, 20.0
        %vm5254 = vcmp.gt.f32.partialorder %v5230, 20.0
        %v5255 = vmin.f32 %v5227, 20.0
        %v5256 = vmin.f32 %v5228, 20.0
        %v5257 = vmin.f32 %v5229, 20.0
        %v5258 = vmin.f32 %v5230, 20.0
        %v5259 = vmul.f32 %v5255, 1.442695
        %v5260 = vpow.pop %v5259
        %v5261 = vmul.f32 %v5256, 1.442695
        %v5262 = vpow.pop %v5261
        %v5263 = vmul.f32 %v5257, 1.442695
        %v5264 = vpow.pop %v5263
        %v5265 = vmul.f32 %v5258, 1.442695
        %v5266 = vpow.pop %v5265
        %v5267 = vadd.f32 %v5260, 1.0
        %v5268 = vadd.f32 %v5262, 1.0
        %v5269 = vadd.f32 %v5264, 1.0
        %v5270 = vadd.f32 %v5266, 1.0
        %v5271 = vlog2.pop %v5267
        %v5272 = vmul.f32 %v5271, 0.6931472
        %v5273 = vlog2.pop %v5268
        %v5274 = vmul.f32 %v5273, 0.6931472
        %v5275 = vlog2.pop %v5269
        %v5276 = vmul.f32 %v5275, 0.6931472
        %v5277 = vlog2.pop %v5270
        %v5278 = vmul.f32 %v5277, 0.6931472
        %v5279 = vsel %vm5251, %v5227, %v5272
        %v5280 = vsel %vm5252, %v5228, %v5274
        %v5281 = vsel %vm5253, %v5229, %v5276
        %v5282 = vsel %vm5254, %v5230, %v5278
        %v5287 = vcombine.low %v5279, %v5280
        %v5288 = vcombine.low %v5281, %v5282
        %v5290 = vunpack.c.l.s4 1966171168
        %v5291 = vunpack.c.0.s8 %v5290
        %v5292 = vlaneseq
        %v5293 = vshrl.u32 %v5292, 7
        %v5294 = vsub.s32 %v5291, %v5293
        %v5295 = vrot.slane %v5287, %v5294
        %v5297 = vunpack.c.l.s4 1966171168
        %v5298 = vunpack.c.0.s8 %v5297
        %v5299 = vlaneseq
        %v5300 = vshrl.u32 %v5299, 7
        %v5301 = vsub.s32 %v5298, %v5300
        %v5302 = vrot.slane %v5288, %v5301
        %v5303 = vcombine.high %v5295, %v5302
        %v5305 = vunpack.c.l.s4 1966171168
        %v5306 = vunpack.c.0.s8 %v5305
        %v5307 = vlaneseq
        %v5308 = vshrl.u32 %v5307, 7
        %v5309 = vsub.s32 %v5306, %v5308
        %v5310 = vrot.slane %v5303, %v5309
        %v5312 = vlaneseq
        %vm5313 = vcmp.ge.s32.totalorder %v5312, 0
        %vm5314 = vcmp.lt.s32.totalorder %v5312, 512
        %vm5315 = vmand %vm5313, %vm5314
        %s5316 = scalar_lea.vmem %s137, 65 [#allocation2]
        %5317 = vst.msk [vmem:[%s5316] ss:$8 sm:$0xf] %vm5315, %v5310
        %5318 = vst.msk [vmem:[%s5316] ss:$8 sm:$0x0] %vm5315, %v5310
        %s5319 = sand.u32 %s71, 1
        %s5320 = scalar_lea.sflag [#allocation3], %s5319
        %s5321 = sand.u32 %s71, 1
        %s5322 = smul.addr %s5321, 96
        %s5323 = scalar_lea.vmem [#allocation2], %s5322
        // Predicated region
        $region29: #{tpu_custom_call.1} parent=27 // pred_check
          %p5324 = pneg %p81
        $region30: #{tpu_custom_call.1} parent=27 // pred_check_branch
          %5326 = sbr.rel (%p5324) target = $region32
        $region31: #{tpu_custom_call.1} parent=27 // pred_region
          %s5327 = smul.u32 4, %s16
          %s5329 = ssub.s32 1536, 1536
          %5330 = vsyncadd %s5320, %s5329
          %s5331 = smul.addr %s5327, 128
          %s5332 = scalar_lea.hbm %s2, %s5331
          %s5333 = sshll.u32 %s5323, 4
          %s5334 = int_to_ptr.vmem [resolvable:$true] %s5333
          %5339 = dma.vmem_to_hbm [thread:$0]  %s5334, 1536, %s5332, %s5320, 512, 1024, 32
        $region32: #{tpu_custom_call.1} parent=27 // pred_fallthru
          _
      $region28: #{tpu_custom_call.1} parent=5 // pred_fallthru
        _
      %p5340 = scmp.le.s32.totalorder 2, %s11
      // Predicated region
      $region33: #{tpu_custom_call.1} parent=5 // pred_check
        %p5341 = pneg %p5340
      $region34: #{tpu_custom_call.1} parent=5 // pred_check_branch
        %5343 = sbr.rel (%p5341) target = $region36
      $region35: #{tpu_custom_call.1} parent=5 // pred_region
        %s5344 = ssub.s32 %s11, 2
        // Predicated region
        $region37: #{tpu_custom_call.1} parent=35 // pred_check
          %p5345 = pneg %p87
        $region38: #{tpu_custom_call.1} parent=35 // pred_check_branch
          %5347 = sbr.rel (%p5345) target = $region40
        $region39: #{tpu_custom_call.1} parent=35 // pred_region
          %s5348 = sand.u32 %s72, 1
          %s5349 = scalar_lea.sflag [#allocation3], %s5348
          %s5350 = sand.u32 %s72, 1
          %s5351 = smul.addr %s5350, 96
          %s5352 = scalar_lea.vmem [#allocation2], %s5351
          %5353 = dma.done %s5349, 1536
        $region40: #{tpu_custom_call.1} parent=35 // pred_fallthru
          _
      $region36: #{tpu_custom_call.1} parent=5 // pred_fallthru
        _
    $region6: #{tpu_custom_call.1} parent=1 // loop_footer
      %s15 = sadd.s32 1, %s11
    $region7: #{tpu_custom_call.1} parent=1 // loop_footer_branch
      %10 = sbr.rel target = $region3
    $region8: #{tpu_custom_call.1} parent=1 // loop_exit
      _
    %5354 = vsyncpa [#allocation3], 1
    %s5355 = scalar_lea.sflag [#allocation3], 1
    %5356 = vsyncpa %s5355, 1

</llo_original>
